<compile_context>
chip_gen: v6e
topology: v6e:2x2x1
jax: 0.10.0
libtpu: 0.0.40
codegen_flags: <defaults>
</compile_context>

<pallas_src>
import functools

import jax
import jax.numpy as jnp
from jax import lax
from jax.experimental import pallas as pl
from jax.experimental.pallas import tpu as pltpu


# ---------------------------------------------------------------------------
# Kernel: one grid step processes one image.
# ---------------------------------------------------------------------------
def _rrb_kernel(x_ref, w1_ref, b1_ref, w2s_ref, b2_ref, w3s_ref, o_ref, hp_ref,
                *, W, PAD):
    """Refs:
       x_ref  : (1, HW, C)       one image, channels-last (HW sublanes, C lanes)
       w1_ref : (C, C)           1x1 conv weight, (C_in, C_out), f32
       b1_ref : (1, C)           1x1 conv bias, f32
       w2s_ref: (3, 3C, C)       first 3x3 conv weights stacked per kx (rows = ky*C + cin)
       b2_ref : (1, C)           first 3x3 conv bias, f32
       w3s_ref: (3, 3C, C)       second 3x3 conv weights stacked per kx (bias=False)
       o_ref  : (1, HW, C)       output image
       hp_ref : (HW + 2*PAD, 3C) scratch: column group ky holds the activation
                                 shifted by (ky-1)*W rows; rows outside the
                                 written interiors stay zero (= vertical pad).
    """
    _, HW, C = x_ref.shape
    sdtype = hp_ref.dtype

    # Zero only the pad rows (these two slabs cover the pad region of all three
    # column groups; the interiors are fully rewritten by every conv below).
    zpad = jnp.zeros((PAD + W, 3 * C), sdtype)
    hp_ref[0:PAD + W, :] = zpad
    hp_ref[HW + PAD - W:HW + 2 * PAD, :] = zpad

    # Horizontal-edge masks, one per shifted kx group (built once per step,
    # reused by both convs).
    col = lax.broadcasted_iota(jnp.int32, (HW, 1), 0) % W
    mask_l = (col > 0).astype(jnp.float32)       # kx=0 taps invalid at x == 0
    mask_r = (col < W - 1).astype(jnp.float32)   # kx=2 taps invalid at x == W-1

    def conv3x3(act, w_ref, bias):
        # act: (HW, C) f32.  3x3 "same" cross-correlation as 3 K=3C matmuls.
        a = act.astype(sdtype)
        for ky in range(3):                       # 3 vertically shifted copies
            s = PAD - (ky - 1) * W                # aligned store offsets
            hp_ref[s:s + HW, ky * C:(ky + 1) * C] = a
        slab = hp_ref[PAD:PAD + HW, :]            # (HW, 3C), aligned, loaded once
        p_c = jnp.dot(slab, w_ref[1], preferred_element_type=jnp.float32)
        p_l = jnp.dot(slab, w_ref[0], preferred_element_type=jnp.float32)
        p_r = jnp.dot(slab, w_ref[2], preferred_element_type=jnp.float32)
        acc = p_c if bias is None else p_c + bias  # centre tap seeds the acc
        # +-1 horizontal taps: roll the matmul *results* by one row; the rows
        # that wrap are exactly the edge columns killed by the masks.
        acc = acc + mask_l * pltpu.roll(p_l, 1, axis=0)       # out[i] = p_l[i-1]
        acc = acc + mask_r * pltpu.roll(p_r, HW - 1, axis=0)  # out[i] = p_r[i+1]
        return acc

    x = x_ref[0]                                                     # (HW, C) f32
    h = jnp.dot(x, w1_ref[...], preferred_element_type=jnp.float32) + b1_ref[...]
    u = jnp.maximum(conv3x3(h, w2s_ref, b2_ref[...]), 0.0)          # relu(conv3a(h)+b2)
    v = conv3x3(u, w3s_ref, None)                                   # conv3b (no bias)
    o_ref[0] = jnp.maximum(h + v, 0.0)                              # relu(h + v)


# ---------------------------------------------------------------------------
# Wrapper.
# ---------------------------------------------------------------------------
def _vmem_limit_bytes(C, HW, PAD, sbytes):
    io = 2 * 2 * HW * C * 4                                    # in+out blocks, double-buffered
    wts = 2 * ((C * C + 2 * C) * 4 + 2 * 9 * C * C * sbytes)   # resident weights (2 pipeline bufs)
    scratch = (HW + 2 * PAD) * 3 * C * sbytes                  # patch buffer
    live = 8 * HW * C * 4                                      # f32 intermediates + headroom
    est = io + wts + scratch + live
    # Grow the scoped-VMEM cap past the small per-generation defaults, but stay
    # within v7x's 64 MiB physical VMEM.
    return int(min(max(2 * est, 32 * 1024 * 1024), 64 * 1024 * 1024))


def rrb_forward(x, params):
    """RRB forward (use_bn=False).  x: (N, C, H, W) f32.  params: torch-layout weights."""
    N, C, H, W = x.shape
    HW = H * W
    PAD = max(16, -(-W // 16) * 16)          # >= W, 16-row aligned

    # bf16 patch buffer / 3x3 weights only when the +-W store offsets stay
    # aligned to the bf16 sublane packing; otherwise fall back to f32.
    sdtype = jnp.bfloat16 if (W % 16 == 0) else jnp.float32
    sbytes = jnp.dtype(sdtype).itemsize

    w1 = jnp.asarray(params["conv1x1_w"], jnp.float32)[:, :, 0, 0].T     # (Cin, Cout)
    b1 = jnp.asarray(params["conv1x1_b"], jnp.float32).reshape(1, C)
    b2 = jnp.asarray(params["conv3a_b"], jnp.float32).reshape(1, C)
    # (O, I, Ky, Kx) -> (Kx, Ky, I, O) -> (Kx, Ky*I, O): per-kx stacks, K = 3*C.
    w2s = jnp.transpose(jnp.asarray(params["conv3a_w"], jnp.float32),
                        (3, 2, 1, 0)).reshape(3, 3 * C, C).astype(sdtype)
    w3s = jnp.transpose(jnp.asarray(params["conv3b_w"], jnp.float32),
                        (3, 2, 1, 0)).reshape(3, 3 * C, C).astype(sdtype)

    # One XLA-side NCHW -> (N, HW, C) transpose (no per-image XLU transposes).
    xf = jnp.transpose(x.astype(jnp.float32), (0, 2, 3, 1)).reshape(N, HW, C)

    kernel = functools.partial(_rrb_kernel, W=W, PAD=PAD)
    # TODO(synk): for very large H*W a second grid axis over row-tiles (+1-row
    # halo) would bound VMEM per step; unnecessary at these sizes.
    out = pl.pallas_call(
        kernel,
        out_shape=jax.ShapeDtypeStruct((N, HW, C), jnp.float32),
        grid=(N,),                         # 1 image / step: N >= 2 steps for megacore
        in_specs=[
            pl.BlockSpec((1, HW, C), lambda i: (i, 0, 0)),
            # Constant index maps: weights/biases DMA'd once, resident in VMEM.
            pl.BlockSpec((C, C), lambda i: (0, 0)),
            pl.BlockSpec((1, C), lambda i: (0, 0)),
            pl.BlockSpec((3, 3 * C, C), lambda i: (0, 0, 0)),
            pl.BlockSpec((1, C), lambda i: (0, 0)),
            pl.BlockSpec((3, 3 * C, C), lambda i: (0, 0, 0)),
        ],
        out_specs=pl.BlockSpec((1, HW, C), lambda i: (i, 0, 0)),
        scratch_shapes=[pltpu.VMEM((HW + 2 * PAD, 3 * C), sdtype)],
        compiler_params=pltpu.CompilerParams(
            dimension_semantics=("parallel",),
            vmem_limit_bytes=_vmem_limit_bytes(C, HW, PAD, sbytes)),
    )(xf, w1, b1, w2s, b2, w3s)

    return jnp.transpose(out.reshape(N, H, W, C), (0, 3, 1, 2))


# ---------------------------------------------------------------------------
# Pure-JAX reference (mirrors the PyTorch forward exactly) for a sanity check.
# ---------------------------------------------------------------------------
def rrb_reference(x, params):
    dn = ("NCHW", "OIHW", "NCHW")
    w1 = jnp.asarray(params["conv1x1_w"], jnp.float32)
    b1 = jnp.asarray(params["conv1x1_b"], jnp.float32)
    w2 = jnp.asarray(params["conv3a_w"], jnp.float32)
    b2 = jnp.asarray(params["conv3a_b"], jnp.float32)
    w3 = jnp.asarray(params["conv3b_w"], jnp.float32)

    h = lax.conv_general_dilated(x, w1, (1, 1), "VALID", dimension_numbers=dn,
                                 precision=lax.Precision.HIGHEST)
    h = h + b1.reshape(1, -1, 1, 1)
    u = lax.conv_general_dilated(h, w2, (1, 1), ((1, 1), (1, 1)),
                                 dimension_numbers=dn,
                                 precision=lax.Precision.HIGHEST)
    u = jnp.maximum(u + b2.reshape(1, -1, 1, 1), 0.0)
    v = lax.conv_general_dilated(u, w3, (1, 1), ((1, 1), (1, 1)),
                                 dimension_numbers=dn,
                                 precision=lax.Precision.HIGHEST)
    return jnp.maximum(h + v, 0.0)


if __name__ == "__main__":
    key = jax.random.PRNGKey(0)
    N, C, H, W = 2, 32, 16, 16
    k = jax.random.split(key, 6)

    x = jax.random.normal(k[0], (N, C, H, W), dtype=jnp.float32)
    params = {
        "conv1x1_w": jax.random.normal(k[1], (C, C, 1, 1), jnp.float32) / jnp.sqrt(C),
        "conv1x1_b": jax.random.normal(k[2], (C,), jnp.float32) * 0.1,
        "conv3a_w": jax.random.normal(k[3], (C, C, 3, 3), jnp.float32) / jnp.sqrt(9 * C),
        "conv3a_b": jax.random.normal(k[4], (C,), jnp.float32) * 0.1,
        "conv3b_w": jax.random.normal(k[5], (C, C, 3, 3), jnp.float32) / jnp.sqrt(9 * C),
    }

    y = jax.block_until_ready(rrb_forward(x, params))
    y_ref = jax.block_until_ready(rrb_reference(x, params))

    assert y.shape == (N, C, H, W), y.shape
    err = float(jnp.max(jnp.abs(y - y_ref)))
    assert err < 5e-2, err

    print("KERNEL_OK")
</pallas_src>

<mosaic_0001>
module attributes {stable_mosaic.version = 11 : i64} {
  func.func @_rrb_kernel(%arg0: i32, %arg1: memref<1x256x32xf32, #tpu.memory_space<vmem>>, %arg2: memref<32x32xf32, #tpu.memory_space<vmem>>, %arg3: memref<1x32xf32, #tpu.memory_space<vmem>>, %arg4: memref<3x96x32xbf16, #tpu.memory_space<vmem>>, %arg5: memref<1x32xf32, #tpu.memory_space<vmem>>, %arg6: memref<3x96x32xbf16, #tpu.memory_space<vmem>>, %arg7: memref<1x256x32xf32, #tpu.memory_space<vmem>>, %arg8: memref<288x96xbf16, #tpu.memory_space<vmem>>) attributes {dimension_semantics = [#tpu.dimension_semantics<parallel>], iteration_bounds = array<i64: 2>, scalar_prefetch = 0 : i64, scratch_operands = 1 : i64, tpu.core_type = #tpu.core_type<tc>, window_params = [{transform_indices = @transform_0, window_bounds = array<i64: 1, 256, 32>}, {pipeline_mode = #tpu.pipeline_mode<synchronous>, transform_indices = @transform_1, window_bounds = array<i64: 32, 32>}, {pipeline_mode = #tpu.pipeline_mode<synchronous>, transform_indices = @transform_2, window_bounds = array<i64: 1, 32>}, {pipeline_mode = #tpu.pipeline_mode<synchronous>, transform_indices = @transform_3, window_bounds = array<i64: 3, 96, 32>}, {pipeline_mode = #tpu.pipeline_mode<synchronous>, transform_indices = @transform_4, window_bounds = array<i64: 1, 32>}, {pipeline_mode = #tpu.pipeline_mode<synchronous>, transform_indices = @transform_5, window_bounds = array<i64: 3, 96, 32>}, {transform_indices = @transform_6, window_bounds = array<i64: 1, 256, 32>}]} {
    %cst = arith.constant 0.000000e+00 : bf16
    %0 = vector.broadcast %cst : bf16 to vector<32x96xbf16>
    %c0 = arith.constant 0 : index
    %c0_0 = arith.constant 0 : index
    %1 = vector.load %arg8[%c0, %c0_0] : memref<288x96xbf16, #tpu.memory_space<vmem>>, vector<32x96xbf16>
    tpu.vector_store %arg8[%c0, %c0_0], %0 {strides = array<i32>} : memref<288x96xbf16, #tpu.memory_space<vmem>>, vector<32x96xbf16>,
    %c256 = arith.constant 256 : index
    %c0_1 = arith.constant 0 : index
    %2 = vector.load %arg8[%c256, %c0_1] : memref<288x96xbf16, #tpu.memory_space<vmem>>, vector<32x96xbf16>
    tpu.vector_store %arg8[%c256, %c0_1], %0 {strides = array<i32>} : memref<288x96xbf16, #tpu.memory_space<vmem>>, vector<32x96xbf16>,
    %3 = tpu.iota {dimensions = array<i32: 0>} : vector<256x1xi32>
    %c16_i32 = arith.constant 16 : i32
    %c0_i32 = arith.constant 0 : i32
    %4 = arith.cmpi eq, %c16_i32, %c0_i32 : i32
    %c1_i32 = arith.constant 1 : i32
    %5 = arith.select %4, %c1_i32, %c16_i32 : i32
    %6 = vector.broadcast %5 : i32 to vector<256x1xi32>
    %7 = arith.remsi %3, %6 : vector<256x1xi32>
    %c0_i32_2 = arith.constant 0 : i32
    %8 = vector.broadcast %c0_i32_2 : i32 to vector<256x1xi32>
    %9 = arith.cmpi ne, %7, %8 : vector<256x1xi32>
    %c0_i32_3 = arith.constant 0 : i32
    %10 = vector.broadcast %c0_i32_3 : i32 to vector<256x1xi32>
    %11 = arith.cmpi slt, %7, %10 : vector<256x1xi32>
    %c0_i32_4 = arith.constant 0 : i32
    %12 = arith.cmpi slt, %5, %c0_i32_4 : i32
    %13 = vector.broadcast %12 : i1 to vector<256x1xi1>
    %14 = vector.broadcast %13 : vector<256x1xi1> to vector<256x1xi1>
    %15 = arith.xori %11, %14 : vector<256x1xi1>
    %16 = arith.andi %15, %9 : vector<256x1xi1>
    %17 = vector.broadcast %5 : i32 to vector<256x1xi32>
    %18 = arith.addi %7, %17 : vector<256x1xi32>
    %19 = arith.select %16, %18, %7 : vector<256x1xi1>, vector<256x1xi32>
    %c0_i32_5 = arith.constant 0 : i32
    %20 = vector.broadcast %c0_i32_5 : i32 to vector<256x1xi32>
    %21 = arith.cmpi sgt, %19, %20 : vector<256x1xi32>
    %22 = arith.extui %21 : vector<256x1xi1> to vector<256x1xi32>
    %23 = arith.sitofp %22 : vector<256x1xi32> to vector<256x1xf32>
    %c15_i32 = arith.constant 15 : i32
    %24 = vector.broadcast %c15_i32 : i32 to vector<256x1xi32>
    %25 = arith.cmpi slt, %19, %24 : vector<256x1xi32>
    %26 = arith.extui %25 : vector<256x1xi1> to vector<256x1xi32>
    %27 = arith.sitofp %26 : vector<256x1xi32> to vector<256x1xf32>
    %c0_6 = arith.constant 0 : index
    %c0_7 = arith.constant 0 : index
    %c0_8 = arith.constant 0 : index
    %28 = vector.load %arg1[%c0_6, %c0_7, %c0_8] : memref<1x256x32xf32, #tpu.memory_space<vmem>>, vector<1x256x32xf32>
    %29 = vector.shape_cast %28 : vector<1x256x32xf32> to vector<256x32xf32>
    %c0_9 = arith.constant 0 : index
    %c0_10 = arith.constant 0 : index
    %30 = vector.load %arg2[%c0_9, %c0_10] : memref<32x32xf32, #tpu.memory_space<vmem>>, vector<32x32xf32>
    %cst_11 = arith.constant dense<0.000000e+00> : vector<256x32xf32>
    %31 = tpu.matmul %29, %30, %cst_11 {dimension_numbers = #tpu.dot_dimension_numbers<[1], [0], [0], [1], [0, 0, 1, 1], [], []>} : vector<256x32xf32>, vector<32x32xf32>, vector<256x32xf32> -> vector<256x32xf32>
    %c0_12 = arith.constant 0 : index
    %c0_13 = arith.constant 0 : index
    %32 = vector.load %arg3[%c0_12, %c0_13] : memref<1x32xf32, #tpu.memory_space<vmem>>, vector<1x32xf32>
    %33 = vector.broadcast %32 : vector<1x32xf32> to vector<256x32xf32>
    %34 = arith.addf %31, %33 : vector<256x32xf32>
    %c0_14 = arith.constant 0 : index
    %c0_15 = arith.constant 0 : index
    %35 = vector.load %arg5[%c0_14, %c0_15] : memref<1x32xf32, #tpu.memory_space<vmem>>, vector<1x32xf32>
    %36 = arith.truncf %34 : vector<256x32xf32> to vector<256x32xbf16>
    %c32 = arith.constant 32 : index
    %c0_16 = arith.constant 0 : index
    %37 = vector.load %arg8[%c32, %c0_16] : memref<288x96xbf16, #tpu.memory_space<vmem>>, vector<256x32xbf16>
    tpu.vector_store %arg8[%c32, %c0_16], %36 {strides = array<i32>} : memref<288x96xbf16, #tpu.memory_space<vmem>>, vector<256x32xbf16>,
    %c16 = arith.constant 16 : index
    %c32_17 = arith.constant 32 : index
    %38 = vector.load %arg8[%c16, %c32_17] : memref<288x96xbf16, #tpu.memory_space<vmem>>, vector<256x32xbf16>
    tpu.vector_store %arg8[%c16, %c32_17], %36 {strides = array<i32>} : memref<288x96xbf16, #tpu.memory_space<vmem>>, vector<256x32xbf16>,
    %c0_18 = arith.constant 0 : index
    %c64 = arith.constant 64 : index
    %39 = vector.load %arg8[%c0_18, %c64] : memref<288x96xbf16, #tpu.memory_space<vmem>>, vector<256x32xbf16>
    tpu.vector_store %arg8[%c0_18, %c64], %36 {strides = array<i32>} : memref<288x96xbf16, #tpu.memory_space<vmem>>, vector<256x32xbf16>,
    %c16_19 = arith.constant 16 : index
    %c0_20 = arith.constant 0 : index
    %40 = vector.load %arg8[%c16_19, %c0_20] : memref<288x96xbf16, #tpu.memory_space<vmem>>, vector<256x96xbf16>
    %c1 = arith.constant 1 : index
    %c0_21 = arith.constant 0 : index
    %c0_22 = arith.constant 0 : index
    %41 = vector.load %arg4[%c1, %c0_21, %c0_22] : memref<3x96x32xbf16, #tpu.memory_space<vmem>>, vector<1x96x32xbf16>
    %42 = vector.shape_cast %41 : vector<1x96x32xbf16> to vector<96x32xbf16>
    %cst_23 = arith.constant dense<0.000000e+00> : vector<256x32xf32>
    %43 = tpu.matmul %40, %42, %cst_23 {dimension_numbers = #tpu.dot_dimension_numbers<[1], [0], [0], [1], [0, 0, 1, 1], [], []>} : vector<256x96xbf16>, vector<96x32xbf16>, vector<256x32xf32> -> vector<256x32xf32>
    %c0_24 = arith.constant 0 : index
    %c0_25 = arith.constant 0 : index
    %c0_26 = arith.constant 0 : index
    %44 = vector.load %arg4[%c0_24, %c0_25, %c0_26] : memref<3x96x32xbf16, #tpu.memory_space<vmem>>, vector<1x96x32xbf16>
    %45 = vector.shape_cast %44 : vector<1x96x32xbf16> to vector<96x32xbf16>
    %cst_27 = arith.constant dense<0.000000e+00> : vector<256x32xf32>
    %46 = tpu.matmul %40, %45, %cst_27 {dimension_numbers = #tpu.dot_dimension_numbers<[1], [0], [0], [1], [0, 0, 1, 1], [], []>} : vector<256x96xbf16>, vector<96x32xbf16>, vector<256x32xf32> -> vector<256x32xf32>
    %c2 = arith.constant 2 : index
    %c0_28 = arith.constant 0 : index
    %c0_29 = arith.constant 0 : index
    %47 = vector.load %arg4[%c2, %c0_28, %c0_29] : memref<3x96x32xbf16, #tpu.memory_space<vmem>>, vector<1x96x32xbf16>
    %48 = vector.shape_cast %47 : vector<1x96x32xbf16> to vector<96x32xbf16>
    %cst_30 = arith.constant dense<0.000000e+00> : vector<256x32xf32>
    %49 = tpu.matmul %40, %48, %cst_30 {dimension_numbers = #tpu.dot_dimension_numbers<[1], [0], [0], [1], [0, 0, 1, 1], [], []>} : vector<256x96xbf16>, vector<96x32xbf16>, vector<256x32xf32> -> vector<256x32xf32>
    %50 = vector.broadcast %35 : vector<1x32xf32> to vector<256x32xf32>
    %51 = arith.addf %43, %50 : vector<256x32xf32>
    %c1_i32_31 = arith.constant 1 : i32
    %52 = tpu.dynamic_rotate %46 by %c1_i32_31 dim 0 : vector<256x32xf32>, i32 -> vector<256x32xf32>
    %53 = vector.broadcast %23 : vector<256x1xf32> to vector<256x32xf32>
    %54 = arith.mulf %53, %52 : vector<256x32xf32>
    %55 = arith.addf %51, %54 : vector<256x32xf32>
    %c255_i32 = arith.constant 255 : i32
    %56 = tpu.dynamic_rotate %49 by %c255_i32 dim 0 : vector<256x32xf32>, i32 -> vector<256x32xf32>
    %57 = vector.broadcast %27 : vector<256x1xf32> to vector<256x32xf32>
    %58 = arith.mulf %57, %56 : vector<256x32xf32>
    %59 = arith.addf %55, %58 : vector<256x32xf32>
    %cst_32 = arith.constant 0.000000e+00 : f32
    %60 = vector.broadcast %cst_32 : f32 to vector<256x32xf32>
    %61 = arith.maximumf %59, %60 : vector<256x32xf32>
    %62 = arith.truncf %61 : vector<256x32xf32> to vector<256x32xbf16>
    %c32_33 = arith.constant 32 : index
    %c0_34 = arith.constant 0 : index
    %63 = vector.load %arg8[%c32_33, %c0_34] : memref<288x96xbf16, #tpu.memory_space<vmem>>, vector<256x32xbf16>
    tpu.vector_store %arg8[%c32_33, %c0_34], %62 {strides = array<i32>} : memref<288x96xbf16, #tpu.memory_space<vmem>>, vector<256x32xbf16>,
    %c16_35 = arith.constant 16 : index
    %c32_36 = arith.constant 32 : index
    %64 = vector.load %arg8[%c16_35, %c32_36] : memref<288x96xbf16, #tpu.memory_space<vmem>>, vector<256x32xbf16>
    tpu.vector_store %arg8[%c16_35, %c32_36], %62 {strides = array<i32>} : memref<288x96xbf16, #tpu.memory_space<vmem>>, vector<256x32xbf16>,
    %c0_37 = arith.constant 0 : index
    %c64_38 = arith.constant 64 : index
    %65 = vector.load %arg8[%c0_37, %c64_38] : memref<288x96xbf16, #tpu.memory_space<vmem>>, vector<256x32xbf16>
    tpu.vector_store %arg8[%c0_37, %c64_38], %62 {strides = array<i32>} : memref<288x96xbf16, #tpu.memory_space<vmem>>, vector<256x32xbf16>,
    %c16_39 = arith.constant 16 : index
    %c0_40 = arith.constant 0 : index
    %66 = vector.load %arg8[%c16_39, %c0_40] : memref<288x96xbf16, #tpu.memory_space<vmem>>, vector<256x96xbf16>
    %c1_41 = arith.constant 1 : index
    %c0_42 = arith.constant 0 : index
    %c0_43 = arith.constant 0 : index
    %67 = vector.load %arg6[%c1_41, %c0_42, %c0_43] : memref<3x96x32xbf16, #tpu.memory_space<vmem>>, vector<1x96x32xbf16>
    %68 = vector.shape_cast %67 : vector<1x96x32xbf16> to vector<96x32xbf16>
    %cst_44 = arith.constant dense<0.000000e+00> : vector<256x32xf32>
    %69 = tpu.matmul %66, %68, %cst_44 {dimension_numbers = #tpu.dot_dimension_numbers<[1], [0], [0], [1], [0, 0, 1, 1], [], []>} : vector<256x96xbf16>, vector<96x32xbf16>, vector<256x32xf32> -> vector<256x32xf32>
    %c0_45 = arith.constant 0 : index
    %c0_46 = arith.constant 0 : index
    %c0_47 = arith.constant 0 : index
    %70 = vector.load %arg6[%c0_45, %c0_46, %c0_47] : memref<3x96x32xbf16, #tpu.memory_space<vmem>>, vector<1x96x32xbf16>
    %71 = vector.shape_cast %70 : vector<1x96x32xbf16> to vector<96x32xbf16>
    %cst_48 = arith.constant dense<0.000000e+00> : vector<256x32xf32>
    %72 = tpu.matmul %66, %71, %cst_48 {dimension_numbers = #tpu.dot_dimension_numbers<[1], [0], [0], [1], [0, 0, 1, 1], [], []>} : vector<256x96xbf16>, vector<96x32xbf16>, vector<256x32xf32> -> vector<256x32xf32>
    %c2_49 = arith.constant 2 : index
    %c0_50 = arith.constant 0 : index
    %c0_51 = arith.constant 0 : index
    %73 = vector.load %arg6[%c2_49, %c0_50, %c0_51] : memref<3x96x32xbf16, #tpu.memory_space<vmem>>, vector<1x96x32xbf16>
    %74 = vector.shape_cast %73 : vector<1x96x32xbf16> to vector<96x32xbf16>
    %cst_52 = arith.constant dense<0.000000e+00> : vector<256x32xf32>
    %75 = tpu.matmul %66, %74, %cst_52 {dimension_numbers = #tpu.dot_dimension_numbers<[1], [0], [0], [1], [0, 0, 1, 1], [], []>} : vector<256x96xbf16>, vector<96x32xbf16>, vector<256x32xf32> -> vector<256x32xf32>
    %c1_i32_53 = arith.constant 1 : i32
    %76 = tpu.dynamic_rotate %72 by %c1_i32_53 dim 0 : vector<256x32xf32>, i32 -> vector<256x32xf32>
    %77 = vector.broadcast %23 : vector<256x1xf32> to vector<256x32xf32>
    %78 = arith.mulf %77, %76 : vector<256x32xf32>
    %79 = arith.addf %69, %78 : vector<256x32xf32>
    %c255_i32_54 = arith.constant 255 : i32
    %80 = tpu.dynamic_rotate %75 by %c255_i32_54 dim 0 : vector<256x32xf32>, i32 -> vector<256x32xf32>
    %81 = vector.broadcast %27 : vector<256x1xf32> to vector<256x32xf32>
    %82 = arith.mulf %81, %80 : vector<256x32xf32>
    %83 = arith.addf %79, %82 : vector<256x32xf32>
    %84 = arith.addf %34, %83 : vector<256x32xf32>
    %cst_55 = arith.constant 0.000000e+00 : f32
    %85 = vector.broadcast %cst_55 : f32 to vector<256x32xf32>
    %86 = arith.maximumf %84, %85 : vector<256x32xf32>
    %c0_56 = arith.constant 0 : index
    %c0_57 = arith.constant 0 : index
    %c0_58 = arith.constant 0 : index
    %87 = vector.load %arg7[%c0_56, %c0_57, %c0_58] : memref<1x256x32xf32, #tpu.memory_space<vmem>>, vector<1x256x32xf32>
    %88 = vector.shape_cast %87 : vector<1x256x32xf32> to vector<256x32xf32>
    %89 = vector.shape_cast %86 : vector<256x32xf32> to vector<1x256x32xf32>
    tpu.vector_store %arg7[%c0_56, %c0_57, %c0_58], %89 {strides = array<i32>} : memref<1x256x32xf32, #tpu.memory_space<vmem>>, vector<1x256x32xf32>,
    return
  }
  func.func @transform_0(%arg0: i32) -> (i32, i32, i32) {
    %c0_i32 = arith.constant 0 : i32
    %c0_i32_0 = arith.constant 0 : i32
    %c0_i32_1 = arith.constant 0 : i32
    return %arg0, %c0_i32, %c0_i32_0 : i32, i32, i32
  }
  func.func @transform_1(%arg0: i32) -> (i32, i32) {
    %c0_i32 = arith.constant 0 : i32
    %c0_i32_0 = arith.constant 0 : i32
    %c0_i32_1 = arith.constant 0 : i32
    return %c0_i32, %c0_i32_0 : i32, i32
  }
  func.func @transform_2(%arg0: i32) -> (i32, i32) {
    %c0_i32 = arith.constant 0 : i32
    %c0_i32_0 = arith.constant 0 : i32
    %c0_i32_1 = arith.constant 0 : i32
    return %c0_i32, %c0_i32_0 : i32, i32
  }
  func.func @transform_3(%arg0: i32) -> (i32, i32, i32) {
    %c0_i32 = arith.constant 0 : i32
    %c0_i32_0 = arith.constant 0 : i32
    %c0_i32_1 = arith.constant 0 : i32
    %c0_i32_2 = arith.constant 0 : i32
    return %c0_i32, %c0_i32_0, %c0_i32_1 : i32, i32, i32
  }
  func.func @transform_4(%arg0: i32) -> (i32, i32) {
    %c0_i32 = arith.constant 0 : i32
    %c0_i32_0 = arith.constant 0 : i32
    %c0_i32_1 = arith.constant 0 : i32
    return %c0_i32, %c0_i32_0 : i32, i32
  }
  func.func @transform_5(%arg0: i32) -> (i32, i32, i32) {
    %c0_i32 = arith.constant 0 : i32
    %c0_i32_0 = arith.constant 0 : i32
    %c0_i32_1 = arith.constant 0 : i32
    %c0_i32_2 = arith.constant 0 : i32
    return %c0_i32, %c0_i32_0, %c0_i32_1 : i32, i32, i32
  }
  func.func @transform_6(%arg0: i32) -> (i32, i32, i32) {
    %c0_i32 = arith.constant 0 : i32
    %c0_i32_0 = arith.constant 0 : i32
    %c0_i32_1 = arith.constant 0 : i32
    return %arg0, %c0_i32, %c0_i32_0 : i32, i32, i32
  }
}

</mosaic_0001>

<llo_original>
// kernel: tpu_custom_call.1
$region0: #{tpu_custom_call.1}
  #allocation0 [shape = 'u32[]', space=smem, size = 0x4, offset = 0x4, fixed_abs, tag = 'smem constant byte address 0x4 - core index']
  #allocation1 [shape = 'u32[144,128]{1,0:T(1,128)}', space=vmem, size = 0x12000, scoped, tag = 'internal scratch']
  #allocation2 [shape = 'bf16[288,96]{1,0:T(8,128)(2,1)}', space=vmem, size = 0x12000, scoped, tag = 'scratch operand']
  %s0 = inlined_call_operand.vmem [shape: f32[2,256,32], index: 0, kind: input, shape index: {}]
  %s1 = inlined_call_operand.vmem [shape: f32[32,32], index: 1, kind: input, shape index: {}]
  %s2 = inlined_call_operand.vmem [shape: f32[1,32], index: 2, kind: input, shape index: {}]
  %s3 = inlined_call_operand.vmem [shape: bf16[3,96,32], index: 3, kind: input, shape index: {}]
  %s4 = inlined_call_operand.vmem [shape: f32[1,32], index: 4, kind: input, shape index: {}]
  %s5 = inlined_call_operand.vmem [shape: bf16[3,96,32], index: 5, kind: input, shape index: {}]
  %s6 = inlined_call_operand.vmem [shape: f32[2,256,32], index: 6, kind: output, shape index: {}]
  %s7 = sld [smem:[#allocation0]]
  $region57: #{tpu_custom_call.1} parent=0
    _
  %s9 = ssub.s32 1, %s7
  %s10 = scalar_select 0, %s9, %s7
  loop: start=0, step=1, limit=4
  $region2: #{tpu_custom_call.1} parent=0 // loop_pre_header
    _
  $region3: #{tpu_custom_call.1} parent=0 // loop_header
    %s12 = sphi 0, %s16
    %p13 = scmp.ge.s32.totalorder %s12, 4
    %s22 = sphi 0, %s24
    %s25 = sphi 0, %s22
    %s26 = sphi 0, %s25
    %s42 = sphi 0, %s26
    %s46 = sphi 0, %s46
    %s48 = sphi 0, %s46
    %s49 = sphi 0, %s48
    %s63 = sphi 0, %s49
    %s67 = sphi 0, %s67
    %s69 = sphi 0, %s67
    %s70 = sphi 0, %s69
    %s84 = sphi 0, %s70
    %s88 = sphi 0, %s88
    %s90 = sphi 0, %s88
    %s91 = sphi 0, %s90
    %s105 = sphi 0, %s91
    %s109 = sphi 0, %s109
    %s111 = sphi 0, %s109
    %s112 = sphi 0, %s111
    %s126 = sphi 0, %s112
    %s130 = sphi 0, %s130
    %s132 = sphi 0, %s130
    %s133 = sphi 0, %s132
    %s147 = sphi 0, %s133
    %s153 = sphi 0, %s155
    %s156 = sphi 0, %s153
    %s157 = sphi 0, %s156
    %s173 = sphi 0, %s157
  $region4: #{tpu_custom_call.1} parent=0 // loop_header_branch
    %15 = sbr.rel (%p13) target = $region8
  $region5: #{tpu_custom_call.1} parent=0 // loop_body
    %s17 = ssub.s32 %s12, 1
    %s18 = ssub.s32 %s12, 2
    %s19 = sadd.s32 %s12, 1
    %s20 = ssub.s32 %s12, %s19
    %p21 = scmp.eq.s32.totalorder %s20, 0
    %s23 = sadd.s32 %s22, 1
    %s24 = scalar_select %p21, %s22, %s23
    %p27 = pneg %p21
    %p28 = scmp.eq.s32.totalorder %s12, 1
    %p29 = por %p27, %p28
    %p30 = scmp.ne.s32.totalorder %s22, %s25
    %p31 = scmp.eq.s32.totalorder %s12, 0
    %p32 = por %p30, %p31
    %p33 = scmp.ne.s32.totalorder %s22, %s25
    %p34 = scmp.eq.s32.totalorder %s17, 1
    %p35 = por %p33, %p34
    %p36 = scmp.ne.s32.totalorder %s25, %s26
    %p37 = scmp.eq.s32.totalorder %s17, 0
    %p38 = por %p36, %p37
    %p39 = scmp.ne.s32.totalorder %s25, %s26
    %p40 = scmp.eq.s32.totalorder %s18, 1
    %p41 = por %p39, %p40
    %p43 = scmp.ne.s32.totalorder %s26, %s42
    %p44 = scmp.eq.s32.totalorder %s18, 0
    %p45 = por %p43, %p44
    %s47 = sadd.s32 %s46, 1
    %p50 = scmp.eq.s32.totalorder %s12, 1
    %p51 = scmp.ne.s32.totalorder %s46, %s48
    %p52 = scmp.eq.s32.totalorder %s12, 0
    %p53 = por %p51, %p52
    %p54 = scmp.ne.s32.totalorder %s46, %s48
    %p55 = scmp.eq.s32.totalorder %s17, 1
    %p56 = por %p54, %p55
    %p57 = scmp.ne.s32.totalorder %s48, %s49
    %p58 = scmp.eq.s32.totalorder %s17, 0
    %p59 = por %p57, %p58
    %p60 = scmp.ne.s32.totalorder %s48, %s49
    %p61 = scmp.eq.s32.totalorder %s18, 1
    %p62 = por %p60, %p61
    %p64 = scmp.ne.s32.totalorder %s49, %s63
    %p65 = scmp.eq.s32.totalorder %s18, 0
    %p66 = por %p64, %p65
    %s68 = sadd.s32 %s67, 1
    %p71 = scmp.eq.s32.totalorder %s12, 1
    %p72 = scmp.ne.s32.totalorder %s67, %s69
    %p73 = scmp.eq.s32.totalorder %s12, 0
    %p74 = por %p72, %p73
    %p75 = scmp.ne.s32.totalorder %s67, %s69
    %p76 = scmp.eq.s32.totalorder %s17, 1
    %p77 = por %p75, %p76
    %p78 = scmp.ne.s32.totalorder %s69, %s70
    %p79 = scmp.eq.s32.totalorder %s17, 0
    %p80 = por %p78, %p79
    %p81 = scmp.ne.s32.totalorder %s69, %s70
    %p82 = scmp.eq.s32.totalorder %s18, 1
    %p83 = por %p81, %p82
    %p85 = scmp.ne.s32.totalorder %s70, %s84
    %p86 = scmp.eq.s32.totalorder %s18, 0
    %p87 = por %p85, %p86
    %s89 = sadd.s32 %s88, 1
    %p92 = scmp.eq.s32.totalorder %s12, 1
    %p93 = scmp.ne.s32.totalorder %s88, %s90
    %p94 = scmp.eq.s32.totalorder %s12, 0
    %p95 = por %p93, %p94
    %p96 = scmp.ne.s32.totalorder %s88, %s90
    %p97 = scmp.eq.s32.totalorder %s17, 1
    %p98 = por %p96, %p97
    %p99 = scmp.ne.s32.totalorder %s90, %s91
    %p100 = scmp.eq.s32.totalorder %s17, 0
    %p101 = por %p99, %p100
    %p102 = scmp.ne.s32.totalorder %s90, %s91
    %p103 = scmp.eq.s32.totalorder %s18, 1
    %p104 = por %p102, %p103
    %p106 = scmp.ne.s32.totalorder %s91, %s105
    %p107 = scmp.eq.s32.totalorder %s18, 0
    %p108 = por %p106, %p107
    %s110 = sadd.s32 %s109, 1
    %p113 = scmp.eq.s32.totalorder %s12, 1
    %p114 = scmp.ne.s32.totalorder %s109, %s111
    %p115 = scmp.eq.s32.totalorder %s12, 0
    %p116 = por %p114, %p115
    %p117 = scmp.ne.s32.totalorder %s109, %s111
    %p118 = scmp.eq.s32.totalorder %s17, 1
    %p119 = por %p117, %p118
    %p120 = scmp.ne.s32.totalorder %s111, %s112
    %p121 = scmp.eq.s32.totalorder %s17, 0
    %p122 = por %p120, %p121
    %p123 = scmp.ne.s32.totalorder %s111, %s112
    %p124 = scmp.eq.s32.totalorder %s18, 1
    %p125 = por %p123, %p124
    %p127 = scmp.ne.s32.totalorder %s112, %s126
    %p128 = scmp.eq.s32.totalorder %s18, 0
    %p129 = por %p127, %p128
    %s131 = sadd.s32 %s130, 1
    %p134 = scmp.eq.s32.totalorder %s12, 1
    %p135 = scmp.ne.s32.totalorder %s130, %s132
    %p136 = scmp.eq.s32.totalorder %s12, 0
    %p137 = por %p135, %p136
    %p138 = scmp.ne.s32.totalorder %s130, %s132
    %p139 = scmp.eq.s32.totalorder %s17, 1
    %p140 = por %p138, %p139
    %p141 = scmp.ne.s32.totalorder %s132, %s133
    %p142 = scmp.eq.s32.totalorder %s17, 0
    %p143 = por %p141, %p142
    %p144 = scmp.ne.s32.totalorder %s132, %s133
    %p145 = scmp.eq.s32.totalorder %s18, 1
    %p146 = por %p144, %p145
    %p148 = scmp.ne.s32.totalorder %s133, %s147
    %p149 = scmp.eq.s32.totalorder %s18, 0
    %p150 = por %p148, %p149
    %s151 = ssub.s32 %s12, %s19
    %p152 = scmp.eq.s32.totalorder %s151, 0
    %s154 = sadd.s32 %s153, 1
    %s155 = scalar_select %p152, %s153, %s154
    %p158 = pneg %p152
    %p159 = scmp.eq.s32.totalorder %s12, 1
    %p160 = por %p158, %p159
    %p161 = scmp.ne.s32.totalorder %s153, %s156
    %p162 = scmp.eq.s32.totalorder %s12, 0
    %p163 = por %p161, %p162
    %p164 = scmp.ne.s32.totalorder %s153, %s156
    %p165 = scmp.eq.s32.totalorder %s17, 1
    %p166 = por %p164, %p165
    %p167 = scmp.ne.s32.totalorder %s156, %s157
    %p168 = scmp.eq.s32.totalorder %s17, 0
    %p169 = por %p167, %p168
    %p170 = scmp.ne.s32.totalorder %s156, %s157
    %p171 = scmp.eq.s32.totalorder %s18, 1
    %p172 = por %p170, %p171
    %p174 = scmp.ne.s32.totalorder %s157, %s173
    %p175 = scmp.eq.s32.totalorder %s18, 0
    %p176 = por %p174, %p175
    %p177 = scmp.le.s32.totalorder 1, %s12
    %p178 = scmp.lt.s32.totalorder %s12, 3
    %p179 = pnand %p177, %p178
    %p180 = pneg %p179
    // Predicated region
    $region9: #{tpu_custom_call.1} parent=5 // pred_check
      _
    $region10: #{tpu_custom_call.1} parent=5 // pred_check_branch
      %182 = sbr.rel (%p179) target = $region12
    $region11: #{tpu_custom_call.1} parent=5 // pred_region
      %s183 = ssub.s32 %s12, 1
      // Predicated region
      $region13: #{tpu_custom_call.1} parent=11 // pred_check
        %p184 = pneg %p59
      $region14: #{tpu_custom_call.1} parent=11 // pred_check_branch
        %186 = sbr.rel (%p184) target = $region16
      $region15: #{tpu_custom_call.1} parent=11 // pred_region
        _
      $region16: #{tpu_custom_call.1} parent=11 // pred_fallthru
        _
      // Predicated region
      $region17: #{tpu_custom_call.1} parent=11 // pred_check
        %p187 = pneg %p80
      $region18: #{tpu_custom_call.1} parent=11 // pred_check_branch
        %189 = sbr.rel (%p187) target = $region20
      $region19: #{tpu_custom_call.1} parent=11 // pred_region
        _
      $region20: #{tpu_custom_call.1} parent=11 // pred_fallthru
        _
      // Predicated region
      $region21: #{tpu_custom_call.1} parent=11 // pred_check
        %p190 = pneg %p101
      $region22: #{tpu_custom_call.1} parent=11 // pred_check_branch
        %192 = sbr.rel (%p190) target = $region24
      $region23: #{tpu_custom_call.1} parent=11 // pred_region
        _
      $region24: #{tpu_custom_call.1} parent=11 // pred_fallthru
        _
      // Predicated region
      $region25: #{tpu_custom_call.1} parent=11 // pred_check
        %p193 = pneg %p122
      $region26: #{tpu_custom_call.1} parent=11 // pred_check_branch
        %195 = sbr.rel (%p193) target = $region28
      $region27: #{tpu_custom_call.1} parent=11 // pred_region
        _
      $region28: #{tpu_custom_call.1} parent=11 // pred_fallthru
        _
      // Predicated region
      $region29: #{tpu_custom_call.1} parent=11 // pred_check
        %p196 = pneg %p143
      $region30: #{tpu_custom_call.1} parent=11 // pred_check_branch
        %198 = sbr.rel (%p196) target = $region32
      $region31: #{tpu_custom_call.1} parent=11 // pred_region
        _
      $region32: #{tpu_custom_call.1} parent=11 // pred_fallthru
        _
    $region12: #{tpu_custom_call.1} parent=5 // pred_fallthru
      _
    %p199 = scmp.lt.s32.totalorder %s12, 2
    // Predicated region
    $region33: #{tpu_custom_call.1} parent=5 // pred_check
      %p200 = pneg %p199
    $region34: #{tpu_custom_call.1} parent=5 // pred_check_branch
      %202 = sbr.rel (%p200) target = $region36
    $region35: #{tpu_custom_call.1} parent=5 // pred_region
      // Predicated region
      $region37: #{tpu_custom_call.1} parent=35 // pred_check
        %p203 = pneg %p32
      $region38: #{tpu_custom_call.1} parent=35 // pred_check_branch
        %205 = sbr.rel (%p203) target = $region40
      $region39: #{tpu_custom_call.1} parent=35 // pred_region
        %p206 = scmp.lt.s32.totalorder %s12, 1
        %s207 = scalar_select %p206, %s12, 1
        %s208 = smul.addr %s207, 32
        %s209 = smul.addr %s208, 8
        %s210 = scalar_lea.vmem %s0, %s209
      $region40: #{tpu_custom_call.1} parent=35 // pred_fallthru
        _
    $region36: #{tpu_custom_call.1} parent=5 // pred_fallthru
      _
    %p211 = scmp.le.s32.totalorder 1, %s12
    %p212 = scmp.lt.s32.totalorder %s12, 3
    %p213 = pnand %p211, %p212
    %p214 = pneg %p213
    // Predicated region
    $region41: #{tpu_custom_call.1} parent=5 // pred_check
      _
    $region42: #{tpu_custom_call.1} parent=5 // pred_check_branch
      %216 = sbr.rel (%p213) target = $region44
    $region43: #{tpu_custom_call.1} parent=5 // pred_region
      %s217 = ssub.s32 %s12, 1
      %p218 = scmp.lt.s32.totalorder %s17, 1
      %s219 = scalar_select %p218, %s17, 1
      %s220 = smul.addr %s219, 32
      %s221 = smul.addr %s220, 8
      %s222 = scalar_lea.vmem %s0, %s221
      %p223 = pneg %p38
      %p224 = pneg %p35
      %p225 = pneg %p59
      %p226 = pneg %p56
      %p227 = pneg %p80
      %p228 = pneg %p77
      %p229 = pneg %p101
      %p230 = pneg %p98
      %p231 = pneg %p122
      %p232 = pneg %p119
      %p233 = pneg %p143
      %p234 = pneg %p140
      %p235 = pneg %p169
      %p236 = pneg %p166
      %p237 = scmp.lt.s32.totalorder %s17, 1
      %s238 = scalar_select %p237, %s17, 1
      %s239 = smul.addr %s238, 32
      %s240 = smul.addr %s239, 8
      %s241 = scalar_lea.vmem %s6, %s240
      %p242 = scmp.lt.s32.totalorder %s17, 1
      %s243 = scalar_select %p242, %s17, 1
      %s244 = smul.addr %s243, 32
      %s245 = smul.addr %s244, 8
      %s246 = scalar_lea.vmem %s0, %s245
      %p247 = scmp.lt.s32.totalorder %s17, 1
      %s248 = scalar_select %p247, %s17, 1
      %s249 = smul.addr %s248, 32
      %s250 = smul.addr %s249, 8
      %s251 = scalar_lea.vmem %s6, %s250
      %vm253 = vcmask 781312
      %254 = vst.msk [vmem:[#allocation2] sm:$0xf] %vm253, 0
      %255 = vst.msk [vmem:[#allocation2 + $0x4] sm:$0xf] %vm253, 0
      %256 = vst.msk [vmem:[#allocation2 + $0x8] sm:$0xf] %vm253, 0
      %257 = vst.msk [vmem:[#allocation2 + $0xc] sm:$0xf] %vm253, 0
      %258 = vst.msk [vmem:[#allocation2 + $0x80] sm:$0xf] %vm253, 0
      %259 = vst.msk [vmem:[#allocation2 + $0x84] sm:$0xf] %vm253, 0
      %260 = vst.msk [vmem:[#allocation2 + $0x88] sm:$0xf] %vm253, 0
      %261 = vst.msk [vmem:[#allocation2 + $0x8c] sm:$0xf] %vm253, 0
      %v262 = vlaneseq
      %v263 = vshrl.u32 %v262, 7
      %v264 = vadd.s32 %v263, 8
      %v265 = vadd.s32 %v263, 16
      %v266 = vadd.s32 %v263, 24
      %v267 = vadd.s32 %v263, 32
      %v268 = vadd.s32 %v263, 40
      %v269 = vadd.s32 %v263, 48
      %v270 = vadd.s32 %v263, 56
      %v271 = vadd.s32 %v263, 64
      %v272 = vadd.s32 %v263, 72
      %v273 = vadd.s32 %v263, 80
      %v274 = vadd.s32 %v263, 88
      %v275 = vadd.s32 %v263, 96
      %v276 = vadd.s32 %v263, 104
      %v277 = vadd.s32 %v263, 112
      %v278 = vadd.s32 %v263, 120
      %v279 = vadd.s32 %v263, 128
      %v280 = vadd.s32 %v263, 136
      %v281 = vadd.s32 %v263, 144
      %v282 = vadd.s32 %v263, 152
      %v283 = vadd.s32 %v263, 160
      %v284 = vadd.s32 %v263, 168
      %v285 = vadd.s32 %v263, 176
      %v286 = vadd.s32 %v263, 184
      %v287 = vadd.s32 %v263, 192
      %v288 = vadd.s32 %v263, 200
      %v289 = vadd.s32 %v263, 208
      %v290 = vadd.s32 %v263, 216
      %v291 = vadd.s32 %v263, 224
      %v292 = vadd.s32 %v263, 232
      %v293 = vadd.s32 %v263, 240
      %v294 = vadd.s32 %v263, 248
      %vm295 = vcmp.lt.s32.totalorder %v263, 0
      %v296 = vsub.s32 0, %v263
      %v297 = vsel %vm295, %v296, %v263
      %v298 = vshrl.u32 %v297, 4
      %v299 = vand.u32 %v297, 15
      %v300 = vsub.s32 0, %v299
      %v301 = vsel %vm295, %v300, %v299
      %vm302 = vcmp.lt.s32.totalorder %v264, 0
      %v303 = vsub.s32 0, %v264
      %v304 = vsel %vm302, %v303, %v264
      %v305 = vshrl.u32 %v304, 4
      %v306 = vand.u32 %v304, 15
      %v307 = vsub.s32 0, %v306
      %v308 = vsel %vm302, %v307, %v306
      %vm309 = vcmp.lt.s32.totalorder %v265, 0
      %v310 = vsub.s32 0, %v265
      %v311 = vsel %vm309, %v310, %v265
      %v312 = vshrl.u32 %v311, 4
      %v313 = vand.u32 %v311, 15
      %v314 = vsub.s32 0, %v313
      %v315 = vsel %vm309, %v314, %v313
      %vm316 = vcmp.lt.s32.totalorder %v266, 0
      %v317 = vsub.s32 0, %v266
      %v318 = vsel %vm316, %v317, %v266
      %v319 = vshrl.u32 %v318, 4
      %v320 = vand.u32 %v318, 15
      %v321 = vsub.s32 0, %v320
      %v322 = vsel %vm316, %v321, %v320
      %vm323 = vcmp.lt.s32.totalorder %v267, 0
      %v324 = vsub.s32 0, %v267
      %v325 = vsel %vm323, %v324, %v267
      %v326 = vshrl.u32 %v325, 4
      %v327 = vand.u32 %v325, 15
      %v328 = vsub.s32 0, %v327
      %v329 = vsel %vm323, %v328, %v327
      %vm330 = vcmp.lt.s32.totalorder %v268, 0
      %v331 = vsub.s32 0, %v268
      %v332 = vsel %vm330, %v331, %v268
      %v333 = vshrl.u32 %v332, 4
      %v334 = vand.u32 %v332, 15
      %v335 = vsub.s32 0, %v334
      %v336 = vsel %vm330, %v335, %v334
      %vm337 = vcmp.lt.s32.totalorder %v269, 0
      %v338 = vsub.s32 0, %v269
      %v339 = vsel %vm337, %v338, %v269
      %v340 = vshrl.u32 %v339, 4
      %v341 = vand.u32 %v339, 15
      %v342 = vsub.s32 0, %v341
      %v343 = vsel %vm337, %v342, %v341
      %vm344 = vcmp.lt.s32.totalorder %v270, 0
      %v345 = vsub.s32 0, %v270
      %v346 = vsel %vm344, %v345, %v270
      %v347 = vshrl.u32 %v346, 4
      %v348 = vand.u32 %v346, 15
      %v349 = vsub.s32 0, %v348
      %v350 = vsel %vm344, %v349, %v348
      %vm351 = vcmp.lt.s32.totalorder %v271, 0
      %v352 = vsub.s32 0, %v271
      %v353 = vsel %vm351, %v352, %v271
      %v354 = vshrl.u32 %v353, 4
      %v355 = vand.u32 %v353, 15
      %v356 = vsub.s32 0, %v355
      %v357 = vsel %vm351, %v356, %v355
      %vm358 = vcmp.lt.s32.totalorder %v272, 0
      %v359 = vsub.s32 0, %v272
      %v360 = vsel %vm358, %v359, %v272
      %v361 = vshrl.u32 %v360, 4
      %v362 = vand.u32 %v360, 15
      %v363 = vsub.s32 0, %v362
      %v364 = vsel %vm358, %v363, %v362
      %vm365 = vcmp.lt.s32.totalorder %v273, 0
      %v366 = vsub.s32 0, %v273
      %v367 = vsel %vm365, %v366, %v273
      %v368 = vshrl.u32 %v367, 4
      %v369 = vand.u32 %v367, 15
      %v370 = vsub.s32 0, %v369
      %v371 = vsel %vm365, %v370, %v369
      %vm372 = vcmp.lt.s32.totalorder %v274, 0
      %v373 = vsub.s32 0, %v274
      %v374 = vsel %vm372, %v373, %v274
      %v375 = vshrl.u32 %v374, 4
      %v376 = vand.u32 %v374, 15
      %v377 = vsub.s32 0, %v376
      %v378 = vsel %vm372, %v377, %v376
      %vm379 = vcmp.lt.s32.totalorder %v275, 0
      %v380 = vsub.s32 0, %v275
      %v381 = vsel %vm379, %v380, %v275
      %v382 = vshrl.u32 %v381, 4
      %v383 = vand.u32 %v381, 15
      %v384 = vsub.s32 0, %v383
      %v385 = vsel %vm379, %v384, %v383
      %vm386 = vcmp.lt.s32.totalorder %v276, 0
      %v387 = vsub.s32 0, %v276
      %v388 = vsel %vm386, %v387, %v276
      %v389 = vshrl.u32 %v388, 4
      %v390 = vand.u32 %v388, 15
      %v391 = vsub.s32 0, %v390
      %v392 = vsel %vm386, %v391, %v390
      %vm393 = vcmp.lt.s32.totalorder %v277, 0
      %v394 = vsub.s32 0, %v277
      %v395 = vsel %vm393, %v394, %v277
      %v396 = vshrl.u32 %v395, 4
      %v397 = vand.u32 %v395, 15
      %v398 = vsub.s32 0, %v397
      %v399 = vsel %vm393, %v398, %v397
      %vm400 = vcmp.lt.s32.totalorder %v278, 0
      %v401 = vsub.s32 0, %v278
      %v402 = vsel %vm400, %v401, %v278
      %v403 = vshrl.u32 %v402, 4
      %v404 = vand.u32 %v402, 15
      %v405 = vsub.s32 0, %v404
      %v406 = vsel %vm400, %v405, %v404
      %vm407 = vcmp.lt.s32.totalorder %v279, 0
      %v408 = vsub.s32 0, %v279
      %v409 = vsel %vm407, %v408, %v279
      %v410 = vshrl.u32 %v409, 4
      %v411 = vand.u32 %v409, 15
      %v412 = vsub.s32 0, %v411
      %v413 = vsel %vm407, %v412, %v411
      %vm414 = vcmp.lt.s32.totalorder %v280, 0
      %v415 = vsub.s32 0, %v280
      %v416 = vsel %vm414, %v415, %v280
      %v417 = vshrl.u32 %v416, 4
      %v418 = vand.u32 %v416, 15
      %v419 = vsub.s32 0, %v418
      %v420 = vsel %vm414, %v419, %v418
      %vm421 = vcmp.lt.s32.totalorder %v281, 0
      %v422 = vsub.s32 0, %v281
      %v423 = vsel %vm421, %v422, %v281
      %v424 = vshrl.u32 %v423, 4
      %v425 = vand.u32 %v423, 15
      %v426 = vsub.s32 0, %v425
      %v427 = vsel %vm421, %v426, %v425
      %vm428 = vcmp.lt.s32.totalorder %v282, 0
      %v429 = vsub.s32 0, %v282
      %v430 = vsel %vm428, %v429, %v282
      %v431 = vshrl.u32 %v430, 4
      %v432 = vand.u32 %v430, 15
      %v433 = vsub.s32 0, %v432
      %v434 = vsel %vm428, %v433, %v432
      %vm435 = vcmp.lt.s32.totalorder %v283, 0
      %v436 = vsub.s32 0, %v283
      %v437 = vsel %vm435, %v436, %v283
      %v438 = vshrl.u32 %v437, 4
      %v439 = vand.u32 %v437, 15
      %v440 = vsub.s32 0, %v439
      %v441 = vsel %vm435, %v440, %v439
      %vm442 = vcmp.lt.s32.totalorder %v284, 0
      %v443 = vsub.s32 0, %v284
      %v444 = vsel %vm442, %v443, %v284
      %v445 = vshrl.u32 %v444, 4
      %v446 = vand.u32 %v444, 15
      %v447 = vsub.s32 0, %v446
      %v448 = vsel %vm442, %v447, %v446
      %vm449 = vcmp.lt.s32.totalorder %v285, 0
      %v450 = vsub.s32 0, %v285
      %v451 = vsel %vm449, %v450, %v285
      %v452 = vshrl.u32 %v451, 4
      %v453 = vand.u32 %v451, 15
      %v454 = vsub.s32 0, %v453
      %v455 = vsel %vm449, %v454, %v453
      %vm456 = vcmp.lt.s32.totalorder %v286, 0
      %v457 = vsub.s32 0, %v286
      %v458 = vsel %vm456, %v457, %v286
      %v459 = vshrl.u32 %v458, 4
      %v460 = vand.u32 %v458, 15
      %v461 = vsub.s32 0, %v460
      %v462 = vsel %vm456, %v461, %v460
      %vm463 = vcmp.lt.s32.totalorder %v287, 0
      %v464 = vsub.s32 0, %v287
      %v465 = vsel %vm463, %v464, %v287
      %v466 = vshrl.u32 %v465, 4
      %v467 = vand.u32 %v465, 15
      %v468 = vsub.s32 0, %v467
      %v469 = vsel %vm463, %v468, %v467
      %vm470 = vcmp.lt.s32.totalorder %v288, 0
      %v471 = vsub.s32 0, %v288
      %v472 = vsel %vm470, %v471, %v288
      %v473 = vshrl.u32 %v472, 4
      %v474 = vand.u32 %v472, 15
      %v475 = vsub.s32 0, %v474
      %v476 = vsel %vm470, %v475, %v474
      %vm477 = vcmp.lt.s32.totalorder %v289, 0
      %v478 = vsub.s32 0, %v289
      %v479 = vsel %vm477, %v478, %v289
      %v480 = vshrl.u32 %v479, 4
      %v481 = vand.u32 %v479, 15
      %v482 = vsub.s32 0, %v481
      %v483 = vsel %vm477, %v482, %v481
      %vm484 = vcmp.lt.s32.totalorder %v290, 0
      %v485 = vsub.s32 0, %v290
      %v486 = vsel %vm484, %v485, %v290
      %v487 = vshrl.u32 %v486, 4
      %v488 = vand.u32 %v486, 15
      %v489 = vsub.s32 0, %v488
      %v490 = vsel %vm484, %v489, %v488
      %vm491 = vcmp.lt.s32.totalorder %v291, 0
      %v492 = vsub.s32 0, %v291
      %v493 = vsel %vm491, %v492, %v291
      %v494 = vshrl.u32 %v493, 4
      %v495 = vand.u32 %v493, 15
      %v496 = vsub.s32 0, %v495
      %v497 = vsel %vm491, %v496, %v495
      %vm498 = vcmp.lt.s32.totalorder %v292, 0
      %v499 = vsub.s32 0, %v292
      %v500 = vsel %vm498, %v499, %v292
      %v501 = vshrl.u32 %v500, 4
      %v502 = vand.u32 %v500, 15
      %v503 = vsub.s32 0, %v502
      %v504 = vsel %vm498, %v503, %v502
      %vm505 = vcmp.lt.s32.totalorder %v293, 0
      %v506 = vsub.s32 0, %v293
      %v507 = vsel %vm505, %v506, %v293
      %v508 = vshrl.u32 %v507, 4
      %v509 = vand.u32 %v507, 15
      %v510 = vsub.s32 0, %v509
      %v511 = vsel %vm505, %v510, %v509
      %vm512 = vcmp.lt.s32.totalorder %v294, 0
      %v513 = vsub.s32 0, %v294
      %v514 = vsel %vm512, %v513, %v294
      %v515 = vshrl.u32 %v514, 4
      %v516 = vand.u32 %v514, 15
      %v517 = vsub.s32 0, %v516
      %v518 = vsel %vm512, %v517, %v516
      %vm519 = vcmp.ne.s32.totalorder %v301, 0
      %vm520 = vcmp.ne.s32.totalorder %v308, 0
      %vm521 = vcmp.ne.s32.totalorder %v315, 0
      %vm522 = vcmp.ne.s32.totalorder %v322, 0
      %vm523 = vcmp.ne.s32.totalorder %v329, 0
      %vm524 = vcmp.ne.s32.totalorder %v336, 0
      %vm525 = vcmp.ne.s32.totalorder %v343, 0
      %vm526 = vcmp.ne.s32.totalorder %v350, 0
      %vm527 = vcmp.ne.s32.totalorder %v357, 0
      %vm528 = vcmp.ne.s32.totalorder %v364, 0
      %vm529 = vcmp.ne.s32.totalorder %v371, 0
      %vm530 = vcmp.ne.s32.totalorder %v378, 0
      %vm531 = vcmp.ne.s32.totalorder %v385, 0
      %vm532 = vcmp.ne.s32.totalorder %v392, 0
      %vm533 = vcmp.ne.s32.totalorder %v399, 0
      %vm534 = vcmp.ne.s32.totalorder %v406, 0
      %vm535 = vcmp.ne.s32.totalorder %v413, 0
      %vm536 = vcmp.ne.s32.totalorder %v420, 0
      %vm537 = vcmp.ne.s32.totalorder %v427, 0
      %vm538 = vcmp.ne.s32.totalorder %v434, 0
      %vm539 = vcmp.ne.s32.totalorder %v441, 0
      %vm540 = vcmp.ne.s32.totalorder %v448, 0
      %vm541 = vcmp.ne.s32.totalorder %v455, 0
      %vm542 = vcmp.ne.s32.totalorder %v462, 0
      %vm543 = vcmp.ne.s32.totalorder %v469, 0
      %vm544 = vcmp.ne.s32.totalorder %v476, 0
      %vm545 = vcmp.ne.s32.totalorder %v483, 0
      %vm546 = vcmp.ne.s32.totalorder %v490, 0
      %vm547 = vcmp.ne.s32.totalorder %v497, 0
      %vm548 = vcmp.ne.s32.totalorder %v504, 0
      %vm549 = vcmp.ne.s32.totalorder %v511, 0
      %vm550 = vcmp.ne.s32.totalorder %v518, 0
      %vm551 = vcmp.lt.s32.totalorder %v301, 0
      %vm552 = vcmp.lt.s32.totalorder %v308, 0
      %vm553 = vcmp.lt.s32.totalorder %v315, 0
      %vm554 = vcmp.lt.s32.totalorder %v322, 0
      %vm555 = vcmp.lt.s32.totalorder %v329, 0
      %vm556 = vcmp.lt.s32.totalorder %v336, 0
      %vm557 = vcmp.lt.s32.totalorder %v343, 0
      %vm558 = vcmp.lt.s32.totalorder %v350, 0
      %vm559 = vcmp.lt.s32.totalorder %v357, 0
      %vm560 = vcmp.lt.s32.totalorder %v364, 0
      %vm561 = vcmp.lt.s32.totalorder %v371, 0
      %vm562 = vcmp.lt.s32.totalorder %v378, 0
      %vm563 = vcmp.lt.s32.totalorder %v385, 0
      %vm564 = vcmp.lt.s32.totalorder %v392, 0
      %vm565 = vcmp.lt.s32.totalorder %v399, 0
      %vm566 = vcmp.lt.s32.totalorder %v406, 0
      %vm567 = vcmp.lt.s32.totalorder %v413, 0
      %vm568 = vcmp.lt.s32.totalorder %v420, 0
      %vm569 = vcmp.lt.s32.totalorder %v427, 0
      %vm570 = vcmp.lt.s32.totalorder %v434, 0
      %vm571 = vcmp.lt.s32.totalorder %v441, 0
      %vm572 = vcmp.lt.s32.totalorder %v448, 0
      %vm573 = vcmp.lt.s32.totalorder %v455, 0
      %vm574 = vcmp.lt.s32.totalorder %v462, 0
      %vm575 = vcmp.lt.s32.totalorder %v469, 0
      %vm576 = vcmp.lt.s32.totalorder %v476, 0
      %vm577 = vcmp.lt.s32.totalorder %v483, 0
      %vm578 = vcmp.lt.s32.totalorder %v490, 0
      %vm579 = vcmp.lt.s32.totalorder %v497, 0
      %vm580 = vcmp.lt.s32.totalorder %v504, 0
      %vm581 = vcmp.lt.s32.totalorder %v511, 0
      %vm582 = vcmp.lt.s32.totalorder %v518, 0
      %vm583 = vmand %vm551, %vm519
      %vm584 = vmand %vm552, %vm520
      %vm585 = vmand %vm553, %vm521
      %vm586 = vmand %vm554, %vm522
      %vm587 = vmand %vm555, %vm523
      %vm588 = vmand %vm556, %vm524
      %vm589 = vmand %vm557, %vm525
      %vm590 = vmand %vm558, %vm526
      %vm591 = vmand %vm559, %vm527
      %vm592 = vmand %vm560, %vm528
      %vm593 = vmand %vm561, %vm529
      %vm594 = vmand %vm562, %vm530
      %vm595 = vmand %vm563, %vm531
      %vm596 = vmand %vm564, %vm532
      %vm597 = vmand %vm565, %vm533
      %vm598 = vmand %vm566, %vm534
      %vm599 = vmand %vm567, %vm535
      %vm600 = vmand %vm568, %vm536
      %vm601 = vmand %vm569, %vm537
      %vm602 = vmand %vm570, %vm538
      %vm603 = vmand %vm571, %vm539
      %vm604 = vmand %vm572, %vm540
      %vm605 = vmand %vm573, %vm541
      %vm606 = vmand %vm574, %vm542
      %vm607 = vmand %vm575, %vm543
      %vm608 = vmand %vm576, %vm544
      %vm609 = vmand %vm577, %vm545
      %vm610 = vmand %vm578, %vm546
      %vm611 = vmand %vm579, %vm547
      %vm612 = vmand %vm580, %vm548
      %vm613 = vmand %vm581, %vm549
      %vm614 = vmand %vm582, %vm550
      %v615 = vadd.s32 %v301, 16
      %v616 = vadd.s32 %v308, 16
      %v617 = vadd.s32 %v315, 16
      %v618 = vadd.s32 %v322, 16
      %v619 = vadd.s32 %v329, 16
      %v620 = vadd.s32 %v336, 16
      %v621 = vadd.s32 %v343, 16
      %v622 = vadd.s32 %v350, 16
      %v623 = vadd.s32 %v357, 16
      %v624 = vadd.s32 %v364, 16
      %v625 = vadd.s32 %v371, 16
      %v626 = vadd.s32 %v378, 16
      %v627 = vadd.s32 %v385, 16
      %v628 = vadd.s32 %v392, 16
      %v629 = vadd.s32 %v399, 16
      %v630 = vadd.s32 %v406, 16
      %v631 = vadd.s32 %v413, 16
      %v632 = vadd.s32 %v420, 16
      %v633 = vadd.s32 %v427, 16
      %v634 = vadd.s32 %v434, 16
      %v635 = vadd.s32 %v441, 16
      %v636 = vadd.s32 %v448, 16
      %v637 = vadd.s32 %v455, 16
      %v638 = vadd.s32 %v462, 16
      %v639 = vadd.s32 %v469, 16
      %v640 = vadd.s32 %v476, 16
      %v641 = vadd.s32 %v483, 16
      %v642 = vadd.s32 %v490, 16
      %v643 = vadd.s32 %v497, 16
      %v644 = vadd.s32 %v504, 16
      %v645 = vadd.s32 %v511, 16
      %v646 = vadd.s32 %v518, 16
      %v647 = vsel %vm583, %v615, %v301
      %v648 = vsel %vm584, %v616, %v308
      %v649 = vsel %vm585, %v617, %v315
      %v650 = vsel %vm586, %v618, %v322
      %v651 = vsel %vm587, %v619, %v329
      %v652 = vsel %vm588, %v620, %v336
      %v653 = vsel %vm589, %v621, %v343
      %v654 = vsel %vm590, %v622, %v350
      %v655 = vsel %vm591, %v623, %v357
      %v656 = vsel %vm592, %v624, %v364
      %v657 = vsel %vm593, %v625, %v371
      %v658 = vsel %vm594, %v626, %v378
      %v659 = vsel %vm595, %v627, %v385
      %v660 = vsel %vm596, %v628, %v392
      %v661 = vsel %vm597, %v629, %v399
      %v662 = vsel %vm598, %v630, %v406
      %v663 = vsel %vm599, %v631, %v413
      %v664 = vsel %vm600, %v632, %v420
      %v665 = vsel %vm601, %v633, %v427
      %v666 = vsel %vm602, %v634, %v434
      %v667 = vsel %vm603, %v635, %v441
      %v668 = vsel %vm604, %v636, %v448
      %v669 = vsel %vm605, %v637, %v455
      %v670 = vsel %vm606, %v638, %v462
      %v671 = vsel %vm607, %v639, %v469
      %v672 = vsel %vm608, %v640, %v476
      %v673 = vsel %vm609, %v641, %v483
      %v674 = vsel %vm610, %v642, %v490
      %v675 = vsel %vm611, %v643, %v497
      %v676 = vsel %vm612, %v644, %v504
      %v677 = vsel %vm613, %v645, %v511
      %v678 = vsel %vm614, %v646, %v518
      %vm679 = vcmp.gt.s32.totalorder %v647, 0
      %vm680 = vcmp.gt.s32.totalorder %v648, 0
      %vm681 = vcmp.gt.s32.totalorder %v649, 0
      %vm682 = vcmp.gt.s32.totalorder %v650, 0
      %vm683 = vcmp.gt.s32.totalorder %v651, 0
      %vm684 = vcmp.gt.s32.totalorder %v652, 0
      %vm685 = vcmp.gt.s32.totalorder %v653, 0
      %vm686 = vcmp.gt.s32.totalorder %v654, 0
      %vm687 = vcmp.gt.s32.totalorder %v655, 0
      %vm688 = vcmp.gt.s32.totalorder %v656, 0
      %vm689 = vcmp.gt.s32.totalorder %v657, 0
      %vm690 = vcmp.gt.s32.totalorder %v658, 0
      %vm691 = vcmp.gt.s32.totalorder %v659, 0
      %vm692 = vcmp.gt.s32.totalorder %v660, 0
      %vm693 = vcmp.gt.s32.totalorder %v661, 0
      %vm694 = vcmp.gt.s32.totalorder %v662, 0
      %vm695 = vcmp.gt.s32.totalorder %v663, 0
      %vm696 = vcmp.gt.s32.totalorder %v664, 0
      %vm697 = vcmp.gt.s32.totalorder %v665, 0
      %vm698 = vcmp.gt.s32.totalorder %v666, 0
      %vm699 = vcmp.gt.s32.totalorder %v667, 0
      %vm700 = vcmp.gt.s32.totalorder %v668, 0
      %vm701 = vcmp.gt.s32.totalorder %v669, 0
      %vm702 = vcmp.gt.s32.totalorder %v670, 0
      %vm703 = vcmp.gt.s32.totalorder %v671, 0
      %vm704 = vcmp.gt.s32.totalorder %v672, 0
      %vm705 = vcmp.gt.s32.totalorder %v673, 0
      %vm706 = vcmp.gt.s32.totalorder %v674, 0
      %vm707 = vcmp.gt.s32.totalorder %v675, 0
      %vm708 = vcmp.gt.s32.totalorder %v676, 0
      %vm709 = vcmp.gt.s32.totalorder %v677, 0
      %vm710 = vcmp.gt.s32.totalorder %v678, 0
      %v711 = vsel %vm679, 1, 0
      %v712 = vsel %vm680, 1, 0
      %v713 = vsel %vm681, 1, 0
      %v714 = vsel %vm682, 1, 0
      %v715 = vsel %vm683, 1, 0
      %v716 = vsel %vm684, 1, 0
      %v717 = vsel %vm685, 1, 0
      %v718 = vsel %vm686, 1, 0
      %v719 = vsel %vm687, 1, 0
      %v720 = vsel %vm688, 1, 0
      %v721 = vsel %vm689, 1, 0
      %v722 = vsel %vm690, 1, 0
      %v723 = vsel %vm691, 1, 0
      %v724 = vsel %vm692, 1, 0
      %v725 = vsel %vm693, 1, 0
      %v726 = vsel %vm694, 1, 0
      %v727 = vsel %vm695, 1, 0
      %v728 = vsel %vm696, 1, 0
      %v729 = vsel %vm697, 1, 0
      %v730 = vsel %vm698, 1, 0
      %v731 = vsel %vm699, 1, 0
      %v732 = vsel %vm700, 1, 0
      %v733 = vsel %vm701, 1, 0
      %v734 = vsel %vm702, 1, 0
      %v735 = vsel %vm703, 1, 0
      %v736 = vsel %vm704, 1, 0
      %v737 = vsel %vm705, 1, 0
      %v738 = vsel %vm706, 1, 0
      %v739 = vsel %vm707, 1, 0
      %v740 = vsel %vm708, 1, 0
      %v741 = vsel %vm709, 1, 0
      %v742 = vsel %vm710, 1, 0
      %v743 = vcvt.s32.f32 %v711
      %v744 = vcvt.s32.f32 %v712
      %v745 = vcvt.s32.f32 %v713
      %v746 = vcvt.s32.f32 %v714
      %v747 = vcvt.s32.f32 %v715
      %v748 = vcvt.s32.f32 %v716
      %v749 = vcvt.s32.f32 %v717
      %v750 = vcvt.s32.f32 %v718
      %v751 = vcvt.s32.f32 %v719
      %v752 = vcvt.s32.f32 %v720
      %v753 = vcvt.s32.f32 %v721
      %v754 = vcvt.s32.f32 %v722
      %v755 = vcvt.s32.f32 %v723
      %v756 = vcvt.s32.f32 %v724
      %v757 = vcvt.s32.f32 %v725
      %v758 = vcvt.s32.f32 %v726
      %v759 = vcvt.s32.f32 %v727
      %v760 = vcvt.s32.f32 %v728
      %v761 = vcvt.s32.f32 %v729
      %v762 = vcvt.s32.f32 %v730
      %v763 = vcvt.s32.f32 %v731
      %v764 = vcvt.s32.f32 %v732
      %v765 = vcvt.s32.f32 %v733
      %v766 = vcvt.s32.f32 %v734
      %v767 = vcvt.s32.f32 %v735
      %v768 = vcvt.s32.f32 %v736
      %v769 = vcvt.s32.f32 %v737
      %v770 = vcvt.s32.f32 %v738
      %v771 = vcvt.s32.f32 %v739
      %v772 = vcvt.s32.f32 %v740
      %v773 = vcvt.s32.f32 %v741
      %v774 = vcvt.s32.f32 %v742
      %vm775 = vcmp.lt.s32.totalorder %v647, 15
      %vm776 = vcmp.lt.s32.totalorder %v648, 15
      %vm777 = vcmp.lt.s32.totalorder %v649, 15
      %vm778 = vcmp.lt.s32.totalorder %v650, 15
      %vm779 = vcmp.lt.s32.totalorder %v651, 15
      %vm780 = vcmp.lt.s32.totalorder %v652, 15
      %vm781 = vcmp.lt.s32.totalorder %v653, 15
      %vm782 = vcmp.lt.s32.totalorder %v654, 15
      %vm783 = vcmp.lt.s32.totalorder %v655, 15
      %vm784 = vcmp.lt.s32.totalorder %v656, 15
      %vm785 = vcmp.lt.s32.totalorder %v657, 15
      %vm786 = vcmp.lt.s32.totalorder %v658, 15
      %vm787 = vcmp.lt.s32.totalorder %v659, 15
      %vm788 = vcmp.lt.s32.totalorder %v660, 15
      %vm789 = vcmp.lt.s32.totalorder %v661, 15
      %vm790 = vcmp.lt.s32.totalorder %v662, 15
      %vm791 = vcmp.lt.s32.totalorder %v663, 15
      %vm792 = vcmp.lt.s32.totalorder %v664, 15
      %vm793 = vcmp.lt.s32.totalorder %v665, 15
      %vm794 = vcmp.lt.s32.totalorder %v666, 15
      %vm795 = vcmp.lt.s32.totalorder %v667, 15
      %vm796 = vcmp.lt.s32.totalorder %v668, 15
      %vm797 = vcmp.lt.s32.totalorder %v669, 15
      %vm798 = vcmp.lt.s32.totalorder %v670, 15
      %vm799 = vcmp.lt.s32.totalorder %v671, 15
      %vm800 = vcmp.lt.s32.totalorder %v672, 15
      %vm801 = vcmp.lt.s32.totalorder %v673, 15
      %vm802 = vcmp.lt.s32.totalorder %v674, 15
      %vm803 = vcmp.lt.s32.totalorder %v675, 15
      %vm804 = vcmp.lt.s32.totalorder %v676, 15
      %vm805 = vcmp.lt.s32.totalorder %v677, 15
      %vm806 = vcmp.lt.s32.totalorder %v678, 15
      %v807 = vsel %vm775, 1, 0
      %v808 = vsel %vm776, 1, 0
      %v809 = vsel %vm777, 1, 0
      %v810 = vsel %vm778, 1, 0
      %v811 = vsel %vm779, 1, 0
      %v812 = vsel %vm780, 1, 0
      %v813 = vsel %vm781, 1, 0
      %v814 = vsel %vm782, 1, 0
      %v815 = vsel %vm783, 1, 0
      %v816 = vsel %vm784, 1, 0
      %v817 = vsel %vm785, 1, 0
      %v818 = vsel %vm786, 1, 0
      %v819 = vsel %vm787, 1, 0
      %v820 = vsel %vm788, 1, 0
      %v821 = vsel %vm789, 1, 0
      %v822 = vsel %vm790, 1, 0
      %v823 = vsel %vm791, 1, 0
      %v824 = vsel %vm792, 1, 0
      %v825 = vsel %vm793, 1, 0
      %v826 = vsel %vm794, 1, 0
      %v827 = vsel %vm795, 1, 0
      %v828 = vsel %vm796, 1, 0
      %v829 = vsel %vm797, 1, 0
      %v830 = vsel %vm798, 1, 0
      %v831 = vsel %vm799, 1, 0
      %v832 = vsel %vm800, 1, 0
      %v833 = vsel %vm801, 1, 0
      %v834 = vsel %vm802, 1, 0
      %v835 = vsel %vm803, 1, 0
      %v836 = vsel %vm804, 1, 0
      %v837 = vsel %vm805, 1, 0
      %v838 = vsel %vm806, 1, 0
      %v839 = vcvt.s32.f32 %v807
      %v840 = vcvt.s32.f32 %v808
      %v841 = vcvt.s32.f32 %v809
      %v842 = vcvt.s32.f32 %v810
      %v843 = vcvt.s32.f32 %v811
      %v844 = vcvt.s32.f32 %v812
      %v845 = vcvt.s32.f32 %v813
      %v846 = vcvt.s32.f32 %v814
      %v847 = vcvt.s32.f32 %v815
      %v848 = vcvt.s32.f32 %v816
      %v849 = vcvt.s32.f32 %v817
      %v850 = vcvt.s32.f32 %v818
      %v851 = vcvt.s32.f32 %v819
      %v852 = vcvt.s32.f32 %v820
      %v853 = vcvt.s32.f32 %v821
      %v854 = vcvt.s32.f32 %v822
      %v855 = vcvt.s32.f32 %v823
      %v856 = vcvt.s32.f32 %v824
      %v857 = vcvt.s32.f32 %v825
      %v858 = vcvt.s32.f32 %v826
      %v859 = vcvt.s32.f32 %v827
      %v860 = vcvt.s32.f32 %v828
      %v861 = vcvt.s32.f32 %v829
      %v862 = vcvt.s32.f32 %v830
      %v863 = vcvt.s32.f32 %v831
      %v864 = vcvt.s32.f32 %v832
      %v865 = vcvt.s32.f32 %v833
      %v866 = vcvt.s32.f32 %v834
      %v867 = vcvt.s32.f32 %v835
      %v868 = vcvt.s32.f32 %v836
      %v869 = vcvt.s32.f32 %v837
      %v870 = vcvt.s32.f32 %v838
      %v871 = vld [vmem:[%s246] sm:$0xff]
      %v872 = vld [vmem:[%s246 + $0x8] sm:$0xff]
      %v873 = vld [vmem:[%s246 + $0x10] sm:$0xff]
      %v874 = vld [vmem:[%s246 + $0x18] sm:$0xff]
      %v875 = vld [vmem:[%s246 + $0x20] sm:$0xff]
      %v876 = vld [vmem:[%s246 + $0x28] sm:$0xff]
      %v877 = vld [vmem:[%s246 + $0x30] sm:$0xff]
      %v878 = vld [vmem:[%s246 + $0x38] sm:$0xff]
      %v879 = vld [vmem:[%s246 + $0x40] sm:$0xff]
      %v880 = vld [vmem:[%s246 + $0x48] sm:$0xff]
      %v881 = vld [vmem:[%s246 + $0x50] sm:$0xff]
      %v882 = vld [vmem:[%s246 + $0x58] sm:$0xff]
      %v883 = vld [vmem:[%s246 + $0x60] sm:$0xff]
      %v884 = vld [vmem:[%s246 + $0x68] sm:$0xff]
      %v885 = vld [vmem:[%s246 + $0x70] sm:$0xff]
      %v886 = vld [vmem:[%s246 + $0x78] sm:$0xff]
      %v887 = vld [vmem:[%s246 + $0x80] sm:$0xff]
      %v888 = vld [vmem:[%s246 + $0x88] sm:$0xff]
      %v889 = vld [vmem:[%s246 + $0x90] sm:$0xff]
      %v890 = vld [vmem:[%s246 + $0x98] sm:$0xff]
      %v891 = vld [vmem:[%s246 + $0xa0] sm:$0xff]
      %v892 = vld [vmem:[%s246 + $0xa8] sm:$0xff]
      %v893 = vld [vmem:[%s246 + $0xb0] sm:$0xff]
      %v894 = vld [vmem:[%s246 + $0xb8] sm:$0xff]
      %v895 = vld [vmem:[%s246 + $0xc0] sm:$0xff]
      %v896 = vld [vmem:[%s246 + $0xc8] sm:$0xff]
      %v897 = vld [vmem:[%s246 + $0xd0] sm:$0xff]
      %v898 = vld [vmem:[%s246 + $0xd8] sm:$0xff]
      %v899 = vld [vmem:[%s246 + $0xe0] sm:$0xff]
      %v900 = vld [vmem:[%s246 + $0xe8] sm:$0xff]
      %v901 = vld [vmem:[%s246 + $0xf0] sm:$0xff]
      %v902 = vld [vmem:[%s246 + $0xf8] sm:$0xff]
      %v903 = vld [vmem:[%s1] sm:$0xff]
      %v904 = vld [vmem:[%s1 + $0x8] sm:$0xff]
      %v905 = vld [vmem:[%s1 + $0x10] sm:$0xff]
      %v906 = vld [vmem:[%s1 + $0x18] sm:$0xff]
      %v907 = vld [vmem:[%s2] sm:$0x1]
      %v909 = vlaneseq
      %v910 = vshrl.u32 %v909, 7
      %v911 = vsub.s32 0, %v910
      %v912 = vrot.slane %v907, %v911
      %vm914 = vcmask 261120
      %v916 = vsel %vm914, %v871, 0
      %v919 = vsel %vm914, %v872, 0
      %v922 = vsel %vm914, %v873, 0
      %v925 = vsel %vm914, %v874, 0
      %v928 = vsel %vm914, %v875, 0
      %v931 = vsel %vm914, %v876, 0
      %v934 = vsel %vm914, %v877, 0
      %v937 = vsel %vm914, %v878, 0
      %v940 = vsel %vm914, %v879, 0
      %v943 = vsel %vm914, %v880, 0
      %v946 = vsel %vm914, %v881, 0
      %v949 = vsel %vm914, %v882, 0
      %v952 = vsel %vm914, %v883, 0
      %v955 = vsel %vm914, %v884, 0
      %v958 = vsel %vm914, %v885, 0
      %v961 = vsel %vm914, %v886, 0
      %v964 = vsel %vm914, %v887, 0
      %v967 = vsel %vm914, %v888, 0
      %v970 = vsel %vm914, %v889, 0
      %v973 = vsel %vm914, %v890, 0
      %v976 = vsel %vm914, %v891, 0
      %v979 = vsel %vm914, %v892, 0
      %v982 = vsel %vm914, %v893, 0
      %v985 = vsel %vm914, %v894, 0
      %v988 = vsel %vm914, %v895, 0
      %v991 = vsel %vm914, %v896, 0
      %v994 = vsel %vm914, %v897, 0
      %v997 = vsel %vm914, %v898, 0
      %v1000 = vsel %vm914, %v899, 0
      %v1003 = vsel %vm914, %v900, 0
      %v1006 = vsel %vm914, %v901, 0
      %v1009 = vsel %vm914, %v902, 0
      %1011 = vmatprep.subr.mxu0 0.0
      %1012 = vmatpush1.msra.mxu0 0.0
      %1013 = vmatprep.subr.mxu0 0.0
      %1014 = vmatpush1.msra.mxu0 0.0
      %1015 = vmatprep.subr.mxu0 0.0
      %1016 = vmatpush1.msra.mxu0 0.0
      %1017 = vmatprep.subr.mxu0 0.0
      %1018 = vmatpush1.msra.mxu0 0.0
      %1019 = vmatprep.subr.mxu0 0.0
      %1020 = vmatpush1.msra.mxu0 0.0
      %1021 = vmatprep.subr.mxu0 0.0
      %1022 = vmatpush1.msra.mxu0 0.0
      %1023 = vmatprep.subr.mxu0 0.0
      %1024 = vmatpush1.msra.mxu0 0.0
      %1025 = vmatprep.subr.mxu0 0.0
      %1026 = vmatpush1.msra.mxu0 0.0
      %1027 = vmatprep.subr.mxu0 0.0
      %1028 = vmatpush1.msra.mxu0 0.0
      %1029 = vmatprep.subr.mxu0 0.0
      %1030 = vmatpush1.msra.mxu0 0.0
      %1031 = vmatprep.subr.mxu0 0.0
      %1032 = vmatpush1.msra.mxu0 0.0
      %1033 = vmatprep.subr.mxu0 0.0
      %1034 = vmatpush1.msra.mxu0 0.0
      %1035 = vmatprep.subr.mxu0 0.0
      %1036 = vmatpush1.msra.mxu0 %v906
      %1037 = vmatprep.subr.mxu0 0.0
      %1038 = vmatpush1.msra.mxu0 %v905
      %1039 = vmatprep.subr.mxu0 0.0
      %1040 = vmatpush1.msra.mxu0 %v904
      %1041 = vmatprep.subr.mxu0 0.0
      %1042 = vmatpush1.msra.mxu0 %v903
      %1043 = vmatprep.subr.mxu0 0.0
      %1044 = vmatpush2.msra.mxu0 0.0
      %1045 = vmatprep.subr.mxu0 0.0
      %1046 = vmatpush2.msra.mxu0 0.0
      %1047 = vmatprep.subr.mxu0 0.0
      %1048 = vmatpush2.msra.mxu0 0.0
      %1049 = vmatprep.subr.mxu0 0.0
      %1050 = vmatpush2.msra.mxu0 0.0
      %1051 = vmatprep.subr.mxu0 0.0
      %1052 = vmatpush2.msra.mxu0 0.0
      %1053 = vmatprep.subr.mxu0 0.0
      %1054 = vmatpush2.msra.mxu0 0.0
      %1055 = vmatprep.subr.mxu0 0.0
      %1056 = vmatpush2.msra.mxu0 0.0
      %1057 = vmatprep.subr.mxu0 0.0
      %1058 = vmatpush2.msra.mxu0 0.0
      %1059 = vmatprep.subr.mxu0 0.0
      %1060 = vmatpush2.msra.mxu0 0.0
      %1061 = vmatprep.subr.mxu0 0.0
      %1062 = vmatpush2.msra.mxu0 0.0
      %1063 = vmatprep.subr.mxu0 0.0
      %1064 = vmatpush2.msra.mxu0 0.0
      %1065 = vmatprep.subr.mxu0 0.0
      %1066 = vmatpush2.msra.mxu0 0.0
      %1067 = vmatprep.subr.mxu0 0.0
      %1068 = vmatpush2.msra.mxu0 0.0
      %1069 = vmatprep.subr.mxu0 0.0
      %1070 = vmatpush2.msra.mxu0 0.0
      %1071 = vmatprep.subr.mxu0 0.0
      %1072 = vmatpush2.msra.mxu0 0.0
      %1073 = vmatprep.subr.mxu0 0.0
      %1074 = vmatpush2.msra.mxu0 0.0
      %1075 = vmatprep.mubr.f32.mxu0 0.0
      %1076 = vmatmul.mubr.f32.gmra.mxu0 %v916
      %v1077 = vpop.f32.mrf.mxu0
      %v1078 = vadd.f32 %v912, %v1077
      %v1079 = vpop.f32.mrf.mxu0
      %1080 = vmatprep.mubr.f32.mxu0 0.0
      %1081 = vmatmul.mubr.f32.gmra.mxu0 %v919
      %v1082 = vpop.f32.mrf.mxu0
      %v1083 = vadd.f32 %v912, %v1082
      %v1084 = vpop.f32.mrf.mxu0
      %1085 = vmatprep.mubr.f32.mxu0 0.0
      %1086 = vmatmul.mubr.f32.gmra.mxu0 %v922
      %v1087 = vpop.f32.mrf.mxu0
      %v1088 = vadd.f32 %v912, %v1087
      %v1089 = vpop.f32.mrf.mxu0
      %1090 = vmatprep.mubr.f32.mxu0 0.0
      %1091 = vmatmul.mubr.f32.gmra.mxu0 %v925
      %v1092 = vpop.f32.mrf.mxu0
      %v1093 = vadd.f32 %v912, %v1092
      %v1094 = vpop.f32.mrf.mxu0
      %1095 = vmatprep.mubr.f32.mxu0 0.0
      %1096 = vmatmul.mubr.f32.gmra.mxu0 %v928
      %v1097 = vpop.f32.mrf.mxu0
      %v1098 = vadd.f32 %v912, %v1097
      %v1099 = vpop.f32.mrf.mxu0
      %1100 = vmatprep.mubr.f32.mxu0 0.0
      %1101 = vmatmul.mubr.f32.gmra.mxu0 %v931
      %v1102 = vpop.f32.mrf.mxu0
      %v1103 = vadd.f32 %v912, %v1102
      %v1104 = vpop.f32.mrf.mxu0
      %1105 = vmatprep.mubr.f32.mxu0 0.0
      %1106 = vmatmul.mubr.f32.gmra.mxu0 %v934
      %v1107 = vpop.f32.mrf.mxu0
      %v1108 = vadd.f32 %v912, %v1107
      %v1109 = vpop.f32.mrf.mxu0
      %1110 = vmatprep.mubr.f32.mxu0 0.0
      %1111 = vmatmul.mubr.f32.gmra.mxu0 %v937
      %v1112 = vpop.f32.mrf.mxu0
      %v1113 = vadd.f32 %v912, %v1112
      %v1114 = vpop.f32.mrf.mxu0
      %1115 = vmatprep.mubr.f32.mxu0 0.0
      %1116 = vmatmul.mubr.f32.gmra.mxu0 %v940
      %v1117 = vpop.f32.mrf.mxu0
      %v1118 = vadd.f32 %v912, %v1117
      %v1119 = vpop.f32.mrf.mxu0
      %1120 = vmatprep.mubr.f32.mxu0 0.0
      %1121 = vmatmul.mubr.f32.gmra.mxu0 %v943
      %v1122 = vpop.f32.mrf.mxu0
      %v1123 = vadd.f32 %v912, %v1122
      %v1124 = vpop.f32.mrf.mxu0
      %1125 = vmatprep.mubr.f32.mxu0 0.0
      %1126 = vmatmul.mubr.f32.gmra.mxu0 %v946
      %v1127 = vpop.f32.mrf.mxu0
      %v1128 = vadd.f32 %v912, %v1127
      %v1129 = vpop.f32.mrf.mxu0
      %1130 = vmatprep.mubr.f32.mxu0 0.0
      %1131 = vmatmul.mubr.f32.gmra.mxu0 %v949
      %v1132 = vpop.f32.mrf.mxu0
      %v1133 = vadd.f32 %v912, %v1132
      %v1134 = vpop.f32.mrf.mxu0
      %1135 = vmatprep.mubr.f32.mxu0 0.0
      %1136 = vmatmul.mubr.f32.gmra.mxu0 %v952
      %v1137 = vpop.f32.mrf.mxu0
      %v1138 = vadd.f32 %v912, %v1137
      %v1139 = vpop.f32.mrf.mxu0
      %1140 = vmatprep.mubr.f32.mxu0 0.0
      %1141 = vmatmul.mubr.f32.gmra.mxu0 %v955
      %v1142 = vpop.f32.mrf.mxu0
      %v1143 = vadd.f32 %v912, %v1142
      %v1144 = vpop.f32.mrf.mxu0
      %1145 = vmatprep.mubr.f32.mxu0 0.0
      %1146 = vmatmul.mubr.f32.gmra.mxu0 %v958
      %v1147 = vpop.f32.mrf.mxu0
      %v1148 = vadd.f32 %v912, %v1147
      %v1149 = vpop.f32.mrf.mxu0
      %1150 = vmatprep.mubr.f32.mxu0 0.0
      %1151 = vmatmul.mubr.f32.gmra.mxu0 %v961
      %v1152 = vpop.f32.mrf.mxu0
      %v1153 = vadd.f32 %v912, %v1152
      %v1154 = vpop.f32.mrf.mxu0
      %1155 = vmatprep.mubr.f32.mxu0 0.0
      %1156 = vmatmul.mubr.f32.gmra.mxu0 %v964
      %v1157 = vpop.f32.mrf.mxu0
      %v1158 = vadd.f32 %v912, %v1157
      %v1159 = vpop.f32.mrf.mxu0
      %1160 = vmatprep.mubr.f32.mxu0 0.0
      %1161 = vmatmul.mubr.f32.gmra.mxu0 %v967
      %v1162 = vpop.f32.mrf.mxu0
      %v1163 = vadd.f32 %v912, %v1162
      %v1164 = vpop.f32.mrf.mxu0
      %1165 = vmatprep.mubr.f32.mxu0 0.0
      %1166 = vmatmul.mubr.f32.gmra.mxu0 %v970
      %v1167 = vpop.f32.mrf.mxu0
      %v1168 = vadd.f32 %v912, %v1167
      %v1169 = vpop.f32.mrf.mxu0
      %1170 = vmatprep.mubr.f32.mxu0 0.0
      %1171 = vmatmul.mubr.f32.gmra.mxu0 %v973
      %v1172 = vpop.f32.mrf.mxu0
      %v1173 = vadd.f32 %v912, %v1172
      %v1174 = vpop.f32.mrf.mxu0
      %1175 = vmatprep.mubr.f32.mxu0 0.0
      %1176 = vmatmul.mubr.f32.gmra.mxu0 %v976
      %v1177 = vpop.f32.mrf.mxu0
      %v1178 = vadd.f32 %v912, %v1177
      %v1179 = vpop.f32.mrf.mxu0
      %1180 = vmatprep.mubr.f32.mxu0 0.0
      %1181 = vmatmul.mubr.f32.gmra.mxu0 %v979
      %v1182 = vpop.f32.mrf.mxu0
      %v1183 = vadd.f32 %v912, %v1182
      %v1184 = vpop.f32.mrf.mxu0
      %1185 = vmatprep.mubr.f32.mxu0 0.0
      %1186 = vmatmul.mubr.f32.gmra.mxu0 %v982
      %v1187 = vpop.f32.mrf.mxu0
      %v1188 = vadd.f32 %v912, %v1187
      %v1189 = vpop.f32.mrf.mxu0
      %1190 = vmatprep.mubr.f32.mxu0 0.0
      %1191 = vmatmul.mubr.f32.gmra.mxu0 %v985
      %v1192 = vpop.f32.mrf.mxu0
      %v1193 = vadd.f32 %v912, %v1192
      %v1194 = vpop.f32.mrf.mxu0
      %1195 = vmatprep.mubr.f32.mxu0 0.0
      %1196 = vmatmul.mubr.f32.gmra.mxu0 %v988
      %v1197 = vpop.f32.mrf.mxu0
      %v1198 = vadd.f32 %v912, %v1197
      %v1199 = vpop.f32.mrf.mxu0
      %1200 = vmatprep.mubr.f32.mxu0 0.0
      %1201 = vmatmul.mubr.f32.gmra.mxu0 %v991
      %v1202 = vpop.f32.mrf.mxu0
      %v1203 = vadd.f32 %v912, %v1202
      %v1204 = vpop.f32.mrf.mxu0
      %1205 = vmatprep.mubr.f32.mxu0 0.0
      %1206 = vmatmul.mubr.f32.gmra.mxu0 %v994
      %v1207 = vpop.f32.mrf.mxu0
      %v1208 = vadd.f32 %v912, %v1207
      %v1209 = vpop.f32.mrf.mxu0
      %1210 = vmatprep.mubr.f32.mxu0 0.0
      %1211 = vmatmul.mubr.f32.gmra.mxu0 %v997
      %v1212 = vpop.f32.mrf.mxu0
      %v1213 = vadd.f32 %v912, %v1212
      %v1214 = vpop.f32.mrf.mxu0
      %1215 = vmatprep.mubr.f32.mxu0 0.0
      %1216 = vmatmul.mubr.f32.gmra.mxu0 %v1000
      %v1217 = vpop.f32.mrf.mxu0
      %v1218 = vadd.f32 %v912, %v1217
      %v1219 = vpop.f32.mrf.mxu0
      %1220 = vmatprep.mubr.f32.mxu0 0.0
      %1221 = vmatmul.mubr.f32.gmra.mxu0 %v1003
      %v1222 = vpop.f32.mrf.mxu0
      %v1223 = vadd.f32 %v912, %v1222
      %v1224 = vpop.f32.mrf.mxu0
      %1225 = vmatprep.mubr.f32.mxu0 0.0
      %1226 = vmatmul.mubr.f32.gmra.mxu0 %v1006
      %v1227 = vpop.f32.mrf.mxu0
      %v1228 = vadd.f32 %v912, %v1227
      %v1229 = vpop.f32.mrf.mxu0
      %1230 = vmatprep.mubr.f32.mxu0 0.0
      %1231 = vmatmul.mubr.f32.gmra.mxu0 %v1009
      %v1232 = vpop.f32.mrf.mxu0
      %v1233 = vadd.f32 %v912, %v1232
      %v1234 = vpop.f32.mrf.mxu0
      %1235 = vdwg.mxu0
      %v1236 = vld [vmem:[%s4] sm:$0x1]
      %v1237 = vpack.c.bf16 %v1083, %v1078
      %v1238 = vpack.c.bf16 %v1093, %v1088
      %v1239 = vpack.c.bf16 %v1103, %v1098
      %v1240 = vpack.c.bf16 %v1113, %v1108
      %v1241 = vpack.c.bf16 %v1123, %v1118
      %v1242 = vpack.c.bf16 %v1133, %v1128
      %v1243 = vpack.c.bf16 %v1143, %v1138
      %v1244 = vpack.c.bf16 %v1153, %v1148
      %v1245 = vpack.c.bf16 %v1163, %v1158
      %v1246 = vpack.c.bf16 %v1173, %v1168
      %v1247 = vpack.c.bf16 %v1183, %v1178
      %v1248 = vpack.c.bf16 %v1193, %v1188
      %v1249 = vpack.c.bf16 %v1203, %v1198
      %v1250 = vpack.c.bf16 %v1213, %v1208
      %v1251 = vpack.c.bf16 %v1223, %v1218
      %v1252 = vpack.c.bf16 %v1233, %v1228
      %v1269 = vunpack.c.l.b16 %v1237
      %v1270 = vunpack.c.h.b16 %v1237
      %v1271 = vunpack.c.l.b16 %v1238
      %v1272 = vunpack.c.h.b16 %v1238
      %v1273 = vunpack.c.l.b16 %v1239
      %v1274 = vunpack.c.h.b16 %v1239
      %v1275 = vunpack.c.l.b16 %v1240
      %v1276 = vunpack.c.h.b16 %v1240
      %v1277 = vunpack.c.l.b16 %v1241
      %v1278 = vunpack.c.h.b16 %v1241
      %v1279 = vunpack.c.l.b16 %v1242
      %v1280 = vunpack.c.h.b16 %v1242
      %v1281 = vunpack.c.l.b16 %v1243
      %v1282 = vunpack.c.h.b16 %v1243
      %v1283 = vunpack.c.l.b16 %v1244
      %v1284 = vunpack.c.h.b16 %v1244
      %v1285 = vunpack.c.l.b16 %v1245
      %v1286 = vunpack.c.h.b16 %v1245
      %v1287 = vunpack.c.l.b16 %v1246
      %v1288 = vunpack.c.h.b16 %v1246
      %v1289 = vunpack.c.l.b16 %v1247
      %v1290 = vunpack.c.h.b16 %v1247
      %v1291 = vunpack.c.l.b16 %v1248
      %v1292 = vunpack.c.h.b16 %v1248
      %v1293 = vunpack.c.l.b16 %v1249
      %v1294 = vunpack.c.h.b16 %v1249
      %v1295 = vunpack.c.l.b16 %v1250
      %v1296 = vunpack.c.h.b16 %v1250
      %v1297 = vunpack.c.l.b16 %v1251
      %v1298 = vunpack.c.h.b16 %v1251
      %v1299 = vunpack.c.l.b16 %v1252
      %v1300 = vunpack.c.h.b16 %v1252
      %v1301 = vpack.c.b16 %v1269, %v1269
      %v1302 = vpack.c.b16 %v1270, %v1270
      %v1303 = vpack.c.b16 %v1271, %v1271
      %v1304 = vpack.c.b16 %v1272, %v1272
      %v1305 = vpack.c.b16 %v1273, %v1273
      %v1306 = vpack.c.b16 %v1274, %v1274
      %v1307 = vpack.c.b16 %v1275, %v1275
      %v1308 = vpack.c.b16 %v1276, %v1276
      %v1309 = vpack.c.b16 %v1277, %v1277
      %v1310 = vpack.c.b16 %v1278, %v1278
      %v1311 = vpack.c.b16 %v1279, %v1279
      %v1312 = vpack.c.b16 %v1280, %v1280
      %v1313 = vpack.c.b16 %v1281, %v1281
      %v1314 = vpack.c.b16 %v1282, %v1282
      %v1315 = vpack.c.b16 %v1283, %v1283
      %v1316 = vpack.c.b16 %v1284, %v1284
      %v1317 = vpack.c.b16 %v1285, %v1285
      %v1318 = vpack.c.b16 %v1286, %v1286
      %v1319 = vpack.c.b16 %v1287, %v1287
      %v1320 = vpack.c.b16 %v1288, %v1288
      %v1321 = vpack.c.b16 %v1289, %v1289
      %v1322 = vpack.c.b16 %v1290, %v1290
      %v1323 = vpack.c.b16 %v1291, %v1291
      %v1324 = vpack.c.b16 %v1292, %v1292
      %v1325 = vpack.c.b16 %v1293, %v1293
      %v1326 = vpack.c.b16 %v1294, %v1294
      %v1327 = vpack.c.b16 %v1295, %v1295
      %v1328 = vpack.c.b16 %v1296, %v1296
      %v1329 = vpack.c.b16 %v1297, %v1297
      %v1330 = vpack.c.b16 %v1298, %v1298
      %v1331 = vpack.c.b16 %v1299, %v1299
      %v1332 = vpack.c.b16 %v1300, %v1300
      %vm1365 = vcmask 257024
      %1366 = vst.msk [vmem:[#allocation2 + $0x10] sm:$0xf] %vm1365, %v1301
      %1367 = vst.msk [vmem:[#allocation2 + $0x14] sm:$0xf] %vm1365, %v1302
      %1368 = vst.msk [vmem:[#allocation2 + $0x18] sm:$0xf] %vm1365, %v1303
      %1369 = vst.msk [vmem:[#allocation2 + $0x1c] sm:$0xf] %vm1365, %v1304
      %1370 = vst.msk [vmem:[#allocation2 + $0x20] sm:$0xf] %vm1365, %v1305
      %1371 = vst.msk [vmem:[#allocation2 + $0x24] sm:$0xf] %vm1365, %v1306
      %1372 = vst.msk [vmem:[#allocation2 + $0x28] sm:$0xf] %vm1365, %v1307
      %1373 = vst.msk [vmem:[#allocation2 + $0x2c] sm:$0xf] %vm1365, %v1308
      %1374 = vst.msk [vmem:[#allocation2 + $0x30] sm:$0xf] %vm1365, %v1309
      %1375 = vst.msk [vmem:[#allocation2 + $0x34] sm:$0xf] %vm1365, %v1310
      %1376 = vst.msk [vmem:[#allocation2 + $0x38] sm:$0xf] %vm1365, %v1311
      %1377 = vst.msk [vmem:[#allocation2 + $0x3c] sm:$0xf] %vm1365, %v1312
      %1378 = vst.msk [vmem:[#allocation2 + $0x40] sm:$0xf] %vm1365, %v1313
      %1379 = vst.msk [vmem:[#allocation2 + $0x44] sm:$0xf] %vm1365, %v1314
      %1380 = vst.msk [vmem:[#allocation2 + $0x48] sm:$0xf] %vm1365, %v1315
      %1381 = vst.msk [vmem:[#allocation2 + $0x4c] sm:$0xf] %vm1365, %v1316
      %1382 = vst.msk [vmem:[#allocation2 + $0x50] sm:$0xf] %vm1365, %v1317
      %1383 = vst.msk [vmem:[#allocation2 + $0x54] sm:$0xf] %vm1365, %v1318
      %1384 = vst.msk [vmem:[#allocation2 + $0x58] sm:$0xf] %vm1365, %v1319
      %1385 = vst.msk [vmem:[#allocation2 + $0x5c] sm:$0xf] %vm1365, %v1320
      %1386 = vst.msk [vmem:[#allocation2 + $0x60] sm:$0xf] %vm1365, %v1321
      %1387 = vst.msk [vmem:[#allocation2 + $0x64] sm:$0xf] %vm1365, %v1322
      %1388 = vst.msk [vmem:[#allocation2 + $0x68] sm:$0xf] %vm1365, %v1323
      %1389 = vst.msk [vmem:[#allocation2 + $0x6c] sm:$0xf] %vm1365, %v1324
      %1390 = vst.msk [vmem:[#allocation2 + $0x70] sm:$0xf] %vm1365, %v1325
      %1391 = vst.msk [vmem:[#allocation2 + $0x74] sm:$0xf] %vm1365, %v1326
      %1392 = vst.msk [vmem:[#allocation2 + $0x78] sm:$0xf] %vm1365, %v1327
      %1393 = vst.msk [vmem:[#allocation2 + $0x7c] sm:$0xf] %vm1365, %v1328
      %1394 = vst.msk [vmem:[#allocation2 + $0x80] sm:$0xf] %vm1365, %v1329
      %1395 = vst.msk [vmem:[#allocation2 + $0x84] sm:$0xf] %vm1365, %v1330
      %1396 = vst.msk [vmem:[#allocation2 + $0x88] sm:$0xf] %vm1365, %v1331
      %1397 = vst.msk [vmem:[#allocation2 + $0x8c] sm:$0xf] %vm1365, %v1332
      %1398 = vrot.lane.b32.xlu0 %v1301, 32
      %v1399 = vpop.permute.xlu0 %1398
      %1400 = vrot.lane.b32.xlu0 %v1302, 32
      %v1401 = vpop.permute.xlu0 %1400
      %1402 = vrot.lane.b32.xlu0 %v1303, 32
      %v1403 = vpop.permute.xlu0 %1402
      %1404 = vrot.lane.b32.xlu0 %v1304, 32
      %v1405 = vpop.permute.xlu0 %1404
      %1406 = vrot.lane.b32.xlu0 %v1305, 32
      %v1407 = vpop.permute.xlu0 %1406
      %1408 = vrot.lane.b32.xlu0 %v1306, 32
      %v1409 = vpop.permute.xlu0 %1408
      %1410 = vrot.lane.b32.xlu0 %v1307, 32
      %v1411 = vpop.permute.xlu0 %1410
      %1412 = vrot.lane.b32.xlu0 %v1308, 32
      %v1413 = vpop.permute.xlu0 %1412
      %1414 = vrot.lane.b32.xlu0 %v1309, 32
      %v1415 = vpop.permute.xlu0 %1414
      %1416 = vrot.lane.b32.xlu0 %v1310, 32
      %v1417 = vpop.permute.xlu0 %1416
      %1418 = vrot.lane.b32.xlu0 %v1311, 32
      %v1419 = vpop.permute.xlu0 %1418
      %1420 = vrot.lane.b32.xlu0 %v1312, 32
      %v1421 = vpop.permute.xlu0 %1420
      %1422 = vrot.lane.b32.xlu0 %v1313, 32
      %v1423 = vpop.permute.xlu0 %1422
      %1424 = vrot.lane.b32.xlu0 %v1314, 32
      %v1425 = vpop.permute.xlu0 %1424
      %1426 = vrot.lane.b32.xlu0 %v1315, 32
      %v1427 = vpop.permute.xlu0 %1426
      %1428 = vrot.lane.b32.xlu0 %v1316, 32
      %v1429 = vpop.permute.xlu0 %1428
      %1430 = vrot.lane.b32.xlu0 %v1317, 32
      %v1431 = vpop.permute.xlu0 %1430
      %1432 = vrot.lane.b32.xlu0 %v1318, 32
      %v1433 = vpop.permute.xlu0 %1432
      %1434 = vrot.lane.b32.xlu0 %v1319, 32
      %v1435 = vpop.permute.xlu0 %1434
      %1436 = vrot.lane.b32.xlu0 %v1320, 32
      %v1437 = vpop.permute.xlu0 %1436
      %1438 = vrot.lane.b32.xlu0 %v1321, 32
      %v1439 = vpop.permute.xlu0 %1438
      %1440 = vrot.lane.b32.xlu0 %v1322, 32
      %v1441 = vpop.permute.xlu0 %1440
      %1442 = vrot.lane.b32.xlu0 %v1323, 32
      %v1443 = vpop.permute.xlu0 %1442
      %1444 = vrot.lane.b32.xlu0 %v1324, 32
      %v1445 = vpop.permute.xlu0 %1444
      %1446 = vrot.lane.b32.xlu0 %v1325, 32
      %v1447 = vpop.permute.xlu0 %1446
      %1448 = vrot.lane.b32.xlu0 %v1326, 32
      %v1449 = vpop.permute.xlu0 %1448
      %1450 = vrot.lane.b32.xlu0 %v1327, 32
      %v1451 = vpop.permute.xlu0 %1450
      %1452 = vrot.lane.b32.xlu0 %v1328, 32
      %v1453 = vpop.permute.xlu0 %1452
      %1454 = vrot.lane.b32.xlu0 %v1329, 32
      %v1455 = vpop.permute.xlu0 %1454
      %1456 = vrot.lane.b32.xlu0 %v1330, 32
      %v1457 = vpop.permute.xlu0 %1456
      %1458 = vrot.lane.b32.xlu0 %v1331, 32
      %v1459 = vpop.permute.xlu0 %1458
      %1460 = vrot.lane.b32.xlu0 %v1332, 32
      %v1461 = vpop.permute.xlu0 %1460
      %vm1494 = vcmask 519424
      %1495 = vst.msk [vmem:[#allocation2 + $0x8] sm:$0xf] %vm1494, %v1399
      %1496 = vst.msk [vmem:[#allocation2 + $0xc] sm:$0xf] %vm1494, %v1401
      %1497 = vst.msk [vmem:[#allocation2 + $0x10] sm:$0xf] %vm1494, %v1403
      %1498 = vst.msk [vmem:[#allocation2 + $0x14] sm:$0xf] %vm1494, %v1405
      %1499 = vst.msk [vmem:[#allocation2 + $0x18] sm:$0xf] %vm1494, %v1407
      %1500 = vst.msk [vmem:[#allocation2 + $0x1c] sm:$0xf] %vm1494, %v1409
      %1501 = vst.msk [vmem:[#allocation2 + $0x20] sm:$0xf] %vm1494, %v1411
      %1502 = vst.msk [vmem:[#allocation2 + $0x24] sm:$0xf] %vm1494, %v1413
      %1503 = vst.msk [vmem:[#allocation2 + $0x28] sm:$0xf] %vm1494, %v1415
      %1504 = vst.msk [vmem:[#allocation2 + $0x2c] sm:$0xf] %vm1494, %v1417
      %1505 = vst.msk [vmem:[#allocation2 + $0x30] sm:$0xf] %vm1494, %v1419
      %1506 = vst.msk [vmem:[#allocation2 + $0x34] sm:$0xf] %vm1494, %v1421
      %1507 = vst.msk [vmem:[#allocation2 + $0x38] sm:$0xf] %vm1494, %v1423
      %1508 = vst.msk [vmem:[#allocation2 + $0x3c] sm:$0xf] %vm1494, %v1425
      %1509 = vst.msk [vmem:[#allocation2 + $0x40] sm:$0xf] %vm1494, %v1427
      %1510 = vst.msk [vmem:[#allocation2 + $0x44] sm:$0xf] %vm1494, %v1429
      %1511 = vst.msk [vmem:[#allocation2 + $0x48] sm:$0xf] %vm1494, %v1431
      %1512 = vst.msk [vmem:[#allocation2 + $0x4c] sm:$0xf] %vm1494, %v1433
      %1513 = vst.msk [vmem:[#allocation2 + $0x50] sm:$0xf] %vm1494, %v1435
      %1514 = vst.msk [vmem:[#allocation2 + $0x54] sm:$0xf] %vm1494, %v1437
      %1515 = vst.msk [vmem:[#allocation2 + $0x58] sm:$0xf] %vm1494, %v1439
      %1516 = vst.msk [vmem:[#allocation2 + $0x5c] sm:$0xf] %vm1494, %v1441
      %1517 = vst.msk [vmem:[#allocation2 + $0x60] sm:$0xf] %vm1494, %v1443
      %1518 = vst.msk [vmem:[#allocation2 + $0x64] sm:$0xf] %vm1494, %v1445
      %1519 = vst.msk [vmem:[#allocation2 + $0x68] sm:$0xf] %vm1494, %v1447
      %1520 = vst.msk [vmem:[#allocation2 + $0x6c] sm:$0xf] %vm1494, %v1449
      %1521 = vst.msk [vmem:[#allocation2 + $0x70] sm:$0xf] %vm1494, %v1451
      %1522 = vst.msk [vmem:[#allocation2 + $0x74] sm:$0xf] %vm1494, %v1453
      %1523 = vst.msk [vmem:[#allocation2 + $0x78] sm:$0xf] %vm1494, %v1455
      %1524 = vst.msk [vmem:[#allocation2 + $0x7c] sm:$0xf] %vm1494, %v1457
      %1525 = vst.msk [vmem:[#allocation2 + $0x80] sm:$0xf] %vm1494, %v1459
      %1526 = vst.msk [vmem:[#allocation2 + $0x84] sm:$0xf] %vm1494, %v1461
      %1527 = vrot.lane.b32.xlu0 %v1301, 64
      %v1528 = vpop.permute.xlu0 %1527
      %1529 = vrot.lane.b32.xlu0 %v1302, 64
      %v1530 = vpop.permute.xlu0 %1529
      %1531 = vrot.lane.b32.xlu0 %v1303, 64
      %v1532 = vpop.permute.xlu0 %1531
      %1533 = vrot.lane.b32.xlu0 %v1304, 64
      %v1534 = vpop.permute.xlu0 %1533
      %1535 = vrot.lane.b32.xlu0 %v1305, 64
      %v1536 = vpop.permute.xlu0 %1535
      %1537 = vrot.lane.b32.xlu0 %v1306, 64
      %v1538 = vpop.permute.xlu0 %1537
      %1539 = vrot.lane.b32.xlu0 %v1307, 64
      %v1540 = vpop.permute.xlu0 %1539
      %1541 = vrot.lane.b32.xlu0 %v1308, 64
      %v1542 = vpop.permute.xlu0 %1541
      %1543 = vrot.lane.b32.xlu0 %v1309, 64
      %v1544 = vpop.permute.xlu0 %1543
      %1545 = vrot.lane.b32.xlu0 %v1310, 64
      %v1546 = vpop.permute.xlu0 %1545
      %1547 = vrot.lane.b32.xlu0 %v1311, 64
      %v1548 = vpop.permute.xlu0 %1547
      %1549 = vrot.lane.b32.xlu0 %v1312, 64
      %v1550 = vpop.permute.xlu0 %1549
      %1551 = vrot.lane.b32.xlu0 %v1313, 64
      %v1552 = vpop.permute.xlu0 %1551
      %1553 = vrot.lane.b32.xlu0 %v1314, 64
      %v1554 = vpop.permute.xlu0 %1553
      %1555 = vrot.lane.b32.xlu0 %v1315, 64
      %v1556 = vpop.permute.xlu0 %1555
      %1557 = vrot.lane.b32.xlu0 %v1316, 64
      %v1558 = vpop.permute.xlu0 %1557
      %1559 = vrot.lane.b32.xlu0 %v1317, 64
      %v1560 = vpop.permute.xlu0 %1559
      %1561 = vrot.lane.b32.xlu0 %v1318, 64
      %v1562 = vpop.permute.xlu0 %1561
      %1563 = vrot.lane.b32.xlu0 %v1319, 64
      %v1564 = vpop.permute.xlu0 %1563
      %1565 = vrot.lane.b32.xlu0 %v1320, 64
      %v1566 = vpop.permute.xlu0 %1565
      %1567 = vrot.lane.b32.xlu0 %v1321, 64
      %v1568 = vpop.permute.xlu0 %1567
      %1569 = vrot.lane.b32.xlu0 %v1322, 64
      %v1570 = vpop.permute.xlu0 %1569
      %1571 = vrot.lane.b32.xlu0 %v1323, 64
      %v1572 = vpop.permute.xlu0 %1571
      %1573 = vrot.lane.b32.xlu0 %v1324, 64
      %v1574 = vpop.permute.xlu0 %1573
      %1575 = vrot.lane.b32.xlu0 %v1325, 64
      %v1576 = vpop.permute.xlu0 %1575
      %1577 = vrot.lane.b32.xlu0 %v1326, 64
      %v1578 = vpop.permute.xlu0 %1577
      %1579 = vrot.lane.b32.xlu0 %v1327, 64
      %v1580 = vpop.permute.xlu0 %1579
      %1581 = vrot.lane.b32.xlu0 %v1328, 64
      %v1582 = vpop.permute.xlu0 %1581
      %1583 = vrot.lane.b32.xlu0 %v1329, 64
      %v1584 = vpop.permute.xlu0 %1583
      %1585 = vrot.lane.b32.xlu0 %v1330, 64
      %v1586 = vpop.permute.xlu0 %1585
      %1587 = vrot.lane.b32.xlu0 %v1331, 64
      %v1588 = vpop.permute.xlu0 %1587
      %1589 = vrot.lane.b32.xlu0 %v1332, 64
      %v1590 = vpop.permute.xlu0 %1589
      %vm1623 = vcmask 781824
      %1624 = vst.msk [vmem:[#allocation2] sm:$0xf] %vm1623, %v1528
      %1625 = vst.msk [vmem:[#allocation2 + $0x4] sm:$0xf] %vm1623, %v1530
      %1626 = vst.msk [vmem:[#allocation2 + $0x8] sm:$0xf] %vm1623, %v1532
      %1627 = vst.msk [vmem:[#allocation2 + $0xc] sm:$0xf] %vm1623, %v1534
      %1628 = vst.msk [vmem:[#allocation2 + $0x10] sm:$0xf] %vm1623, %v1536
      %1629 = vst.msk [vmem:[#allocation2 + $0x14] sm:$0xf] %vm1623, %v1538
      %1630 = vst.msk [vmem:[#allocation2 + $0x18] sm:$0xf] %vm1623, %v1540
      %1631 = vst.msk [vmem:[#allocation2 + $0x1c] sm:$0xf] %vm1623, %v1542
      %1632 = vst.msk [vmem:[#allocation2 + $0x20] sm:$0xf] %vm1623, %v1544
      %1633 = vst.msk [vmem:[#allocation2 + $0x24] sm:$0xf] %vm1623, %v1546
      %1634 = vst.msk [vmem:[#allocation2 + $0x28] sm:$0xf] %vm1623, %v1548
      %1635 = vst.msk [vmem:[#allocation2 + $0x2c] sm:$0xf] %vm1623, %v1550
      %1636 = vst.msk [vmem:[#allocation2 + $0x30] sm:$0xf] %vm1623, %v1552
      %1637 = vst.msk [vmem:[#allocation2 + $0x34] sm:$0xf] %vm1623, %v1554
      %1638 = vst.msk [vmem:[#allocation2 + $0x38] sm:$0xf] %vm1623, %v1556
      %1639 = vst.msk [vmem:[#allocation2 + $0x3c] sm:$0xf] %vm1623, %v1558
      %1640 = vst.msk [vmem:[#allocation2 + $0x40] sm:$0xf] %vm1623, %v1560
      %1641 = vst.msk [vmem:[#allocation2 + $0x44] sm:$0xf] %vm1623, %v1562
      %1642 = vst.msk [vmem:[#allocation2 + $0x48] sm:$0xf] %vm1623, %v1564
      %1643 = vst.msk [vmem:[#allocation2 + $0x4c] sm:$0xf] %vm1623, %v1566
      %1644 = vst.msk [vmem:[#allocation2 + $0x50] sm:$0xf] %vm1623, %v1568
      %1645 = vst.msk [vmem:[#allocation2 + $0x54] sm:$0xf] %vm1623, %v1570
      %1646 = vst.msk [vmem:[#allocation2 + $0x58] sm:$0xf] %vm1623, %v1572
      %1647 = vst.msk [vmem:[#allocation2 + $0x5c] sm:$0xf] %vm1623, %v1574
      %1648 = vst.msk [vmem:[#allocation2 + $0x60] sm:$0xf] %vm1623, %v1576
      %1649 = vst.msk [vmem:[#allocation2 + $0x64] sm:$0xf] %vm1623, %v1578
      %1650 = vst.msk [vmem:[#allocation2 + $0x68] sm:$0xf] %vm1623, %v1580
      %1651 = vst.msk [vmem:[#allocation2 + $0x6c] sm:$0xf] %vm1623, %v1582
      %1652 = vst.msk [vmem:[#allocation2 + $0x70] sm:$0xf] %vm1623, %v1584
      %1653 = vst.msk [vmem:[#allocation2 + $0x74] sm:$0xf] %vm1623, %v1586
      %1654 = vst.msk [vmem:[#allocation2 + $0x78] sm:$0xf] %vm1623, %v1588
      %1655 = vst.msk [vmem:[#allocation2 + $0x7c] sm:$0xf] %vm1623, %v1590
      %v1656 = vld [vmem:[#allocation2 + $0x8] sm:$0xf]
      %v1657 = vld [vmem:[#allocation2 + $0xc] sm:$0xf]
      %v1658 = vld [vmem:[#allocation2 + $0x10] sm:$0xf]
      %v1659 = vld [vmem:[#allocation2 + $0x14] sm:$0xf]
      %v1660 = vld [vmem:[#allocation2 + $0x18] sm:$0xf]
      %v1661 = vld [vmem:[#allocation2 + $0x1c] sm:$0xf]
      %v1662 = vld [vmem:[#allocation2 + $0x20] sm:$0xf]
      %v1663 = vld [vmem:[#allocation2 + $0x24] sm:$0xf]
      %v1664 = vld [vmem:[#allocation2 + $0x28] sm:$0xf]
      %v1665 = vld [vmem:[#allocation2 + $0x2c] sm:$0xf]
      %v1666 = vld [vmem:[#allocation2 + $0x30] sm:$0xf]
      %v1667 = vld [vmem:[#allocation2 + $0x34] sm:$0xf]
      %v1668 = vld [vmem:[#allocation2 + $0x38] sm:$0xf]
      %v1669 = vld [vmem:[#allocation2 + $0x3c] sm:$0xf]
      %v1670 = vld [vmem:[#allocation2 + $0x40] sm:$0xf]
      %v1671 = vld [vmem:[#allocation2 + $0x44] sm:$0xf]
      %v1672 = vld [vmem:[#allocation2 + $0x48] sm:$0xf]
      %v1673 = vld [vmem:[#allocation2 + $0x4c] sm:$0xf]
      %v1674 = vld [vmem:[#allocation2 + $0x50] sm:$0xf]
      %v1675 = vld [vmem:[#allocation2 + $0x54] sm:$0xf]
      %v1676 = vld [vmem:[#allocation2 + $0x58] sm:$0xf]
      %v1677 = vld [vmem:[#allocation2 + $0x5c] sm:$0xf]
      %v1678 = vld [vmem:[#allocation2 + $0x60] sm:$0xf]
      %v1679 = vld [vmem:[#allocation2 + $0x64] sm:$0xf]
      %v1680 = vld [vmem:[#allocation2 + $0x68] sm:$0xf]
      %v1681 = vld [vmem:[#allocation2 + $0x6c] sm:$0xf]
      %v1682 = vld [vmem:[#allocation2 + $0x70] sm:$0xf]
      %v1683 = vld [vmem:[#allocation2 + $0x74] sm:$0xf]
      %v1684 = vld [vmem:[#allocation2 + $0x78] sm:$0xf]
      %v1685 = vld [vmem:[#allocation2 + $0x7c] sm:$0xf]
      %v1686 = vld [vmem:[#allocation2 + $0x80] sm:$0xf]
      %v1687 = vld [vmem:[#allocation2 + $0x84] sm:$0xf]
      %s1688 = scalar_lea.vmem %s3, 48
      %v1689 = vld [vmem:[%s1688] sm:$0xf]
      %v1690 = vld [vmem:[%s1688 + $0x4] sm:$0xf]
      %v1691 = vld [vmem:[%s1688 + $0x8] sm:$0xf]
      %v1692 = vld [vmem:[%s1688 + $0xc] sm:$0xf]
      %v1693 = vld [vmem:[%s1688 + $0x10] sm:$0xf]
      %v1694 = vld [vmem:[%s1688 + $0x14] sm:$0xf]
      %v1695 = vld [vmem:[%s1688 + $0x18] sm:$0xf]
      %v1696 = vld [vmem:[%s1688 + $0x1c] sm:$0xf]
      %v1697 = vld [vmem:[%s1688 + $0x20] sm:$0xf]
      %v1698 = vld [vmem:[%s1688 + $0x24] sm:$0xf]
      %v1699 = vld [vmem:[%s1688 + $0x28] sm:$0xf]
      %v1700 = vld [vmem:[%s1688 + $0x2c] sm:$0xf]
      %v1701 = vld [vmem:[%s3] sm:$0xf]
      %v1702 = vld [vmem:[%s3 + $0x4] sm:$0xf]
      %v1703 = vld [vmem:[%s3 + $0x8] sm:$0xf]
      %v1704 = vld [vmem:[%s3 + $0xc] sm:$0xf]
      %v1705 = vld [vmem:[%s3 + $0x10] sm:$0xf]
      %v1706 = vld [vmem:[%s3 + $0x14] sm:$0xf]
      %v1707 = vld [vmem:[%s3 + $0x18] sm:$0xf]
      %v1708 = vld [vmem:[%s3 + $0x1c] sm:$0xf]
      %v1709 = vld [vmem:[%s3 + $0x20] sm:$0xf]
      %v1710 = vld [vmem:[%s3 + $0x24] sm:$0xf]
      %v1711 = vld [vmem:[%s3 + $0x28] sm:$0xf]
      %v1712 = vld [vmem:[%s3 + $0x2c] sm:$0xf]
      %v1745 = vunpack.c.l.b16 %v1656
      %v1746 = vunpack.c.l.b16 %v1657
      %v1747 = vunpack.c.l.b16 %v1658
      %v1748 = vunpack.c.l.b16 %v1659
      %v1749 = vunpack.c.l.b16 %v1660
      %v1750 = vunpack.c.l.b16 %v1661
      %v1751 = vunpack.c.l.b16 %v1662
      %v1752 = vunpack.c.l.b16 %v1663
      %v1753 = vunpack.c.l.b16 %v1664
      %v1754 = vunpack.c.l.b16 %v1665
      %v1755 = vunpack.c.l.b16 %v1666
      %v1756 = vunpack.c.l.b16 %v1667
      %v1757 = vunpack.c.l.b16 %v1668
      %v1758 = vunpack.c.l.b16 %v1669
      %v1759 = vunpack.c.l.b16 %v1670
      %v1760 = vunpack.c.l.b16 %v1671
      %v1761 = vunpack.c.l.b16 %v1672
      %v1762 = vunpack.c.l.b16 %v1673
      %v1763 = vunpack.c.l.b16 %v1674
      %v1764 = vunpack.c.l.b16 %v1675
      %v1765 = vunpack.c.l.b16 %v1676
      %v1766 = vunpack.c.l.b16 %v1677
      %v1767 = vunpack.c.l.b16 %v1678
      %v1768 = vunpack.c.l.b16 %v1679
      %v1769 = vunpack.c.l.b16 %v1680
      %v1770 = vunpack.c.l.b16 %v1681
      %v1771 = vunpack.c.l.b16 %v1682
      %v1772 = vunpack.c.l.b16 %v1683
      %v1773 = vunpack.c.l.b16 %v1684
      %v1774 = vunpack.c.l.b16 %v1685
      %v1775 = vunpack.c.l.b16 %v1686
      %v1776 = vunpack.c.l.b16 %v1687
      %v1777 = vpack.c.b16 %v1746, %v1745
      %v1778 = vpack.c.b16 %v1748, %v1747
      %v1779 = vpack.c.b16 %v1750, %v1749
      %v1780 = vpack.c.b16 %v1752, %v1751
      %v1781 = vpack.c.b16 %v1754, %v1753
      %v1782 = vpack.c.b16 %v1756, %v1755
      %v1783 = vpack.c.b16 %v1758, %v1757
      %v1784 = vpack.c.b16 %v1760, %v1759
      %v1785 = vpack.c.b16 %v1762, %v1761
      %v1786 = vpack.c.b16 %v1764, %v1763
      %v1787 = vpack.c.b16 %v1766, %v1765
      %v1788 = vpack.c.b16 %v1768, %v1767
      %v1789 = vpack.c.b16 %v1770, %v1769
      %v1790 = vpack.c.b16 %v1772, %v1771
      %v1791 = vpack.c.b16 %v1774, %v1773
      %v1792 = vpack.c.b16 %v1776, %v1775
      %v1805 = vunpack.c.l.b16 %v1701
      %v1806 = vunpack.c.l.b16 %v1702
      %v1807 = vunpack.c.l.b16 %v1703
      %v1808 = vunpack.c.l.b16 %v1704
      %v1809 = vunpack.c.l.b16 %v1705
      %v1810 = vunpack.c.l.b16 %v1706
      %v1811 = vunpack.c.l.b16 %v1707
      %v1812 = vunpack.c.l.b16 %v1708
      %v1813 = vunpack.c.l.b16 %v1709
      %v1814 = vunpack.c.l.b16 %v1710
      %v1815 = vunpack.c.l.b16 %v1711
      %v1816 = vunpack.c.l.b16 %v1712
      %v1817 = vpack.c.b16 %v1806, %v1805
      %v1818 = vpack.c.b16 %v1808, %v1807
      %v1819 = vpack.c.b16 %v1810, %v1809
      %v1820 = vpack.c.b16 %v1812, %v1811
      %v1821 = vpack.c.b16 %v1814, %v1813
      %v1822 = vpack.c.b16 %v1816, %v1815
      %vm1829 = vcmask 785408
      %v1831 = vsel %vm1829, %v1777, 0
      %v1834 = vsel %vm1829, %v1778, 0
      %v1837 = vsel %vm1829, %v1779, 0
      %v1840 = vsel %vm1829, %v1780, 0
      %v1843 = vsel %vm1829, %v1781, 0
      %v1846 = vsel %vm1829, %v1782, 0
      %v1849 = vsel %vm1829, %v1783, 0
      %v1852 = vsel %vm1829, %v1784, 0
      %v1855 = vsel %vm1829, %v1785, 0
      %v1858 = vsel %vm1829, %v1786, 0
      %v1861 = vsel %vm1829, %v1787, 0
      %v1864 = vsel %vm1829, %v1788, 0
      %v1867 = vsel %vm1829, %v1789, 0
      %v1870 = vsel %vm1829, %v1790, 0
      %v1873 = vsel %vm1829, %v1791, 0
      %v1876 = vsel %vm1829, %v1792, 0
      %1878 = vmatprep.subr.bf16.mxu0 0
      %1879 = vmatpush1.bf16.msra.mxu0 0
      %1880 = vmatprep.subr.bf16.mxu0 0
      %1881 = vmatpush1.bf16.msra.mxu0 0
      %1882 = vmatprep.subr.bf16.mxu0 0
      %1883 = vmatpush1.bf16.msra.mxu0 %v1822
      %1884 = vmatprep.subr.bf16.mxu0 0
      %1885 = vmatpush1.bf16.msra.mxu0 %v1821
      %1886 = vmatprep.subr.bf16.mxu0 0
      %1887 = vmatpush1.bf16.msra.mxu0 %v1820
      %1888 = vmatprep.subr.bf16.mxu0 0
      %1889 = vmatpush1.bf16.msra.mxu0 %v1819
      %1890 = vmatprep.subr.bf16.mxu0 0
      %1891 = vmatpush1.bf16.msra.mxu0 %v1818
      %1892 = vmatprep.subr.bf16.mxu0 0
      %1893 = vmatpush1.bf16.msra.mxu0 %v1817
      %1894 = vmatprep.subr.bf16.mxu0 0
      %1895 = vmatpush2.bf16.msra.mxu0 0
      %1896 = vmatprep.subr.bf16.mxu0 0
      %1897 = vmatpush2.bf16.msra.mxu0 0
      %1898 = vmatprep.subr.bf16.mxu0 0
      %1899 = vmatpush2.bf16.msra.mxu0 0
      %1900 = vmatprep.subr.bf16.mxu0 0
      %1901 = vmatpush2.bf16.msra.mxu0 0
      %1902 = vmatprep.subr.bf16.mxu0 0
      %1903 = vmatpush2.bf16.msra.mxu0 0
      %1904 = vmatprep.subr.bf16.mxu0 0
      %1905 = vmatpush2.bf16.msra.mxu0 0
      %1906 = vmatprep.subr.bf16.mxu0 0
      %1907 = vmatpush2.bf16.msra.mxu0 0
      %1908 = vmatprep.subr.bf16.mxu0 0
      %1909 = vmatpush2.bf16.msra.mxu0 0
      %1910 = vmatprep.mubr.bf16.mxu0 0
      %1911 = vmatmul.mubr.bf16.gmra.mxu0 %v1831
      %v1912 = vpop.f32.mrf.mxu0
      %v1913 = vadd.f32 0.0, %v1912
      %v1914 = vpop.f32.mrf.mxu0
      %v1915 = vpop.f32.mrf.mxu0
      %v1916 = vadd.f32 0.0, %v1915
      %v1917 = vpop.f32.mrf.mxu0
      %1918 = vmatprep.mubr.bf16.mxu0 0
      %1919 = vmatmul.mubr.bf16.gmra.mxu0 %v1834
      %v1920 = vpop.f32.mrf.mxu0
      %v1921 = vadd.f32 0.0, %v1920
      %v1922 = vpop.f32.mrf.mxu0
      %v1923 = vpop.f32.mrf.mxu0
      %v1924 = vadd.f32 0.0, %v1923
      %v1925 = vpop.f32.mrf.mxu0
      %1926 = vmatprep.mubr.bf16.mxu0 0
      %1927 = vmatmul.mubr.bf16.gmra.mxu0 %v1837
      %v1928 = vpop.f32.mrf.mxu0
      %v1929 = vadd.f32 0.0, %v1928
      %v1930 = vpop.f32.mrf.mxu0
      %v1931 = vpop.f32.mrf.mxu0
      %v1932 = vadd.f32 0.0, %v1931
      %v1933 = vpop.f32.mrf.mxu0
      %1934 = vmatprep.mubr.bf16.mxu0 0
      %1935 = vmatmul.mubr.bf16.gmra.mxu0 %v1840
      %v1936 = vpop.f32.mrf.mxu0
      %v1937 = vadd.f32 0.0, %v1936
      %v1938 = vpop.f32.mrf.mxu0
      %v1939 = vpop.f32.mrf.mxu0
      %v1940 = vadd.f32 0.0, %v1939
      %v1941 = vpop.f32.mrf.mxu0
      %1942 = vmatprep.mubr.bf16.mxu0 0
      %1943 = vmatmul.mubr.bf16.gmra.mxu0 %v1843
      %v1944 = vpop.f32.mrf.mxu0
      %v1945 = vadd.f32 0.0, %v1944
      %v1946 = vpop.f32.mrf.mxu0
      %v1947 = vpop.f32.mrf.mxu0
      %v1948 = vadd.f32 0.0, %v1947
      %v1949 = vpop.f32.mrf.mxu0
      %1950 = vmatprep.mubr.bf16.mxu0 0
      %1951 = vmatmul.mubr.bf16.gmra.mxu0 %v1846
      %v1952 = vpop.f32.mrf.mxu0
      %v1953 = vadd.f32 0.0, %v1952
      %v1954 = vpop.f32.mrf.mxu0
      %v1955 = vpop.f32.mrf.mxu0
      %v1956 = vadd.f32 0.0, %v1955
      %v1957 = vpop.f32.mrf.mxu0
      %1958 = vmatprep.mubr.bf16.mxu0 0
      %1959 = vmatmul.mubr.bf16.gmra.mxu0 %v1849
      %v1960 = vpop.f32.mrf.mxu0
      %v1961 = vadd.f32 0.0, %v1960
      %v1962 = vpop.f32.mrf.mxu0
      %v1963 = vpop.f32.mrf.mxu0
      %v1964 = vadd.f32 0.0, %v1963
      %v1965 = vpop.f32.mrf.mxu0
      %1966 = vmatprep.mubr.bf16.mxu0 0
      %1967 = vmatmul.mubr.bf16.gmra.mxu0 %v1852
      %v1968 = vpop.f32.mrf.mxu0
      %v1969 = vadd.f32 0.0, %v1968
      %v1970 = vpop.f32.mrf.mxu0
      %v1971 = vpop.f32.mrf.mxu0
      %v1972 = vadd.f32 0.0, %v1971
      %v1973 = vpop.f32.mrf.mxu0
      %1974 = vmatprep.mubr.bf16.mxu0 0
      %1975 = vmatmul.mubr.bf16.gmra.mxu0 %v1855
      %v1976 = vpop.f32.mrf.mxu0
      %v1977 = vadd.f32 0.0, %v1976
      %v1978 = vpop.f32.mrf.mxu0
      %v1979 = vpop.f32.mrf.mxu0
      %v1980 = vadd.f32 0.0, %v1979
      %v1981 = vpop.f32.mrf.mxu0
      %1982 = vmatprep.mubr.bf16.mxu0 0
      %1983 = vmatmul.mubr.bf16.gmra.mxu0 %v1858
      %v1984 = vpop.f32.mrf.mxu0
      %v1985 = vadd.f32 0.0, %v1984
      %v1986 = vpop.f32.mrf.mxu0
      %v1987 = vpop.f32.mrf.mxu0
      %v1988 = vadd.f32 0.0, %v1987
      %v1989 = vpop.f32.mrf.mxu0
      %1990 = vmatprep.mubr.bf16.mxu0 0
      %1991 = vmatmul.mubr.bf16.gmra.mxu0 %v1861
      %v1992 = vpop.f32.mrf.mxu0
      %v1993 = vadd.f32 0.0, %v1992
      %v1994 = vpop.f32.mrf.mxu0
      %v1995 = vpop.f32.mrf.mxu0
      %v1996 = vadd.f32 0.0, %v1995
      %v1997 = vpop.f32.mrf.mxu0
      %1998 = vmatprep.mubr.bf16.mxu0 0
      %1999 = vmatmul.mubr.bf16.gmra.mxu0 %v1864
      %v2000 = vpop.f32.mrf.mxu0
      %v2001 = vadd.f32 0.0, %v2000
      %v2002 = vpop.f32.mrf.mxu0
      %v2003 = vpop.f32.mrf.mxu0
      %v2004 = vadd.f32 0.0, %v2003
      %v2005 = vpop.f32.mrf.mxu0
      %2006 = vmatprep.mubr.bf16.mxu0 0
      %2007 = vmatmul.mubr.bf16.gmra.mxu0 %v1867
      %v2008 = vpop.f32.mrf.mxu0
      %v2009 = vadd.f32 0.0, %v2008
      %v2010 = vpop.f32.mrf.mxu0
      %v2011 = vpop.f32.mrf.mxu0
      %v2012 = vadd.f32 0.0, %v2011
      %v2013 = vpop.f32.mrf.mxu0
      %2014 = vmatprep.mubr.bf16.mxu0 0
      %2015 = vmatmul.mubr.bf16.gmra.mxu0 %v1870
      %v2016 = vpop.f32.mrf.mxu0
      %v2017 = vadd.f32 0.0, %v2016
      %v2018 = vpop.f32.mrf.mxu0
      %v2019 = vpop.f32.mrf.mxu0
      %v2020 = vadd.f32 0.0, %v2019
      %v2021 = vpop.f32.mrf.mxu0
      %2022 = vmatprep.mubr.bf16.mxu0 0
      %2023 = vmatmul.mubr.bf16.gmra.mxu0 %v1873
      %v2024 = vpop.f32.mrf.mxu0
      %v2025 = vadd.f32 0.0, %v2024
      %v2026 = vpop.f32.mrf.mxu0
      %v2027 = vpop.f32.mrf.mxu0
      %v2028 = vadd.f32 0.0, %v2027
      %v2029 = vpop.f32.mrf.mxu0
      %2030 = vmatprep.mubr.bf16.mxu0 0
      %2031 = vmatmul.mubr.bf16.gmra.mxu0 %v1876
      %v2032 = vpop.f32.mrf.mxu0
      %v2033 = vadd.f32 0.0, %v2032
      %v2034 = vpop.f32.mrf.mxu0
      %v2035 = vpop.f32.mrf.mxu0
      %v2036 = vadd.f32 0.0, %v2035
      %v2037 = vpop.f32.mrf.mxu0
      %2038 = vdwg.mxu0
      %s2039 = scalar_lea.vmem %s3, 96
      %v2040 = vld [vmem:[%s2039] sm:$0xf]
      %v2041 = vld [vmem:[%s2039 + $0x4] sm:$0xf]
      %v2042 = vld [vmem:[%s2039 + $0x8] sm:$0xf]
      %v2043 = vld [vmem:[%s2039 + $0xc] sm:$0xf]
      %v2044 = vld [vmem:[%s2039 + $0x10] sm:$0xf]
      %v2045 = vld [vmem:[%s2039 + $0x14] sm:$0xf]
      %v2046 = vld [vmem:[%s2039 + $0x18] sm:$0xf]
      %v2047 = vld [vmem:[%s2039 + $0x1c] sm:$0xf]
      %v2048 = vld [vmem:[%s2039 + $0x20] sm:$0xf]
      %v2049 = vld [vmem:[%s2039 + $0x24] sm:$0xf]
      %v2050 = vld [vmem:[%s2039 + $0x28] sm:$0xf]
      %v2051 = vld [vmem:[%s2039 + $0x2c] sm:$0xf]
      %v2064 = vunpack.c.l.b16 %v2040
      %v2065 = vunpack.c.l.b16 %v2041
      %v2066 = vunpack.c.l.b16 %v2042
      %v2067 = vunpack.c.l.b16 %v2043
      %v2068 = vunpack.c.l.b16 %v2044
      %v2069 = vunpack.c.l.b16 %v2045
      %v2070 = vunpack.c.l.b16 %v2046
      %v2071 = vunpack.c.l.b16 %v2047
      %v2072 = vunpack.c.l.b16 %v2048
      %v2073 = vunpack.c.l.b16 %v2049
      %v2074 = vunpack.c.l.b16 %v2050
      %v2075 = vunpack.c.l.b16 %v2051
      %v2076 = vpack.c.b16 %v2065, %v2064
      %v2077 = vpack.c.b16 %v2067, %v2066
      %v2078 = vpack.c.b16 %v2069, %v2068
      %v2079 = vpack.c.b16 %v2071, %v2070
      %v2080 = vpack.c.b16 %v2073, %v2072
      %v2081 = vpack.c.b16 %v2075, %v2074
      %2088 = vmatprep.subr.bf16.mxu0 0
      %2089 = vmatpush1.bf16.msra.mxu0 0
      %2090 = vmatprep.subr.bf16.mxu0 0
      %2091 = vmatpush1.bf16.msra.mxu0 0
      %2092 = vmatprep.subr.bf16.mxu0 0
      %2093 = vmatpush1.bf16.msra.mxu0 %v2081
      %2094 = vmatprep.subr.bf16.mxu0 0
      %2095 = vmatpush1.bf16.msra.mxu0 %v2080
      %2096 = vmatprep.subr.bf16.mxu0 0
      %2097 = vmatpush1.bf16.msra.mxu0 %v2079
      %2098 = vmatprep.subr.bf16.mxu0 0
      %2099 = vmatpush1.bf16.msra.mxu0 %v2078
      %2100 = vmatprep.subr.bf16.mxu0 0
      %2101 = vmatpush1.bf16.msra.mxu0 %v2077
      %2102 = vmatprep.subr.bf16.mxu0 0
      %2103 = vmatpush1.bf16.msra.mxu0 %v2076
      %2104 = vmatprep.subr.bf16.mxu0 0
      %2105 = vmatpush2.bf16.msra.mxu0 0
      %2106 = vmatprep.subr.bf16.mxu0 0
      %2107 = vmatpush2.bf16.msra.mxu0 0
      %2108 = vmatprep.subr.bf16.mxu0 0
      %2109 = vmatpush2.bf16.msra.mxu0 0
      %2110 = vmatprep.subr.bf16.mxu0 0
      %2111 = vmatpush2.bf16.msra.mxu0 0
      %2112 = vmatprep.subr.bf16.mxu0 0
      %2113 = vmatpush2.bf16.msra.mxu0 0
      %2114 = vmatprep.subr.bf16.mxu0 0
      %2115 = vmatpush2.bf16.msra.mxu0 0
      %2116 = vmatprep.subr.bf16.mxu0 0
      %2117 = vmatpush2.bf16.msra.mxu0 0
      %2118 = vmatprep.subr.bf16.mxu0 0
      %2119 = vmatpush2.bf16.msra.mxu0 0
      %2120 = vmatprep.mubr.bf16.mxu0 0
      %2121 = vmatmul.mubr.bf16.gmra.mxu0 %v1831
      %v2122 = vpop.f32.mrf.mxu0
      %v2123 = vadd.f32 0.0, %v2122
      %v2124 = vpop.f32.mrf.mxu0
      %v2125 = vpop.f32.mrf.mxu0
      %v2126 = vadd.f32 0.0, %v2125
      %v2127 = vpop.f32.mrf.mxu0
      %2128 = vmatprep.mubr.bf16.mxu0 0
      %2129 = vmatmul.mubr.bf16.gmra.mxu0 %v1834
      %v2130 = vpop.f32.mrf.mxu0
      %v2131 = vadd.f32 0.0, %v2130
      %v2132 = vpop.f32.mrf.mxu0
      %v2133 = vpop.f32.mrf.mxu0
      %v2134 = vadd.f32 0.0, %v2133
      %v2135 = vpop.f32.mrf.mxu0
      %2136 = vmatprep.mubr.bf16.mxu0 0
      %2137 = vmatmul.mubr.bf16.gmra.mxu0 %v1837
      %v2138 = vpop.f32.mrf.mxu0
      %v2139 = vadd.f32 0.0, %v2138
      %v2140 = vpop.f32.mrf.mxu0
      %v2141 = vpop.f32.mrf.mxu0
      %v2142 = vadd.f32 0.0, %v2141
      %v2143 = vpop.f32.mrf.mxu0
      %2144 = vmatprep.mubr.bf16.mxu0 0
      %2145 = vmatmul.mubr.bf16.gmra.mxu0 %v1840
      %v2146 = vpop.f32.mrf.mxu0
      %v2147 = vadd.f32 0.0, %v2146
      %v2148 = vpop.f32.mrf.mxu0
      %v2149 = vpop.f32.mrf.mxu0
      %v2150 = vadd.f32 0.0, %v2149
      %v2151 = vpop.f32.mrf.mxu0
      %2152 = vmatprep.mubr.bf16.mxu0 0
      %2153 = vmatmul.mubr.bf16.gmra.mxu0 %v1843
      %v2154 = vpop.f32.mrf.mxu0
      %v2155 = vadd.f32 0.0, %v2154
      %v2156 = vpop.f32.mrf.mxu0
      %v2157 = vpop.f32.mrf.mxu0
      %v2158 = vadd.f32 0.0, %v2157
      %v2159 = vpop.f32.mrf.mxu0
      %2160 = vmatprep.mubr.bf16.mxu0 0
      %2161 = vmatmul.mubr.bf16.gmra.mxu0 %v1846
      %v2162 = vpop.f32.mrf.mxu0
      %v2163 = vadd.f32 0.0, %v2162
      %v2164 = vpop.f32.mrf.mxu0
      %v2165 = vpop.f32.mrf.mxu0
      %v2166 = vadd.f32 0.0, %v2165
      %v2167 = vpop.f32.mrf.mxu0
      %2168 = vmatprep.mubr.bf16.mxu0 0
      %2169 = vmatmul.mubr.bf16.gmra.mxu0 %v1849
      %v2170 = vpop.f32.mrf.mxu0
      %v2171 = vadd.f32 0.0, %v2170
      %v2172 = vpop.f32.mrf.mxu0
      %v2173 = vpop.f32.mrf.mxu0
      %v2174 = vadd.f32 0.0, %v2173
      %v2175 = vpop.f32.mrf.mxu0
      %2176 = vmatprep.mubr.bf16.mxu0 0
      %2177 = vmatmul.mubr.bf16.gmra.mxu0 %v1852
      %v2178 = vpop.f32.mrf.mxu0
      %v2179 = vadd.f32 0.0, %v2178
      %v2180 = vpop.f32.mrf.mxu0
      %v2181 = vpop.f32.mrf.mxu0
      %v2182 = vadd.f32 0.0, %v2181
      %v2183 = vpop.f32.mrf.mxu0
      %2184 = vmatprep.mubr.bf16.mxu0 0
      %2185 = vmatmul.mubr.bf16.gmra.mxu0 %v1855
      %v2186 = vpop.f32.mrf.mxu0
      %v2187 = vadd.f32 0.0, %v2186
      %v2188 = vpop.f32.mrf.mxu0
      %v2189 = vpop.f32.mrf.mxu0
      %v2190 = vadd.f32 0.0, %v2189
      %v2191 = vpop.f32.mrf.mxu0
      %2192 = vmatprep.mubr.bf16.mxu0 0
      %2193 = vmatmul.mubr.bf16.gmra.mxu0 %v1858
      %v2194 = vpop.f32.mrf.mxu0
      %v2195 = vadd.f32 0.0, %v2194
      %v2196 = vpop.f32.mrf.mxu0
      %v2197 = vpop.f32.mrf.mxu0
      %v2198 = vadd.f32 0.0, %v2197
      %v2199 = vpop.f32.mrf.mxu0
      %2200 = vmatprep.mubr.bf16.mxu0 0
      %2201 = vmatmul.mubr.bf16.gmra.mxu0 %v1861
      %v2202 = vpop.f32.mrf.mxu0
      %v2203 = vadd.f32 0.0, %v2202
      %v2204 = vpop.f32.mrf.mxu0
      %v2205 = vpop.f32.mrf.mxu0
      %v2206 = vadd.f32 0.0, %v2205
      %v2207 = vpop.f32.mrf.mxu0
      %2208 = vmatprep.mubr.bf16.mxu0 0
      %2209 = vmatmul.mubr.bf16.gmra.mxu0 %v1864
      %v2210 = vpop.f32.mrf.mxu0
      %v2211 = vadd.f32 0.0, %v2210
      %v2212 = vpop.f32.mrf.mxu0
      %v2213 = vpop.f32.mrf.mxu0
      %v2214 = vadd.f32 0.0, %v2213
      %v2215 = vpop.f32.mrf.mxu0
      %2216 = vmatprep.mubr.bf16.mxu0 0
      %2217 = vmatmul.mubr.bf16.gmra.mxu0 %v1867
      %v2218 = vpop.f32.mrf.mxu0
      %v2219 = vadd.f32 0.0, %v2218
      %v2220 = vpop.f32.mrf.mxu0
      %v2221 = vpop.f32.mrf.mxu0
      %v2222 = vadd.f32 0.0, %v2221
      %v2223 = vpop.f32.mrf.mxu0
      %2224 = vmatprep.mubr.bf16.mxu0 0
      %2225 = vmatmul.mubr.bf16.gmra.mxu0 %v1870
      %v2226 = vpop.f32.mrf.mxu0
      %v2227 = vadd.f32 0.0, %v2226
      %v2228 = vpop.f32.mrf.mxu0
      %v2229 = vpop.f32.mrf.mxu0
      %v2230 = vadd.f32 0.0, %v2229
      %v2231 = vpop.f32.mrf.mxu0
      %2232 = vmatprep.mubr.bf16.mxu0 0
      %2233 = vmatmul.mubr.bf16.gmra.mxu0 %v1873
      %v2234 = vpop.f32.mrf.mxu0
      %v2235 = vadd.f32 0.0, %v2234
      %v2236 = vpop.f32.mrf.mxu0
      %v2237 = vpop.f32.mrf.mxu0
      %v2238 = vadd.f32 0.0, %v2237
      %v2239 = vpop.f32.mrf.mxu0
      %2240 = vmatprep.mubr.bf16.mxu0 0
      %2241 = vmatmul.mubr.bf16.gmra.mxu0 %v1876
      %v2242 = vpop.f32.mrf.mxu0
      %v2243 = vadd.f32 0.0, %v2242
      %v2244 = vpop.f32.mrf.mxu0
      %v2245 = vpop.f32.mrf.mxu0
      %v2246 = vadd.f32 0.0, %v2245
      %v2247 = vpop.f32.mrf.mxu0
      %2248 = vdwg.mxu0
      %v2250 = vlaneseq
      %v2251 = vshrl.u32 %v2250, 7
      %v2252 = vsub.s32 0, %v2251
      %v2253 = vrot.slane %v1236, %v2252
      %v2267 = vunpack.c.l.b16 %v1689
      %v2268 = vunpack.c.l.b16 %v1690
      %v2269 = vunpack.c.l.b16 %v1691
      %v2270 = vunpack.c.l.b16 %v1692
      %v2271 = vunpack.c.l.b16 %v1693
      %v2272 = vunpack.c.l.b16 %v1694
      %v2273 = vunpack.c.l.b16 %v1695
      %v2274 = vunpack.c.l.b16 %v1696
      %v2275 = vunpack.c.l.b16 %v1697
      %v2276 = vunpack.c.l.b16 %v1698
      %v2277 = vunpack.c.l.b16 %v1699
      %v2278 = vunpack.c.l.b16 %v1700
      %v2279 = vpack.c.b16 %v2268, %v2267
      %v2280 = vpack.c.b16 %v2270, %v2269
      %v2281 = vpack.c.b16 %v2272, %v2271
      %v2282 = vpack.c.b16 %v2274, %v2273
      %v2283 = vpack.c.b16 %v2276, %v2275
      %v2284 = vpack.c.b16 %v2278, %v2277
      %2291 = vmatprep.subr.bf16.mxu0 0
      %2292 = vmatpush1.bf16.msra.mxu0 0
      %2293 = vmatprep.subr.bf16.mxu0 0
      %2294 = vmatpush1.bf16.msra.mxu0 0
      %2295 = vmatprep.subr.bf16.mxu0 0
      %2296 = vmatpush1.bf16.msra.mxu0 %v2284
      %2297 = vmatprep.subr.bf16.mxu0 0
      %2298 = vmatpush1.bf16.msra.mxu0 %v2283
      %2299 = vmatprep.subr.bf16.mxu0 0
      %2300 = vmatpush1.bf16.msra.mxu0 %v2282
      %2301 = vmatprep.subr.bf16.mxu0 0
      %2302 = vmatpush1.bf16.msra.mxu0 %v2281
      %2303 = vmatprep.subr.bf16.mxu0 0
      %2304 = vmatpush1.bf16.msra.mxu0 %v2280
      %2305 = vmatprep.subr.bf16.mxu0 0
      %2306 = vmatpush1.bf16.msra.mxu0 %v2279
      %2307 = vmatprep.subr.bf16.mxu0 0
      %2308 = vmatpush2.bf16.msra.mxu0 0
      %2309 = vmatprep.subr.bf16.mxu0 0
      %2310 = vmatpush2.bf16.msra.mxu0 0
      %2311 = vmatprep.subr.bf16.mxu0 0
      %2312 = vmatpush2.bf16.msra.mxu0 0
      %2313 = vmatprep.subr.bf16.mxu0 0
      %2314 = vmatpush2.bf16.msra.mxu0 0
      %2315 = vmatprep.subr.bf16.mxu0 0
      %2316 = vmatpush2.bf16.msra.mxu0 0
      %2317 = vmatprep.subr.bf16.mxu0 0
      %2318 = vmatpush2.bf16.msra.mxu0 0
      %2319 = vmatprep.subr.bf16.mxu0 0
      %2320 = vmatpush2.bf16.msra.mxu0 0
      %2321 = vmatprep.subr.bf16.mxu0 0
      %2322 = vmatpush2.bf16.msra.mxu0 0
      %2323 = vmatprep.mubr.bf16.mxu0 0
      %2324 = vmatmul.mubr.bf16.gmra.mxu0 %v1831
      %v2325 = vpop.f32.mrf.mxu0
      %v2326 = vadd.f32 %v2253, %v2325
      %v2327 = vpop.f32.mrf.mxu0
      %v2328 = vpop.f32.mrf.mxu0
      %v2329 = vadd.f32 %v2253, %v2328
      %v2330 = vpop.f32.mrf.mxu0
      %2331 = vmatprep.mubr.bf16.mxu0 0
      %2332 = vmatmul.mubr.bf16.gmra.mxu0 %v1834
      %v2333 = vpop.f32.mrf.mxu0
      %v2334 = vadd.f32 %v2253, %v2333
      %v2335 = vpop.f32.mrf.mxu0
      %v2336 = vpop.f32.mrf.mxu0
      %v2337 = vadd.f32 %v2253, %v2336
      %v2338 = vpop.f32.mrf.mxu0
      %2339 = vmatprep.mubr.bf16.mxu0 0
      %2340 = vmatmul.mubr.bf16.gmra.mxu0 %v1837
      %v2341 = vpop.f32.mrf.mxu0
      %v2342 = vadd.f32 %v2253, %v2341
      %v2343 = vpop.f32.mrf.mxu0
      %v2344 = vpop.f32.mrf.mxu0
      %v2345 = vadd.f32 %v2253, %v2344
      %v2346 = vpop.f32.mrf.mxu0
      %2347 = vmatprep.mubr.bf16.mxu0 0
      %2348 = vmatmul.mubr.bf16.gmra.mxu0 %v1840
      %v2349 = vpop.f32.mrf.mxu0
      %v2350 = vadd.f32 %v2253, %v2349
      %v2351 = vpop.f32.mrf.mxu0
      %v2352 = vpop.f32.mrf.mxu0
      %v2353 = vadd.f32 %v2253, %v2352
      %v2354 = vpop.f32.mrf.mxu0
      %2355 = vmatprep.mubr.bf16.mxu0 0
      %2356 = vmatmul.mubr.bf16.gmra.mxu0 %v1843
      %v2357 = vpop.f32.mrf.mxu0
      %v2358 = vadd.f32 %v2253, %v2357
      %v2359 = vpop.f32.mrf.mxu0
      %v2360 = vpop.f32.mrf.mxu0
      %v2361 = vadd.f32 %v2253, %v2360
      %v2362 = vpop.f32.mrf.mxu0
      %2363 = vmatprep.mubr.bf16.mxu0 0
      %2364 = vmatmul.mubr.bf16.gmra.mxu0 %v1846
      %v2365 = vpop.f32.mrf.mxu0
      %v2366 = vadd.f32 %v2253, %v2365
      %v2367 = vpop.f32.mrf.mxu0
      %v2368 = vpop.f32.mrf.mxu0
      %v2369 = vadd.f32 %v2253, %v2368
      %v2370 = vpop.f32.mrf.mxu0
      %2371 = vmatprep.mubr.bf16.mxu0 0
      %2372 = vmatmul.mubr.bf16.gmra.mxu0 %v1849
      %v2373 = vpop.f32.mrf.mxu0
      %v2374 = vadd.f32 %v2253, %v2373
      %v2375 = vpop.f32.mrf.mxu0
      %v2376 = vpop.f32.mrf.mxu0
      %v2377 = vadd.f32 %v2253, %v2376
      %v2378 = vpop.f32.mrf.mxu0
      %2379 = vmatprep.mubr.bf16.mxu0 0
      %2380 = vmatmul.mubr.bf16.gmra.mxu0 %v1852
      %v2381 = vpop.f32.mrf.mxu0
      %v2382 = vadd.f32 %v2253, %v2381
      %v2383 = vpop.f32.mrf.mxu0
      %v2384 = vpop.f32.mrf.mxu0
      %v2385 = vadd.f32 %v2253, %v2384
      %v2386 = vpop.f32.mrf.mxu0
      %2387 = vmatprep.mubr.bf16.mxu0 0
      %2388 = vmatmul.mubr.bf16.gmra.mxu0 %v1855
      %v2389 = vpop.f32.mrf.mxu0
      %v2390 = vadd.f32 %v2253, %v2389
      %v2391 = vpop.f32.mrf.mxu0
      %v2392 = vpop.f32.mrf.mxu0
      %v2393 = vadd.f32 %v2253, %v2392
      %v2394 = vpop.f32.mrf.mxu0
      %2395 = vmatprep.mubr.bf16.mxu0 0
      %2396 = vmatmul.mubr.bf16.gmra.mxu0 %v1858
      %v2397 = vpop.f32.mrf.mxu0
      %v2398 = vadd.f32 %v2253, %v2397
      %v2399 = vpop.f32.mrf.mxu0
      %v2400 = vpop.f32.mrf.mxu0
      %v2401 = vadd.f32 %v2253, %v2400
      %v2402 = vpop.f32.mrf.mxu0
      %2403 = vmatprep.mubr.bf16.mxu0 0
      %2404 = vmatmul.mubr.bf16.gmra.mxu0 %v1861
      %v2405 = vpop.f32.mrf.mxu0
      %v2406 = vadd.f32 %v2253, %v2405
      %v2407 = vpop.f32.mrf.mxu0
      %v2408 = vpop.f32.mrf.mxu0
      %v2409 = vadd.f32 %v2253, %v2408
      %v2410 = vpop.f32.mrf.mxu0
      %2411 = vmatprep.mubr.bf16.mxu0 0
      %2412 = vmatmul.mubr.bf16.gmra.mxu0 %v1864
      %v2413 = vpop.f32.mrf.mxu0
      %v2414 = vadd.f32 %v2253, %v2413
      %v2415 = vpop.f32.mrf.mxu0
      %v2416 = vpop.f32.mrf.mxu0
      %v2417 = vadd.f32 %v2253, %v2416
      %v2418 = vpop.f32.mrf.mxu0
      %2419 = vmatprep.mubr.bf16.mxu0 0
      %2420 = vmatmul.mubr.bf16.gmra.mxu0 %v1867
      %v2421 = vpop.f32.mrf.mxu0
      %v2422 = vadd.f32 %v2253, %v2421
      %v2423 = vpop.f32.mrf.mxu0
      %v2424 = vpop.f32.mrf.mxu0
      %v2425 = vadd.f32 %v2253, %v2424
      %v2426 = vpop.f32.mrf.mxu0
      %2427 = vmatprep.mubr.bf16.mxu0 0
      %2428 = vmatmul.mubr.bf16.gmra.mxu0 %v1870
      %v2429 = vpop.f32.mrf.mxu0
      %v2430 = vadd.f32 %v2253, %v2429
      %v2431 = vpop.f32.mrf.mxu0
      %v2432 = vpop.f32.mrf.mxu0
      %v2433 = vadd.f32 %v2253, %v2432
      %v2434 = vpop.f32.mrf.mxu0
      %2435 = vmatprep.mubr.bf16.mxu0 0
      %2436 = vmatmul.mubr.bf16.gmra.mxu0 %v1873
      %v2437 = vpop.f32.mrf.mxu0
      %v2438 = vadd.f32 %v2253, %v2437
      %v2439 = vpop.f32.mrf.mxu0
      %v2440 = vpop.f32.mrf.mxu0
      %v2441 = vadd.f32 %v2253, %v2440
      %v2442 = vpop.f32.mrf.mxu0
      %2443 = vmatprep.mubr.bf16.mxu0 0
      %2444 = vmatmul.mubr.bf16.gmra.mxu0 %v1876
      %v2445 = vpop.f32.mrf.mxu0
      %v2446 = vadd.f32 %v2253, %v2445
      %v2447 = vpop.f32.mrf.mxu0
      %v2448 = vpop.f32.mrf.mxu0
      %v2449 = vadd.f32 %v2253, %v2448
      %v2450 = vpop.f32.mrf.mxu0
      %2451 = vdwg.mxu0
      %v2452 = vrot.slane %v1913, 7
      %v2453 = vrot.slane %v1916, 7
      %v2454 = vrot.slane %v1921, 7
      %v2455 = vrot.slane %v1924, 7
      %v2456 = vrot.slane %v1929, 7
      %v2457 = vrot.slane %v1932, 7
      %v2458 = vrot.slane %v1937, 7
      %v2459 = vrot.slane %v1940, 7
      %v2460 = vrot.slane %v1945, 7
      %v2461 = vrot.slane %v1948, 7
      %v2462 = vrot.slane %v1953, 7
      %v2463 = vrot.slane %v1956, 7
      %v2464 = vrot.slane %v1961, 7
      %v2465 = vrot.slane %v1964, 7
      %v2466 = vrot.slane %v1969, 7
      %v2467 = vrot.slane %v1972, 7
      %v2468 = vrot.slane %v1977, 7
      %v2469 = vrot.slane %v1980, 7
      %v2470 = vrot.slane %v1985, 7
      %v2471 = vrot.slane %v1988, 7
      %v2472 = vrot.slane %v1993, 7
      %v2473 = vrot.slane %v1996, 7
      %v2474 = vrot.slane %v2001, 7
      %v2475 = vrot.slane %v2004, 7
      %v2476 = vrot.slane %v2009, 7
      %v2477 = vrot.slane %v2012, 7
      %v2478 = vrot.slane %v2017, 7
      %v2479 = vrot.slane %v2020, 7
      %v2480 = vrot.slane %v2025, 7
      %v2481 = vrot.slane %v2028, 7
      %v2482 = vrot.slane %v2033, 7
      %v2483 = vrot.slane %v2036, 7
      %vm2484 = vcmp.lt.s32.totalorder %v263, 1
      %v2485 = vsel %vm2484, %v2482, %v2483
      %v2486 = vsel %vm2484, %v2481, %v2482
      %v2487 = vsel %vm2484, %v2480, %v2481
      %v2488 = vsel %vm2484, %v2479, %v2480
      %v2489 = vsel %vm2484, %v2478, %v2479
      %v2490 = vsel %vm2484, %v2477, %v2478
      %v2491 = vsel %vm2484, %v2476, %v2477
      %v2492 = vsel %vm2484, %v2475, %v2476
      %v2493 = vsel %vm2484, %v2474, %v2475
      %v2494 = vsel %vm2484, %v2473, %v2474
      %v2495 = vsel %vm2484, %v2472, %v2473
      %v2496 = vsel %vm2484, %v2471, %v2472
      %v2497 = vsel %vm2484, %v2470, %v2471
      %v2498 = vsel %vm2484, %v2469, %v2470
      %v2499 = vsel %vm2484, %v2468, %v2469
      %v2500 = vsel %vm2484, %v2467, %v2468
      %v2501 = vsel %vm2484, %v2466, %v2467
      %v2502 = vsel %vm2484, %v2465, %v2466
      %v2503 = vsel %vm2484, %v2464, %v2465
      %v2504 = vsel %vm2484, %v2463, %v2464
      %v2505 = vsel %vm2484, %v2462, %v2463
      %v2506 = vsel %vm2484, %v2461, %v2462
      %v2507 = vsel %vm2484, %v2460, %v2461
      %v2508 = vsel %vm2484, %v2459, %v2460
      %v2509 = vsel %vm2484, %v2458, %v2459
      %v2510 = vsel %vm2484, %v2457, %v2458
      %v2511 = vsel %vm2484, %v2456, %v2457
      %v2512 = vsel %vm2484, %v2455, %v2456
      %v2513 = vsel %vm2484, %v2454, %v2455
      %v2514 = vsel %vm2484, %v2453, %v2454
      %v2515 = vsel %vm2484, %v2452, %v2453
      %v2516 = vsel %vm2484, %v2483, %v2452
      %v2517 = vmul.f32 %v743, %v2516
      %v2518 = vmul.f32 %v744, %v2515
      %v2519 = vmul.f32 %v745, %v2514
      %v2520 = vmul.f32 %v746, %v2513
      %v2521 = vmul.f32 %v747, %v2512
      %v2522 = vmul.f32 %v748, %v2511
      %v2523 = vmul.f32 %v749, %v2510
      %v2524 = vmul.f32 %v750, %v2509
      %v2525 = vmul.f32 %v751, %v2508
      %v2526 = vmul.f32 %v752, %v2507
      %v2527 = vmul.f32 %v753, %v2506
      %v2528 = vmul.f32 %v754, %v2505
      %v2529 = vmul.f32 %v755, %v2504
      %v2530 = vmul.f32 %v756, %v2503
      %v2531 = vmul.f32 %v757, %v2502
      %v2532 = vmul.f32 %v758, %v2501
      %v2533 = vmul.f32 %v759, %v2500
      %v2534 = vmul.f32 %v760, %v2499
      %v2535 = vmul.f32 %v761, %v2498
      %v2536 = vmul.f32 %v762, %v2497
      %v2537 = vmul.f32 %v763, %v2496
      %v2538 = vmul.f32 %v764, %v2495
      %v2539 = vmul.f32 %v765, %v2494
      %v2540 = vmul.f32 %v766, %v2493
      %v2541 = vmul.f32 %v767, %v2492
      %v2542 = vmul.f32 %v768, %v2491
      %v2543 = vmul.f32 %v769, %v2490
      %v2544 = vmul.f32 %v770, %v2489
      %v2545 = vmul.f32 %v771, %v2488
      %v2546 = vmul.f32 %v772, %v2487
      %v2547 = vmul.f32 %v773, %v2486
      %v2548 = vmul.f32 %v774, %v2485
      %v2549 = vadd.f32 %v2326, %v2517
      %v2550 = vadd.f32 %v2329, %v2518
      %v2551 = vadd.f32 %v2334, %v2519
      %v2552 = vadd.f32 %v2337, %v2520
      %v2553 = vadd.f32 %v2342, %v2521
      %v2554 = vadd.f32 %v2345, %v2522
      %v2555 = vadd.f32 %v2350, %v2523
      %v2556 = vadd.f32 %v2353, %v2524
      %v2557 = vadd.f32 %v2358, %v2525
      %v2558 = vadd.f32 %v2361, %v2526
      %v2559 = vadd.f32 %v2366, %v2527
      %v2560 = vadd.f32 %v2369, %v2528
      %v2561 = vadd.f32 %v2374, %v2529
      %v2562 = vadd.f32 %v2377, %v2530
      %v2563 = vadd.f32 %v2382, %v2531
      %v2564 = vadd.f32 %v2385, %v2532
      %v2565 = vadd.f32 %v2390, %v2533
      %v2566 = vadd.f32 %v2393, %v2534
      %v2567 = vadd.f32 %v2398, %v2535
      %v2568 = vadd.f32 %v2401, %v2536
      %v2569 = vadd.f32 %v2406, %v2537
      %v2570 = vadd.f32 %v2409, %v2538
      %v2571 = vadd.f32 %v2414, %v2539
      %v2572 = vadd.f32 %v2417, %v2540
      %v2573 = vadd.f32 %v2422, %v2541
      %v2574 = vadd.f32 %v2425, %v2542
      %v2575 = vadd.f32 %v2430, %v2543
      %v2576 = vadd.f32 %v2433, %v2544
      %v2577 = vadd.f32 %v2438, %v2545
      %v2578 = vadd.f32 %v2441, %v2546
      %v2579 = vadd.f32 %v2446, %v2547
      %v2580 = vadd.f32 %v2449, %v2548
      %v2581 = vrot.slane %v2123, 1
      %v2582 = vrot.slane %v2126, 1
      %v2583 = vrot.slane %v2131, 1
      %v2584 = vrot.slane %v2134, 1
      %v2585 = vrot.slane %v2139, 1
      %v2586 = vrot.slane %v2142, 1
      %v2587 = vrot.slane %v2147, 1
      %v2588 = vrot.slane %v2150, 1
      %v2589 = vrot.slane %v2155, 1
      %v2590 = vrot.slane %v2158, 1
      %v2591 = vrot.slane %v2163, 1
      %v2592 = vrot.slane %v2166, 1
      %v2593 = vrot.slane %v2171, 1
      %v2594 = vrot.slane %v2174, 1
      %v2595 = vrot.slane %v2179, 1
      %v2596 = vrot.slane %v2182, 1
      %v2597 = vrot.slane %v2187, 1
      %v2598 = vrot.slane %v2190, 1
      %v2599 = vrot.slane %v2195, 1
      %v2600 = vrot.slane %v2198, 1
      %v2601 = vrot.slane %v2203, 1
      %v2602 = vrot.slane %v2206, 1
      %v2603 = vrot.slane %v2211, 1
      %v2604 = vrot.slane %v2214, 1
      %v2605 = vrot.slane %v2219, 1
      %v2606 = vrot.slane %v2222, 1
      %v2607 = vrot.slane %v2227, 1
      %v2608 = vrot.slane %v2230, 1
      %v2609 = vrot.slane %v2235, 1
      %v2610 = vrot.slane %v2238, 1
      %v2611 = vrot.slane %v2243, 1
      %v2612 = vrot.slane %v2246, 1
      %vm2613 = vcmp.lt.s32.totalorder %v263, 7
      %v2614 = vsel %vm2613, %v2611, %v2612
      %v2615 = vsel %vm2613, %v2610, %v2611
      %v2616 = vsel %vm2613, %v2609, %v2610
      %v2617 = vsel %vm2613, %v2608, %v2609
      %v2618 = vsel %vm2613, %v2607, %v2608
      %v2619 = vsel %vm2613, %v2606, %v2607
      %v2620 = vsel %vm2613, %v2605, %v2606
      %v2621 = vsel %vm2613, %v2604, %v2605
      %v2622 = vsel %vm2613, %v2603, %v2604
      %v2623 = vsel %vm2613, %v2602, %v2603
      %v2624 = vsel %vm2613, %v2601, %v2602
      %v2625 = vsel %vm2613, %v2600, %v2601
      %v2626 = vsel %vm2613, %v2599, %v2600
      %v2627 = vsel %vm2613, %v2598, %v2599
      %v2628 = vsel %vm2613, %v2597, %v2598
      %v2629 = vsel %vm2613, %v2596, %v2597
      %v2630 = vsel %vm2613, %v2595, %v2596
      %v2631 = vsel %vm2613, %v2594, %v2595
      %v2632 = vsel %vm2613, %v2593, %v2594
      %v2633 = vsel %vm2613, %v2592, %v2593
      %v2634 = vsel %vm2613, %v2591, %v2592
      %v2635 = vsel %vm2613, %v2590, %v2591
      %v2636 = vsel %vm2613, %v2589, %v2590
      %v2637 = vsel %vm2613, %v2588, %v2589
      %v2638 = vsel %vm2613, %v2587, %v2588
      %v2639 = vsel %vm2613, %v2586, %v2587
      %v2640 = vsel %vm2613, %v2585, %v2586
      %v2641 = vsel %vm2613, %v2584, %v2585
      %v2642 = vsel %vm2613, %v2583, %v2584
      %v2643 = vsel %vm2613, %v2582, %v2583
      %v2644 = vsel %vm2613, %v2581, %v2582
      %v2645 = vsel %vm2613, %v2612, %v2581
      %v2646 = vmul.f32 %v839, %v2644
      %v2647 = vmul.f32 %v840, %v2643
      %v2648 = vmul.f32 %v841, %v2642
      %v2649 = vmul.f32 %v842, %v2641
      %v2650 = vmul.f32 %v843, %v2640
      %v2651 = vmul.f32 %v844, %v2639
      %v2652 = vmul.f32 %v845, %v2638
      %v2653 = vmul.f32 %v846, %v2637
      %v2654 = vmul.f32 %v847, %v2636
      %v2655 = vmul.f32 %v848, %v2635
      %v2656 = vmul.f32 %v849, %v2634
      %v2657 = vmul.f32 %v850, %v2633
      %v2658 = vmul.f32 %v851, %v2632
      %v2659 = vmul.f32 %v852, %v2631
      %v2660 = vmul.f32 %v853, %v2630
      %v2661 = vmul.f32 %v854, %v2629
      %v2662 = vmul.f32 %v855, %v2628
      %v2663 = vmul.f32 %v856, %v2627
      %v2664 = vmul.f32 %v857, %v2626
      %v2665 = vmul.f32 %v858, %v2625
      %v2666 = vmul.f32 %v859, %v2624
      %v2667 = vmul.f32 %v860, %v2623
      %v2668 = vmul.f32 %v861, %v2622
      %v2669 = vmul.f32 %v862, %v2621
      %v2670 = vmul.f32 %v863, %v2620
      %v2671 = vmul.f32 %v864, %v2619
      %v2672 = vmul.f32 %v865, %v2618
      %v2673 = vmul.f32 %v866, %v2617
      %v2674 = vmul.f32 %v867, %v2616
      %v2675 = vmul.f32 %v868, %v2615
      %v2676 = vmul.f32 %v869, %v2614
      %v2677 = vmul.f32 %v870, %v2645
      %v2678 = vadd.f32 %v2549, %v2646
      %v2679 = vadd.f32 %v2550, %v2647
      %v2680 = vadd.f32 %v2551, %v2648
      %v2681 = vadd.f32 %v2552, %v2649
      %v2682 = vadd.f32 %v2553, %v2650
      %v2683 = vadd.f32 %v2554, %v2651
      %v2684 = vadd.f32 %v2555, %v2652
      %v2685 = vadd.f32 %v2556, %v2653
      %v2686 = vadd.f32 %v2557, %v2654
      %v2687 = vadd.f32 %v2558, %v2655
      %v2688 = vadd.f32 %v2559, %v2656
      %v2689 = vadd.f32 %v2560, %v2657
      %v2690 = vadd.f32 %v2561, %v2658
      %v2691 = vadd.f32 %v2562, %v2659
      %v2692 = vadd.f32 %v2563, %v2660
      %v2693 = vadd.f32 %v2564, %v2661
      %v2694 = vadd.f32 %v2565, %v2662
      %v2695 = vadd.f32 %v2566, %v2663
      %v2696 = vadd.f32 %v2567, %v2664
      %v2697 = vadd.f32 %v2568, %v2665
      %v2698 = vadd.f32 %v2569, %v2666
      %v2699 = vadd.f32 %v2570, %v2667
      %v2700 = vadd.f32 %v2571, %v2668
      %v2701 = vadd.f32 %v2572, %v2669
      %v2702 = vadd.f32 %v2573, %v2670
      %v2703 = vadd.f32 %v2574, %v2671
      %v2704 = vadd.f32 %v2575, %v2672
      %v2705 = vadd.f32 %v2576, %v2673
      %v2706 = vadd.f32 %v2577, %v2674
      %v2707 = vadd.f32 %v2578, %v2675
      %v2708 = vadd.f32 %v2579, %v2676
      %v2709 = vadd.f32 %v2580, %v2677
      %v2710 = vmax.f32 %v2678, 0.0
      %v2711 = vmax.f32 %v2679, 0.0
      %v2712 = vmax.f32 %v2680, 0.0
      %v2713 = vmax.f32 %v2681, 0.0
      %v2714 = vmax.f32 %v2682, 0.0
      %v2715 = vmax.f32 %v2683, 0.0
      %v2716 = vmax.f32 %v2684, 0.0
      %v2717 = vmax.f32 %v2685, 0.0
      %v2718 = vmax.f32 %v2686, 0.0
      %v2719 = vmax.f32 %v2687, 0.0
      %v2720 = vmax.f32 %v2688, 0.0
      %v2721 = vmax.f32 %v2689, 0.0
      %v2722 = vmax.f32 %v2690, 0.0
      %v2723 = vmax.f32 %v2691, 0.0
      %v2724 = vmax.f32 %v2692, 0.0
      %v2725 = vmax.f32 %v2693, 0.0
      %v2726 = vmax.f32 %v2694, 0.0
      %v2727 = vmax.f32 %v2695, 0.0
      %v2728 = vmax.f32 %v2696, 0.0
      %v2729 = vmax.f32 %v2697, 0.0
      %v2730 = vmax.f32 %v2698, 0.0
      %v2731 = vmax.f32 %v2699, 0.0
      %v2732 = vmax.f32 %v2700, 0.0
      %v2733 = vmax.f32 %v2701, 0.0
      %v2734 = vmax.f32 %v2702, 0.0
      %v2735 = vmax.f32 %v2703, 0.0
      %v2736 = vmax.f32 %v2704, 0.0
      %v2737 = vmax.f32 %v2705, 0.0
      %v2738 = vmax.f32 %v2706, 0.0
      %v2739 = vmax.f32 %v2707, 0.0
      %v2740 = vmax.f32 %v2708, 0.0
      %v2741 = vmax.f32 %v2709, 0.0
      %v2742 = vpack.c.bf16 %v2711, %v2710
      %v2743 = vpack.c.bf16 %v2713, %v2712
      %v2744 = vpack.c.bf16 %v2715, %v2714
      %v2745 = vpack.c.bf16 %v2717, %v2716
      %v2746 = vpack.c.bf16 %v2719, %v2718
      %v2747 = vpack.c.bf16 %v2721, %v2720
      %v2748 = vpack.c.bf16 %v2723, %v2722
      %v2749 = vpack.c.bf16 %v2725, %v2724
      %v2750 = vpack.c.bf16 %v2727, %v2726
      %v2751 = vpack.c.bf16 %v2729, %v2728
      %v2752 = vpack.c.bf16 %v2731, %v2730
      %v2753 = vpack.c.bf16 %v2733, %v2732
      %v2754 = vpack.c.bf16 %v2735, %v2734
      %v2755 = vpack.c.bf16 %v2737, %v2736
      %v2756 = vpack.c.bf16 %v2739, %v2738
      %v2757 = vpack.c.bf16 %v2741, %v2740
      %v2774 = vunpack.c.l.b16 %v2742
      %v2775 = vunpack.c.h.b16 %v2742
      %v2776 = vunpack.c.l.b16 %v2743
      %v2777 = vunpack.c.h.b16 %v2743
      %v2778 = vunpack.c.l.b16 %v2744
      %v2779 = vunpack.c.h.b16 %v2744
      %v2780 = vunpack.c.l.b16 %v2745
      %v2781 = vunpack.c.h.b16 %v2745
      %v2782 = vunpack.c.l.b16 %v2746
      %v2783 = vunpack.c.h.b16 %v2746
      %v2784 = vunpack.c.l.b16 %v2747
      %v2785 = vunpack.c.h.b16 %v2747
      %v2786 = vunpack.c.l.b16 %v2748
      %v2787 = vunpack.c.h.b16 %v2748
      %v2788 = vunpack.c.l.b16 %v2749
      %v2789 = vunpack.c.h.b16 %v2749
      %v2790 = vunpack.c.l.b16 %v2750
      %v2791 = vunpack.c.h.b16 %v2750
      %v2792 = vunpack.c.l.b16 %v2751
      %v2793 = vunpack.c.h.b16 %v2751
      %v2794 = vunpack.c.l.b16 %v2752
      %v2795 = vunpack.c.h.b16 %v2752
      %v2796 = vunpack.c.l.b16 %v2753
      %v2797 = vunpack.c.h.b16 %v2753
      %v2798 = vunpack.c.l.b16 %v2754
      %v2799 = vunpack.c.h.b16 %v2754
      %v2800 = vunpack.c.l.b16 %v2755
      %v2801 = vunpack.c.h.b16 %v2755
      %v2802 = vunpack.c.l.b16 %v2756
      %v2803 = vunpack.c.h.b16 %v2756
      %v2804 = vunpack.c.l.b16 %v2757
      %v2805 = vunpack.c.h.b16 %v2757
      %v2806 = vpack.c.b16 %v2774, %v2774
      %v2807 = vpack.c.b16 %v2775, %v2775
      %v2808 = vpack.c.b16 %v2776, %v2776
      %v2809 = vpack.c.b16 %v2777, %v2777
      %v2810 = vpack.c.b16 %v2778, %v2778
      %v2811 = vpack.c.b16 %v2779, %v2779
      %v2812 = vpack.c.b16 %v2780, %v2780
      %v2813 = vpack.c.b16 %v2781, %v2781
      %v2814 = vpack.c.b16 %v2782, %v2782
      %v2815 = vpack.c.b16 %v2783, %v2783
      %v2816 = vpack.c.b16 %v2784, %v2784
      %v2817 = vpack.c.b16 %v2785, %v2785
      %v2818 = vpack.c.b16 %v2786, %v2786
      %v2819 = vpack.c.b16 %v2787, %v2787
      %v2820 = vpack.c.b16 %v2788, %v2788
      %v2821 = vpack.c.b16 %v2789, %v2789
      %v2822 = vpack.c.b16 %v2790, %v2790
      %v2823 = vpack.c.b16 %v2791, %v2791
      %v2824 = vpack.c.b16 %v2792, %v2792
      %v2825 = vpack.c.b16 %v2793, %v2793
      %v2826 = vpack.c.b16 %v2794, %v2794
      %v2827 = vpack.c.b16 %v2795, %v2795
      %v2828 = vpack.c.b16 %v2796, %v2796
      %v2829 = vpack.c.b16 %v2797, %v2797
      %v2830 = vpack.c.b16 %v2798, %v2798
      %v2831 = vpack.c.b16 %v2799, %v2799
      %v2832 = vpack.c.b16 %v2800, %v2800
      %v2833 = vpack.c.b16 %v2801, %v2801
      %v2834 = vpack.c.b16 %v2802, %v2802
      %v2835 = vpack.c.b16 %v2803, %v2803
      %v2836 = vpack.c.b16 %v2804, %v2804
      %v2837 = vpack.c.b16 %v2805, %v2805
      %2870 = vst.msk [vmem:[#allocation2 + $0x10] sm:$0xf] %vm1365, %v2806
      %2871 = vst.msk [vmem:[#allocation2 + $0x14] sm:$0xf] %vm1365, %v2807
      %2872 = vst.msk [vmem:[#allocation2 + $0x18] sm:$0xf] %vm1365, %v2808
      %2873 = vst.msk [vmem:[#allocation2 + $0x1c] sm:$0xf] %vm1365, %v2809
      %2874 = vst.msk [vmem:[#allocation2 + $0x20] sm:$0xf] %vm1365, %v2810
      %2875 = vst.msk [vmem:[#allocation2 + $0x24] sm:$0xf] %vm1365, %v2811
      %2876 = vst.msk [vmem:[#allocation2 + $0x28] sm:$0xf] %vm1365, %v2812
      %2877 = vst.msk [vmem:[#allocation2 + $0x2c] sm:$0xf] %vm1365, %v2813
      %2878 = vst.msk [vmem:[#allocation2 + $0x30] sm:$0xf] %vm1365, %v2814
      %2879 = vst.msk [vmem:[#allocation2 + $0x34] sm:$0xf] %vm1365, %v2815
      %2880 = vst.msk [vmem:[#allocation2 + $0x38] sm:$0xf] %vm1365, %v2816
      %2881 = vst.msk [vmem:[#allocation2 + $0x3c] sm:$0xf] %vm1365, %v2817
      %2882 = vst.msk [vmem:[#allocation2 + $0x40] sm:$0xf] %vm1365, %v2818
      %2883 = vst.msk [vmem:[#allocation2 + $0x44] sm:$0xf] %vm1365, %v2819
      %2884 = vst.msk [vmem:[#allocation2 + $0x48] sm:$0xf] %vm1365, %v2820
      %2885 = vst.msk [vmem:[#allocation2 + $0x4c] sm:$0xf] %vm1365, %v2821
      %2886 = vst.msk [vmem:[#allocation2 + $0x50] sm:$0xf] %vm1365, %v2822
      %2887 = vst.msk [vmem:[#allocation2 + $0x54] sm:$0xf] %vm1365, %v2823
      %2888 = vst.msk [vmem:[#allocation2 + $0x58] sm:$0xf] %vm1365, %v2824
      %2889 = vst.msk [vmem:[#allocation2 + $0x5c] sm:$0xf] %vm1365, %v2825
      %2890 = vst.msk [vmem:[#allocation2 + $0x60] sm:$0xf] %vm1365, %v2826
      %2891 = vst.msk [vmem:[#allocation2 + $0x64] sm:$0xf] %vm1365, %v2827
      %2892 = vst.msk [vmem:[#allocation2 + $0x68] sm:$0xf] %vm1365, %v2828
      %2893 = vst.msk [vmem:[#allocation2 + $0x6c] sm:$0xf] %vm1365, %v2829
      %2894 = vst.msk [vmem:[#allocation2 + $0x70] sm:$0xf] %vm1365, %v2830
      %2895 = vst.msk [vmem:[#allocation2 + $0x74] sm:$0xf] %vm1365, %v2831
      %2896 = vst.msk [vmem:[#allocation2 + $0x78] sm:$0xf] %vm1365, %v2832
      %2897 = vst.msk [vmem:[#allocation2 + $0x7c] sm:$0xf] %vm1365, %v2833
      %2898 = vst.msk [vmem:[#allocation2 + $0x80] sm:$0xf] %vm1365, %v2834
      %2899 = vst.msk [vmem:[#allocation2 + $0x84] sm:$0xf] %vm1365, %v2835
      %2900 = vst.msk [vmem:[#allocation2 + $0x88] sm:$0xf] %vm1365, %v2836
      %2901 = vst.msk [vmem:[#allocation2 + $0x8c] sm:$0xf] %vm1365, %v2837
      %2902 = vrot.lane.b32.xlu0 %v2806, 32
      %v2903 = vpop.permute.xlu0 %2902
      %2904 = vrot.lane.b32.xlu0 %v2807, 32
      %v2905 = vpop.permute.xlu0 %2904
      %2906 = vrot.lane.b32.xlu0 %v2808, 32
      %v2907 = vpop.permute.xlu0 %2906
      %2908 = vrot.lane.b32.xlu0 %v2809, 32
      %v2909 = vpop.permute.xlu0 %2908
      %2910 = vrot.lane.b32.xlu0 %v2810, 32
      %v2911 = vpop.permute.xlu0 %2910
      %2912 = vrot.lane.b32.xlu0 %v2811, 32
      %v2913 = vpop.permute.xlu0 %2912
      %2914 = vrot.lane.b32.xlu0 %v2812, 32
      %v2915 = vpop.permute.xlu0 %2914
      %2916 = vrot.lane.b32.xlu0 %v2813, 32
      %v2917 = vpop.permute.xlu0 %2916
      %2918 = vrot.lane.b32.xlu0 %v2814, 32
      %v2919 = vpop.permute.xlu0 %2918
      %2920 = vrot.lane.b32.xlu0 %v2815, 32
      %v2921 = vpop.permute.xlu0 %2920
      %2922 = vrot.lane.b32.xlu0 %v2816, 32
      %v2923 = vpop.permute.xlu0 %2922
      %2924 = vrot.lane.b32.xlu0 %v2817, 32
      %v2925 = vpop.permute.xlu0 %2924
      %2926 = vrot.lane.b32.xlu0 %v2818, 32
      %v2927 = vpop.permute.xlu0 %2926
      %2928 = vrot.lane.b32.xlu0 %v2819, 32
      %v2929 = vpop.permute.xlu0 %2928
      %2930 = vrot.lane.b32.xlu0 %v2820, 32
      %v2931 = vpop.permute.xlu0 %2930
      %2932 = vrot.lane.b32.xlu0 %v2821, 32
      %v2933 = vpop.permute.xlu0 %2932
      %2934 = vrot.lane.b32.xlu0 %v2822, 32
      %v2935 = vpop.permute.xlu0 %2934
      %2936 = vrot.lane.b32.xlu0 %v2823, 32
      %v2937 = vpop.permute.xlu0 %2936
      %2938 = vrot.lane.b32.xlu0 %v2824, 32
      %v2939 = vpop.permute.xlu0 %2938
      %2940 = vrot.lane.b32.xlu0 %v2825, 32
      %v2941 = vpop.permute.xlu0 %2940
      %2942 = vrot.lane.b32.xlu0 %v2826, 32
      %v2943 = vpop.permute.xlu0 %2942
      %2944 = vrot.lane.b32.xlu0 %v2827, 32
      %v2945 = vpop.permute.xlu0 %2944
      %2946 = vrot.lane.b32.xlu0 %v2828, 32
      %v2947 = vpop.permute.xlu0 %2946
      %2948 = vrot.lane.b32.xlu0 %v2829, 32
      %v2949 = vpop.permute.xlu0 %2948
      %2950 = vrot.lane.b32.xlu0 %v2830, 32
      %v2951 = vpop.permute.xlu0 %2950
      %2952 = vrot.lane.b32.xlu0 %v2831, 32
      %v2953 = vpop.permute.xlu0 %2952
      %2954 = vrot.lane.b32.xlu0 %v2832, 32
      %v2955 = vpop.permute.xlu0 %2954
      %2956 = vrot.lane.b32.xlu0 %v2833, 32
      %v2957 = vpop.permute.xlu0 %2956
      %2958 = vrot.lane.b32.xlu0 %v2834, 32
      %v2959 = vpop.permute.xlu0 %2958
      %2960 = vrot.lane.b32.xlu0 %v2835, 32
      %v2961 = vpop.permute.xlu0 %2960
      %2962 = vrot.lane.b32.xlu0 %v2836, 32
      %v2963 = vpop.permute.xlu0 %2962
      %2964 = vrot.lane.b32.xlu0 %v2837, 32
      %v2965 = vpop.permute.xlu0 %2964
      %2998 = vst.msk [vmem:[#allocation2 + $0x8] sm:$0xf] %vm1494, %v2903
      %2999 = vst.msk [vmem:[#allocation2 + $0xc] sm:$0xf] %vm1494, %v2905
      %3000 = vst.msk [vmem:[#allocation2 + $0x10] sm:$0xf] %vm1494, %v2907
      %3001 = vst.msk [vmem:[#allocation2 + $0x14] sm:$0xf] %vm1494, %v2909
      %3002 = vst.msk [vmem:[#allocation2 + $0x18] sm:$0xf] %vm1494, %v2911
      %3003 = vst.msk [vmem:[#allocation2 + $0x1c] sm:$0xf] %vm1494, %v2913
      %3004 = vst.msk [vmem:[#allocation2 + $0x20] sm:$0xf] %vm1494, %v2915
      %3005 = vst.msk [vmem:[#allocation2 + $0x24] sm:$0xf] %vm1494, %v2917
      %3006 = vst.msk [vmem:[#allocation2 + $0x28] sm:$0xf] %vm1494, %v2919
      %3007 = vst.msk [vmem:[#allocation2 + $0x2c] sm:$0xf] %vm1494, %v2921
      %3008 = vst.msk [vmem:[#allocation2 + $0x30] sm:$0xf] %vm1494, %v2923
      %3009 = vst.msk [vmem:[#allocation2 + $0x34] sm:$0xf] %vm1494, %v2925
      %3010 = vst.msk [vmem:[#allocation2 + $0x38] sm:$0xf] %vm1494, %v2927
      %3011 = vst.msk [vmem:[#allocation2 + $0x3c] sm:$0xf] %vm1494, %v2929
      %3012 = vst.msk [vmem:[#allocation2 + $0x40] sm:$0xf] %vm1494, %v2931
      %3013 = vst.msk [vmem:[#allocation2 + $0x44] sm:$0xf] %vm1494, %v2933
      %3014 = vst.msk [vmem:[#allocation2 + $0x48] sm:$0xf] %vm1494, %v2935
      %3015 = vst.msk [vmem:[#allocation2 + $0x4c] sm:$0xf] %vm1494, %v2937
      %3016 = vst.msk [vmem:[#allocation2 + $0x50] sm:$0xf] %vm1494, %v2939
      %3017 = vst.msk [vmem:[#allocation2 + $0x54] sm:$0xf] %vm1494, %v2941
      %3018 = vst.msk [vmem:[#allocation2 + $0x58] sm:$0xf] %vm1494, %v2943
      %3019 = vst.msk [vmem:[#allocation2 + $0x5c] sm:$0xf] %vm1494, %v2945
      %3020 = vst.msk [vmem:[#allocation2 + $0x60] sm:$0xf] %vm1494, %v2947
      %3021 = vst.msk [vmem:[#allocation2 + $0x64] sm:$0xf] %vm1494, %v2949
      %3022 = vst.msk [vmem:[#allocation2 + $0x68] sm:$0xf] %vm1494, %v2951
      %3023 = vst.msk [vmem:[#allocation2 + $0x6c] sm:$0xf] %vm1494, %v2953
      %3024 = vst.msk [vmem:[#allocation2 + $0x70] sm:$0xf] %vm1494, %v2955
      %3025 = vst.msk [vmem:[#allocation2 + $0x74] sm:$0xf] %vm1494, %v2957
      %3026 = vst.msk [vmem:[#allocation2 + $0x78] sm:$0xf] %vm1494, %v2959
      %3027 = vst.msk [vmem:[#allocation2 + $0x7c] sm:$0xf] %vm1494, %v2961
      %3028 = vst.msk [vmem:[#allocation2 + $0x80] sm:$0xf] %vm1494, %v2963
      %3029 = vst.msk [vmem:[#allocation2 + $0x84] sm:$0xf] %vm1494, %v2965
      %3030 = vrot.lane.b32.xlu0 %v2806, 64
      %v3031 = vpop.permute.xlu0 %3030
      %3032 = vrot.lane.b32.xlu0 %v2807, 64
      %v3033 = vpop.permute.xlu0 %3032
      %3034 = vrot.lane.b32.xlu0 %v2808, 64
      %v3035 = vpop.permute.xlu0 %3034
      %3036 = vrot.lane.b32.xlu0 %v2809, 64
      %v3037 = vpop.permute.xlu0 %3036
      %3038 = vrot.lane.b32.xlu0 %v2810, 64
      %v3039 = vpop.permute.xlu0 %3038
      %3040 = vrot.lane.b32.xlu0 %v2811, 64
      %v3041 = vpop.permute.xlu0 %3040
      %3042 = vrot.lane.b32.xlu0 %v2812, 64
      %v3043 = vpop.permute.xlu0 %3042
      %3044 = vrot.lane.b32.xlu0 %v2813, 64
      %v3045 = vpop.permute.xlu0 %3044
      %3046 = vrot.lane.b32.xlu0 %v2814, 64
      %v3047 = vpop.permute.xlu0 %3046
      %3048 = vrot.lane.b32.xlu0 %v2815, 64
      %v3049 = vpop.permute.xlu0 %3048
      %3050 = vrot.lane.b32.xlu0 %v2816, 64
      %v3051 = vpop.permute.xlu0 %3050
      %3052 = vrot.lane.b32.xlu0 %v2817, 64
      %v3053 = vpop.permute.xlu0 %3052
      %3054 = vrot.lane.b32.xlu0 %v2818, 64
      %v3055 = vpop.permute.xlu0 %3054
      %3056 = vrot.lane.b32.xlu0 %v2819, 64
      %v3057 = vpop.permute.xlu0 %3056
      %3058 = vrot.lane.b32.xlu0 %v2820, 64
      %v3059 = vpop.permute.xlu0 %3058
      %3060 = vrot.lane.b32.xlu0 %v2821, 64
      %v3061 = vpop.permute.xlu0 %3060
      %3062 = vrot.lane.b32.xlu0 %v2822, 64
      %v3063 = vpop.permute.xlu0 %3062
      %3064 = vrot.lane.b32.xlu0 %v2823, 64
      %v3065 = vpop.permute.xlu0 %3064
      %3066 = vrot.lane.b32.xlu0 %v2824, 64
      %v3067 = vpop.permute.xlu0 %3066
      %3068 = vrot.lane.b32.xlu0 %v2825, 64
      %v3069 = vpop.permute.xlu0 %3068
      %3070 = vrot.lane.b32.xlu0 %v2826, 64
      %v3071 = vpop.permute.xlu0 %3070
      %3072 = vrot.lane.b32.xlu0 %v2827, 64
      %v3073 = vpop.permute.xlu0 %3072
      %3074 = vrot.lane.b32.xlu0 %v2828, 64
      %v3075 = vpop.permute.xlu0 %3074
      %3076 = vrot.lane.b32.xlu0 %v2829, 64
      %v3077 = vpop.permute.xlu0 %3076
      %3078 = vrot.lane.b32.xlu0 %v2830, 64
      %v3079 = vpop.permute.xlu0 %3078
      %3080 = vrot.lane.b32.xlu0 %v2831, 64
      %v3081 = vpop.permute.xlu0 %3080
      %3082 = vrot.lane.b32.xlu0 %v2832, 64
      %v3083 = vpop.permute.xlu0 %3082
      %3084 = vrot.lane.b32.xlu0 %v2833, 64
      %v3085 = vpop.permute.xlu0 %3084
      %3086 = vrot.lane.b32.xlu0 %v2834, 64
      %v3087 = vpop.permute.xlu0 %3086
      %3088 = vrot.lane.b32.xlu0 %v2835, 64
      %v3089 = vpop.permute.xlu0 %3088
      %3090 = vrot.lane.b32.xlu0 %v2836, 64
      %v3091 = vpop.permute.xlu0 %3090
      %3092 = vrot.lane.b32.xlu0 %v2837, 64
      %v3093 = vpop.permute.xlu0 %3092
      %3126 = vst.msk [vmem:[#allocation2] sm:$0xf] %vm1623, %v3031
      %3127 = vst.msk [vmem:[#allocation2 + $0x4] sm:$0xf] %vm1623, %v3033
      %3128 = vst.msk [vmem:[#allocation2 + $0x8] sm:$0xf] %vm1623, %v3035
      %3129 = vst.msk [vmem:[#allocation2 + $0xc] sm:$0xf] %vm1623, %v3037
      %3130 = vst.msk [vmem:[#allocation2 + $0x10] sm:$0xf] %vm1623, %v3039
      %3131 = vst.msk [vmem:[#allocation2 + $0x14] sm:$0xf] %vm1623, %v3041
      %3132 = vst.msk [vmem:[#allocation2 + $0x18] sm:$0xf] %vm1623, %v3043
      %3133 = vst.msk [vmem:[#allocation2 + $0x1c] sm:$0xf] %vm1623, %v3045
      %3134 = vst.msk [vmem:[#allocation2 + $0x20] sm:$0xf] %vm1623, %v3047
      %3135 = vst.msk [vmem:[#allocation2 + $0x24] sm:$0xf] %vm1623, %v3049
      %3136 = vst.msk [vmem:[#allocation2 + $0x28] sm:$0xf] %vm1623, %v3051
      %3137 = vst.msk [vmem:[#allocation2 + $0x2c] sm:$0xf] %vm1623, %v3053
      %3138 = vst.msk [vmem:[#allocation2 + $0x30] sm:$0xf] %vm1623, %v3055
      %3139 = vst.msk [vmem:[#allocation2 + $0x34] sm:$0xf] %vm1623, %v3057
      %3140 = vst.msk [vmem:[#allocation2 + $0x38] sm:$0xf] %vm1623, %v3059
      %3141 = vst.msk [vmem:[#allocation2 + $0x3c] sm:$0xf] %vm1623, %v3061
      %3142 = vst.msk [vmem:[#allocation2 + $0x40] sm:$0xf] %vm1623, %v3063
      %3143 = vst.msk [vmem:[#allocation2 + $0x44] sm:$0xf] %vm1623, %v3065
      %3144 = vst.msk [vmem:[#allocation2 + $0x48] sm:$0xf] %vm1623, %v3067
      %3145 = vst.msk [vmem:[#allocation2 + $0x4c] sm:$0xf] %vm1623, %v3069
      %3146 = vst.msk [vmem:[#allocation2 + $0x50] sm:$0xf] %vm1623, %v3071
      %3147 = vst.msk [vmem:[#allocation2 + $0x54] sm:$0xf] %vm1623, %v3073
      %3148 = vst.msk [vmem:[#allocation2 + $0x58] sm:$0xf] %vm1623, %v3075
      %3149 = vst.msk [vmem:[#allocation2 + $0x5c] sm:$0xf] %vm1623, %v3077
      %3150 = vst.msk [vmem:[#allocation2 + $0x60] sm:$0xf] %vm1623, %v3079
      %3151 = vst.msk [vmem:[#allocation2 + $0x64] sm:$0xf] %vm1623, %v3081
      %3152 = vst.msk [vmem:[#allocation2 + $0x68] sm:$0xf] %vm1623, %v3083
      %3153 = vst.msk [vmem:[#allocation2 + $0x6c] sm:$0xf] %vm1623, %v3085
      %3154 = vst.msk [vmem:[#allocation2 + $0x70] sm:$0xf] %vm1623, %v3087
      %3155 = vst.msk [vmem:[#allocation2 + $0x74] sm:$0xf] %vm1623, %v3089
      %3156 = vst.msk [vmem:[#allocation2 + $0x78] sm:$0xf] %vm1623, %v3091
      %3157 = vst.msk [vmem:[#allocation2 + $0x7c] sm:$0xf] %vm1623, %v3093
      %v3158 = vld [vmem:[#allocation2 + $0x8] sm:$0xf]
      %v3159 = vld [vmem:[#allocation2 + $0xc] sm:$0xf]
      %v3160 = vld [vmem:[#allocation2 + $0x10] sm:$0xf]
      %v3161 = vld [vmem:[#allocation2 + $0x14] sm:$0xf]
      %v3162 = vld [vmem:[#allocation2 + $0x18] sm:$0xf]
      %v3163 = vld [vmem:[#allocation2 + $0x1c] sm:$0xf]
      %v3164 = vld [vmem:[#allocation2 + $0x20] sm:$0xf]
      %v3165 = vld [vmem:[#allocation2 + $0x24] sm:$0xf]
      %v3166 = vld [vmem:[#allocation2 + $0x28] sm:$0xf]
      %v3167 = vld [vmem:[#allocation2 + $0x2c] sm:$0xf]
      %v3168 = vld [vmem:[#allocation2 + $0x30] sm:$0xf]
      %v3169 = vld [vmem:[#allocation2 + $0x34] sm:$0xf]
      %v3170 = vld [vmem:[#allocation2 + $0x38] sm:$0xf]
      %v3171 = vld [vmem:[#allocation2 + $0x3c] sm:$0xf]
      %v3172 = vld [vmem:[#allocation2 + $0x40] sm:$0xf]
      %v3173 = vld [vmem:[#allocation2 + $0x44] sm:$0xf]
      %v3174 = vld [vmem:[#allocation2 + $0x48] sm:$0xf]
      %v3175 = vld [vmem:[#allocation2 + $0x4c] sm:$0xf]
      %v3176 = vld [vmem:[#allocation2 + $0x50] sm:$0xf]
      %v3177 = vld [vmem:[#allocation2 + $0x54] sm:$0xf]
      %v3178 = vld [vmem:[#allocation2 + $0x58] sm:$0xf]
      %v3179 = vld [vmem:[#allocation2 + $0x5c] sm:$0xf]
      %v3180 = vld [vmem:[#allocation2 + $0x60] sm:$0xf]
      %v3181 = vld [vmem:[#allocation2 + $0x64] sm:$0xf]
      %v3182 = vld [vmem:[#allocation2 + $0x68] sm:$0xf]
      %v3183 = vld [vmem:[#allocation2 + $0x6c] sm:$0xf]
      %v3184 = vld [vmem:[#allocation2 + $0x70] sm:$0xf]
      %v3185 = vld [vmem:[#allocation2 + $0x74] sm:$0xf]
      %v3186 = vld [vmem:[#allocation2 + $0x78] sm:$0xf]
      %v3187 = vld [vmem:[#allocation2 + $0x7c] sm:$0xf]
      %v3188 = vld [vmem:[#allocation2 + $0x80] sm:$0xf]
      %v3189 = vld [vmem:[#allocation2 + $0x84] sm:$0xf]
      %s3190 = scalar_lea.vmem %s5, 48
      %v3191 = vld [vmem:[%s3190] sm:$0xf]
      %v3192 = vld [vmem:[%s3190 + $0x4] sm:$0xf]
      %v3193 = vld [vmem:[%s3190 + $0x8] sm:$0xf]
      %v3194 = vld [vmem:[%s3190 + $0xc] sm:$0xf]
      %v3195 = vld [vmem:[%s3190 + $0x10] sm:$0xf]
      %v3196 = vld [vmem:[%s3190 + $0x14] sm:$0xf]
      %v3197 = vld [vmem:[%s3190 + $0x18] sm:$0xf]
      %v3198 = vld [vmem:[%s3190 + $0x1c] sm:$0xf]
      %v3199 = vld [vmem:[%s3190 + $0x20] sm:$0xf]
      %v3200 = vld [vmem:[%s3190 + $0x24] sm:$0xf]
      %v3201 = vld [vmem:[%s3190 + $0x28] sm:$0xf]
      %v3202 = vld [vmem:[%s3190 + $0x2c] sm:$0xf]
      %v3203 = vld [vmem:[%s5] sm:$0xf]
      %v3204 = vld [vmem:[%s5 + $0x4] sm:$0xf]
      %v3205 = vld [vmem:[%s5 + $0x8] sm:$0xf]
      %v3206 = vld [vmem:[%s5 + $0xc] sm:$0xf]
      %v3207 = vld [vmem:[%s5 + $0x10] sm:$0xf]
      %v3208 = vld [vmem:[%s5 + $0x14] sm:$0xf]
      %v3209 = vld [vmem:[%s5 + $0x18] sm:$0xf]
      %v3210 = vld [vmem:[%s5 + $0x1c] sm:$0xf]
      %v3211 = vld [vmem:[%s5 + $0x20] sm:$0xf]
      %v3212 = vld [vmem:[%s5 + $0x24] sm:$0xf]
      %v3213 = vld [vmem:[%s5 + $0x28] sm:$0xf]
      %v3214 = vld [vmem:[%s5 + $0x2c] sm:$0xf]
      %v3247 = vunpack.c.l.b16 %v3158
      %v3248 = vunpack.c.l.b16 %v3159
      %v3249 = vunpack.c.l.b16 %v3160
      %v3250 = vunpack.c.l.b16 %v3161
      %v3251 = vunpack.c.l.b16 %v3162
      %v3252 = vunpack.c.l.b16 %v3163
      %v3253 = vunpack.c.l.b16 %v3164
      %v3254 = vunpack.c.l.b16 %v3165
      %v3255 = vunpack.c.l.b16 %v3166
      %v3256 = vunpack.c.l.b16 %v3167
      %v3257 = vunpack.c.l.b16 %v3168
      %v3258 = vunpack.c.l.b16 %v3169
      %v3259 = vunpack.c.l.b16 %v3170
      %v3260 = vunpack.c.l.b16 %v3171
      %v3261 = vunpack.c.l.b16 %v3172
      %v3262 = vunpack.c.l.b16 %v3173
      %v3263 = vunpack.c.l.b16 %v3174
      %v3264 = vunpack.c.l.b16 %v3175
      %v3265 = vunpack.c.l.b16 %v3176
      %v3266 = vunpack.c.l.b16 %v3177
      %v3267 = vunpack.c.l.b16 %v3178
      %v3268 = vunpack.c.l.b16 %v3179
      %v3269 = vunpack.c.l.b16 %v3180
      %v3270 = vunpack.c.l.b16 %v3181
      %v3271 = vunpack.c.l.b16 %v3182
      %v3272 = vunpack.c.l.b16 %v3183
      %v3273 = vunpack.c.l.b16 %v3184
      %v3274 = vunpack.c.l.b16 %v3185
      %v3275 = vunpack.c.l.b16 %v3186
      %v3276 = vunpack.c.l.b16 %v3187
      %v3277 = vunpack.c.l.b16 %v3188
      %v3278 = vunpack.c.l.b16 %v3189
      %v3279 = vpack.c.b16 %v3248, %v3247
      %v3280 = vpack.c.b16 %v3250, %v3249
      %v3281 = vpack.c.b16 %v3252, %v3251
      %v3282 = vpack.c.b16 %v3254, %v3253
      %v3283 = vpack.c.b16 %v3256, %v3255
      %v3284 = vpack.c.b16 %v3258, %v3257
      %v3285 = vpack.c.b16 %v3260, %v3259
      %v3286 = vpack.c.b16 %v3262, %v3261
      %v3287 = vpack.c.b16 %v3264, %v3263
      %v3288 = vpack.c.b16 %v3266, %v3265
      %v3289 = vpack.c.b16 %v3268, %v3267
      %v3290 = vpack.c.b16 %v3270, %v3269
      %v3291 = vpack.c.b16 %v3272, %v3271
      %v3292 = vpack.c.b16 %v3274, %v3273
      %v3293 = vpack.c.b16 %v3276, %v3275
      %v3294 = vpack.c.b16 %v3278, %v3277
      %v3307 = vunpack.c.l.b16 %v3203
      %v3308 = vunpack.c.l.b16 %v3204
      %v3309 = vunpack.c.l.b16 %v3205
      %v3310 = vunpack.c.l.b16 %v3206
      %v3311 = vunpack.c.l.b16 %v3207
      %v3312 = vunpack.c.l.b16 %v3208
      %v3313 = vunpack.c.l.b16 %v3209
      %v3314 = vunpack.c.l.b16 %v3210
      %v3315 = vunpack.c.l.b16 %v3211
      %v3316 = vunpack.c.l.b16 %v3212
      %v3317 = vunpack.c.l.b16 %v3213
      %v3318 = vunpack.c.l.b16 %v3214
      %v3319 = vpack.c.b16 %v3308, %v3307
      %v3320 = vpack.c.b16 %v3310, %v3309
      %v3321 = vpack.c.b16 %v3312, %v3311
      %v3322 = vpack.c.b16 %v3314, %v3313
      %v3323 = vpack.c.b16 %v3316, %v3315
      %v3324 = vpack.c.b16 %v3318, %v3317
      %v3332 = vsel %vm1829, %v3279, 0
      %v3335 = vsel %vm1829, %v3280, 0
      %v3338 = vsel %vm1829, %v3281, 0
      %v3341 = vsel %vm1829, %v3282, 0
      %v3344 = vsel %vm1829, %v3283, 0
      %v3347 = vsel %vm1829, %v3284, 0
      %v3350 = vsel %vm1829, %v3285, 0
      %v3353 = vsel %vm1829, %v3286, 0
      %v3356 = vsel %vm1829, %v3287, 0
      %v3359 = vsel %vm1829, %v3288, 0
      %v3362 = vsel %vm1829, %v3289, 0
      %v3365 = vsel %vm1829, %v3290, 0
      %v3368 = vsel %vm1829, %v3291, 0
      %v3371 = vsel %vm1829, %v3292, 0
      %v3374 = vsel %vm1829, %v3293, 0
      %v3377 = vsel %vm1829, %v3294, 0
      %3379 = vmatprep.subr.bf16.mxu0 0
      %3380 = vmatpush1.bf16.msra.mxu0 0
      %3381 = vmatprep.subr.bf16.mxu0 0
      %3382 = vmatpush1.bf16.msra.mxu0 0
      %3383 = vmatprep.subr.bf16.mxu0 0
      %3384 = vmatpush1.bf16.msra.mxu0 %v3324
      %3385 = vmatprep.subr.bf16.mxu0 0
      %3386 = vmatpush1.bf16.msra.mxu0 %v3323
      %3387 = vmatprep.subr.bf16.mxu0 0
      %3388 = vmatpush1.bf16.msra.mxu0 %v3322
      %3389 = vmatprep.subr.bf16.mxu0 0
      %3390 = vmatpush1.bf16.msra.mxu0 %v3321
      %3391 = vmatprep.subr.bf16.mxu0 0
      %3392 = vmatpush1.bf16.msra.mxu0 %v3320
      %3393 = vmatprep.subr.bf16.mxu0 0
      %3394 = vmatpush1.bf16.msra.mxu0 %v3319
      %3395 = vmatprep.subr.bf16.mxu0 0
      %3396 = vmatpush2.bf16.msra.mxu0 0
      %3397 = vmatprep.subr.bf16.mxu0 0
      %3398 = vmatpush2.bf16.msra.mxu0 0
      %3399 = vmatprep.subr.bf16.mxu0 0
      %3400 = vmatpush2.bf16.msra.mxu0 0
      %3401 = vmatprep.subr.bf16.mxu0 0
      %3402 = vmatpush2.bf16.msra.mxu0 0
      %3403 = vmatprep.subr.bf16.mxu0 0
      %3404 = vmatpush2.bf16.msra.mxu0 0
      %3405 = vmatprep.subr.bf16.mxu0 0
      %3406 = vmatpush2.bf16.msra.mxu0 0
      %3407 = vmatprep.subr.bf16.mxu0 0
      %3408 = vmatpush2.bf16.msra.mxu0 0
      %3409 = vmatprep.subr.bf16.mxu0 0
      %3410 = vmatpush2.bf16.msra.mxu0 0
      %3411 = vmatprep.mubr.bf16.mxu0 0
      %3412 = vmatmul.mubr.bf16.gmra.mxu0 %v3332
      %v3413 = vpop.f32.mrf.mxu0
      %v3414 = vadd.f32 0.0, %v3413
      %v3415 = vpop.f32.mrf.mxu0
      %v3416 = vpop.f32.mrf.mxu0
      %v3417 = vadd.f32 0.0, %v3416
      %v3418 = vpop.f32.mrf.mxu0
      %3419 = vmatprep.mubr.bf16.mxu0 0
      %3420 = vmatmul.mubr.bf16.gmra.mxu0 %v3335
      %v3421 = vpop.f32.mrf.mxu0
      %v3422 = vadd.f32 0.0, %v3421
      %v3423 = vpop.f32.mrf.mxu0
      %v3424 = vpop.f32.mrf.mxu0
      %v3425 = vadd.f32 0.0, %v3424
      %v3426 = vpop.f32.mrf.mxu0
      %3427 = vmatprep.mubr.bf16.mxu0 0
      %3428 = vmatmul.mubr.bf16.gmra.mxu0 %v3338
      %v3429 = vpop.f32.mrf.mxu0
      %v3430 = vadd.f32 0.0, %v3429
      %v3431 = vpop.f32.mrf.mxu0
      %v3432 = vpop.f32.mrf.mxu0
      %v3433 = vadd.f32 0.0, %v3432
      %v3434 = vpop.f32.mrf.mxu0
      %3435 = vmatprep.mubr.bf16.mxu0 0
      %3436 = vmatmul.mubr.bf16.gmra.mxu0 %v3341
      %v3437 = vpop.f32.mrf.mxu0
      %v3438 = vadd.f32 0.0, %v3437
      %v3439 = vpop.f32.mrf.mxu0
      %v3440 = vpop.f32.mrf.mxu0
      %v3441 = vadd.f32 0.0, %v3440
      %v3442 = vpop.f32.mrf.mxu0
      %3443 = vmatprep.mubr.bf16.mxu0 0
      %3444 = vmatmul.mubr.bf16.gmra.mxu0 %v3344
      %v3445 = vpop.f32.mrf.mxu0
      %v3446 = vadd.f32 0.0, %v3445
      %v3447 = vpop.f32.mrf.mxu0
      %v3448 = vpop.f32.mrf.mxu0
      %v3449 = vadd.f32 0.0, %v3448
      %v3450 = vpop.f32.mrf.mxu0
      %3451 = vmatprep.mubr.bf16.mxu0 0
      %3452 = vmatmul.mubr.bf16.gmra.mxu0 %v3347
      %v3453 = vpop.f32.mrf.mxu0
      %v3454 = vadd.f32 0.0, %v3453
      %v3455 = vpop.f32.mrf.mxu0
      %v3456 = vpop.f32.mrf.mxu0
      %v3457 = vadd.f32 0.0, %v3456
      %v3458 = vpop.f32.mrf.mxu0
      %3459 = vmatprep.mubr.bf16.mxu0 0
      %3460 = vmatmul.mubr.bf16.gmra.mxu0 %v3350
      %v3461 = vpop.f32.mrf.mxu0
      %v3462 = vadd.f32 0.0, %v3461
      %v3463 = vpop.f32.mrf.mxu0
      %v3464 = vpop.f32.mrf.mxu0
      %v3465 = vadd.f32 0.0, %v3464
      %v3466 = vpop.f32.mrf.mxu0
      %3467 = vmatprep.mubr.bf16.mxu0 0
      %3468 = vmatmul.mubr.bf16.gmra.mxu0 %v3353
      %v3469 = vpop.f32.mrf.mxu0
      %v3470 = vadd.f32 0.0, %v3469
      %v3471 = vpop.f32.mrf.mxu0
      %v3472 = vpop.f32.mrf.mxu0
      %v3473 = vadd.f32 0.0, %v3472
      %v3474 = vpop.f32.mrf.mxu0
      %3475 = vmatprep.mubr.bf16.mxu0 0
      %3476 = vmatmul.mubr.bf16.gmra.mxu0 %v3356
      %v3477 = vpop.f32.mrf.mxu0
      %v3478 = vadd.f32 0.0, %v3477
      %v3479 = vpop.f32.mrf.mxu0
      %v3480 = vpop.f32.mrf.mxu0
      %v3481 = vadd.f32 0.0, %v3480
      %v3482 = vpop.f32.mrf.mxu0
      %3483 = vmatprep.mubr.bf16.mxu0 0
      %3484 = vmatmul.mubr.bf16.gmra.mxu0 %v3359
      %v3485 = vpop.f32.mrf.mxu0
      %v3486 = vadd.f32 0.0, %v3485
      %v3487 = vpop.f32.mrf.mxu0
      %v3488 = vpop.f32.mrf.mxu0
      %v3489 = vadd.f32 0.0, %v3488
      %v3490 = vpop.f32.mrf.mxu0
      %3491 = vmatprep.mubr.bf16.mxu0 0
      %3492 = vmatmul.mubr.bf16.gmra.mxu0 %v3362
      %v3493 = vpop.f32.mrf.mxu0
      %v3494 = vadd.f32 0.0, %v3493
      %v3495 = vpop.f32.mrf.mxu0
      %v3496 = vpop.f32.mrf.mxu0
      %v3497 = vadd.f32 0.0, %v3496
      %v3498 = vpop.f32.mrf.mxu0
      %3499 = vmatprep.mubr.bf16.mxu0 0
      %3500 = vmatmul.mubr.bf16.gmra.mxu0 %v3365
      %v3501 = vpop.f32.mrf.mxu0
      %v3502 = vadd.f32 0.0, %v3501
      %v3503 = vpop.f32.mrf.mxu0
      %v3504 = vpop.f32.mrf.mxu0
      %v3505 = vadd.f32 0.0, %v3504
      %v3506 = vpop.f32.mrf.mxu0
      %3507 = vmatprep.mubr.bf16.mxu0 0
      %3508 = vmatmul.mubr.bf16.gmra.mxu0 %v3368
      %v3509 = vpop.f32.mrf.mxu0
      %v3510 = vadd.f32 0.0, %v3509
      %v3511 = vpop.f32.mrf.mxu0
      %v3512 = vpop.f32.mrf.mxu0
      %v3513 = vadd.f32 0.0, %v3512
      %v3514 = vpop.f32.mrf.mxu0
      %3515 = vmatprep.mubr.bf16.mxu0 0
      %3516 = vmatmul.mubr.bf16.gmra.mxu0 %v3371
      %v3517 = vpop.f32.mrf.mxu0
      %v3518 = vadd.f32 0.0, %v3517
      %v3519 = vpop.f32.mrf.mxu0
      %v3520 = vpop.f32.mrf.mxu0
      %v3521 = vadd.f32 0.0, %v3520
      %v3522 = vpop.f32.mrf.mxu0
      %3523 = vmatprep.mubr.bf16.mxu0 0
      %3524 = vmatmul.mubr.bf16.gmra.mxu0 %v3374
      %v3525 = vpop.f32.mrf.mxu0
      %v3526 = vadd.f32 0.0, %v3525
      %v3527 = vpop.f32.mrf.mxu0
      %v3528 = vpop.f32.mrf.mxu0
      %v3529 = vadd.f32 0.0, %v3528
      %v3530 = vpop.f32.mrf.mxu0
      %3531 = vmatprep.mubr.bf16.mxu0 0
      %3532 = vmatmul.mubr.bf16.gmra.mxu0 %v3377
      %v3533 = vpop.f32.mrf.mxu0
      %v3534 = vadd.f32 0.0, %v3533
      %v3535 = vpop.f32.mrf.mxu0
      %v3536 = vpop.f32.mrf.mxu0
      %v3537 = vadd.f32 0.0, %v3536
      %v3538 = vpop.f32.mrf.mxu0
      %3539 = vdwg.mxu0
      %s3540 = scalar_lea.vmem %s5, 96
      %v3541 = vld [vmem:[%s3540] sm:$0xf]
      %v3542 = vld [vmem:[%s3540 + $0x4] sm:$0xf]
      %v3543 = vld [vmem:[%s3540 + $0x8] sm:$0xf]
      %v3544 = vld [vmem:[%s3540 + $0xc] sm:$0xf]
      %v3545 = vld [vmem:[%s3540 + $0x10] sm:$0xf]
      %v3546 = vld [vmem:[%s3540 + $0x14] sm:$0xf]
      %v3547 = vld [vmem:[%s3540 + $0x18] sm:$0xf]
      %v3548 = vld [vmem:[%s3540 + $0x1c] sm:$0xf]
      %v3549 = vld [vmem:[%s3540 + $0x20] sm:$0xf]
      %v3550 = vld [vmem:[%s3540 + $0x24] sm:$0xf]
      %v3551 = vld [vmem:[%s3540 + $0x28] sm:$0xf]
      %v3552 = vld [vmem:[%s3540 + $0x2c] sm:$0xf]
      %v3565 = vunpack.c.l.b16 %v3541
      %v3566 = vunpack.c.l.b16 %v3542
      %v3567 = vunpack.c.l.b16 %v3543
      %v3568 = vunpack.c.l.b16 %v3544
      %v3569 = vunpack.c.l.b16 %v3545
      %v3570 = vunpack.c.l.b16 %v3546
      %v3571 = vunpack.c.l.b16 %v3547
      %v3572 = vunpack.c.l.b16 %v3548
      %v3573 = vunpack.c.l.b16 %v3549
      %v3574 = vunpack.c.l.b16 %v3550
      %v3575 = vunpack.c.l.b16 %v3551
      %v3576 = vunpack.c.l.b16 %v3552
      %v3577 = vpack.c.b16 %v3566, %v3565
      %v3578 = vpack.c.b16 %v3568, %v3567
      %v3579 = vpack.c.b16 %v3570, %v3569
      %v3580 = vpack.c.b16 %v3572, %v3571
      %v3581 = vpack.c.b16 %v3574, %v3573
      %v3582 = vpack.c.b16 %v3576, %v3575
      %3589 = vmatprep.subr.bf16.mxu0 0
      %3590 = vmatpush1.bf16.msra.mxu0 0
      %3591 = vmatprep.subr.bf16.mxu0 0
      %3592 = vmatpush1.bf16.msra.mxu0 0
      %3593 = vmatprep.subr.bf16.mxu0 0
      %3594 = vmatpush1.bf16.msra.mxu0 %v3582
      %3595 = vmatprep.subr.bf16.mxu0 0
      %3596 = vmatpush1.bf16.msra.mxu0 %v3581
      %3597 = vmatprep.subr.bf16.mxu0 0
      %3598 = vmatpush1.bf16.msra.mxu0 %v3580
      %3599 = vmatprep.subr.bf16.mxu0 0
      %3600 = vmatpush1.bf16.msra.mxu0 %v3579
      %3601 = vmatprep.subr.bf16.mxu0 0
      %3602 = vmatpush1.bf16.msra.mxu0 %v3578
      %3603 = vmatprep.subr.bf16.mxu0 0
      %3604 = vmatpush1.bf16.msra.mxu0 %v3577
      %3605 = vmatprep.subr.bf16.mxu0 0
      %3606 = vmatpush2.bf16.msra.mxu0 0
      %3607 = vmatprep.subr.bf16.mxu0 0
      %3608 = vmatpush2.bf16.msra.mxu0 0
      %3609 = vmatprep.subr.bf16.mxu0 0
      %3610 = vmatpush2.bf16.msra.mxu0 0
      %3611 = vmatprep.subr.bf16.mxu0 0
      %3612 = vmatpush2.bf16.msra.mxu0 0
      %3613 = vmatprep.subr.bf16.mxu0 0
      %3614 = vmatpush2.bf16.msra.mxu0 0
      %3615 = vmatprep.subr.bf16.mxu0 0
      %3616 = vmatpush2.bf16.msra.mxu0 0
      %3617 = vmatprep.subr.bf16.mxu0 0
      %3618 = vmatpush2.bf16.msra.mxu0 0
      %3619 = vmatprep.subr.bf16.mxu0 0
      %3620 = vmatpush2.bf16.msra.mxu0 0
      %3621 = vmatprep.mubr.bf16.mxu0 0
      %3622 = vmatmul.mubr.bf16.gmra.mxu0 %v3332
      %v3623 = vpop.f32.mrf.mxu0
      %v3624 = vadd.f32 0.0, %v3623
      %v3625 = vpop.f32.mrf.mxu0
      %v3626 = vpop.f32.mrf.mxu0
      %v3627 = vadd.f32 0.0, %v3626
      %v3628 = vpop.f32.mrf.mxu0
      %3629 = vmatprep.mubr.bf16.mxu0 0
      %3630 = vmatmul.mubr.bf16.gmra.mxu0 %v3335
      %v3631 = vpop.f32.mrf.mxu0
      %v3632 = vadd.f32 0.0, %v3631
      %v3633 = vpop.f32.mrf.mxu0
      %v3634 = vpop.f32.mrf.mxu0
      %v3635 = vadd.f32 0.0, %v3634
      %v3636 = vpop.f32.mrf.mxu0
      %3637 = vmatprep.mubr.bf16.mxu0 0
      %3638 = vmatmul.mubr.bf16.gmra.mxu0 %v3338
      %v3639 = vpop.f32.mrf.mxu0
      %v3640 = vadd.f32 0.0, %v3639
      %v3641 = vpop.f32.mrf.mxu0
      %v3642 = vpop.f32.mrf.mxu0
      %v3643 = vadd.f32 0.0, %v3642
      %v3644 = vpop.f32.mrf.mxu0
      %3645 = vmatprep.mubr.bf16.mxu0 0
      %3646 = vmatmul.mubr.bf16.gmra.mxu0 %v3341
      %v3647 = vpop.f32.mrf.mxu0
      %v3648 = vadd.f32 0.0, %v3647
      %v3649 = vpop.f32.mrf.mxu0
      %v3650 = vpop.f32.mrf.mxu0
      %v3651 = vadd.f32 0.0, %v3650
      %v3652 = vpop.f32.mrf.mxu0
      %3653 = vmatprep.mubr.bf16.mxu0 0
      %3654 = vmatmul.mubr.bf16.gmra.mxu0 %v3344
      %v3655 = vpop.f32.mrf.mxu0
      %v3656 = vadd.f32 0.0, %v3655
      %v3657 = vpop.f32.mrf.mxu0
      %v3658 = vpop.f32.mrf.mxu0
      %v3659 = vadd.f32 0.0, %v3658
      %v3660 = vpop.f32.mrf.mxu0
      %3661 = vmatprep.mubr.bf16.mxu0 0
      %3662 = vmatmul.mubr.bf16.gmra.mxu0 %v3347
      %v3663 = vpop.f32.mrf.mxu0
      %v3664 = vadd.f32 0.0, %v3663
      %v3665 = vpop.f32.mrf.mxu0
      %v3666 = vpop.f32.mrf.mxu0
      %v3667 = vadd.f32 0.0, %v3666
      %v3668 = vpop.f32.mrf.mxu0
      %3669 = vmatprep.mubr.bf16.mxu0 0
      %3670 = vmatmul.mubr.bf16.gmra.mxu0 %v3350
      %v3671 = vpop.f32.mrf.mxu0
      %v3672 = vadd.f32 0.0, %v3671
      %v3673 = vpop.f32.mrf.mxu0
      %v3674 = vpop.f32.mrf.mxu0
      %v3675 = vadd.f32 0.0, %v3674
      %v3676 = vpop.f32.mrf.mxu0
      %3677 = vmatprep.mubr.bf16.mxu0 0
      %3678 = vmatmul.mubr.bf16.gmra.mxu0 %v3353
      %v3679 = vpop.f32.mrf.mxu0
      %v3680 = vadd.f32 0.0, %v3679
      %v3681 = vpop.f32.mrf.mxu0
      %v3682 = vpop.f32.mrf.mxu0
      %v3683 = vadd.f32 0.0, %v3682
      %v3684 = vpop.f32.mrf.mxu0
      %3685 = vmatprep.mubr.bf16.mxu0 0
      %3686 = vmatmul.mubr.bf16.gmra.mxu0 %v3356
      %v3687 = vpop.f32.mrf.mxu0
      %v3688 = vadd.f32 0.0, %v3687
      %v3689 = vpop.f32.mrf.mxu0
      %v3690 = vpop.f32.mrf.mxu0
      %v3691 = vadd.f32 0.0, %v3690
      %v3692 = vpop.f32.mrf.mxu0
      %3693 = vmatprep.mubr.bf16.mxu0 0
      %3694 = vmatmul.mubr.bf16.gmra.mxu0 %v3359
      %v3695 = vpop.f32.mrf.mxu0
      %v3696 = vadd.f32 0.0, %v3695
      %v3697 = vpop.f32.mrf.mxu0
      %v3698 = vpop.f32.mrf.mxu0
      %v3699 = vadd.f32 0.0, %v3698
      %v3700 = vpop.f32.mrf.mxu0
      %3701 = vmatprep.mubr.bf16.mxu0 0
      %3702 = vmatmul.mubr.bf16.gmra.mxu0 %v3362
      %v3703 = vpop.f32.mrf.mxu0
      %v3704 = vadd.f32 0.0, %v3703
      %v3705 = vpop.f32.mrf.mxu0
      %v3706 = vpop.f32.mrf.mxu0
      %v3707 = vadd.f32 0.0, %v3706
      %v3708 = vpop.f32.mrf.mxu0
      %3709 = vmatprep.mubr.bf16.mxu0 0
      %3710 = vmatmul.mubr.bf16.gmra.mxu0 %v3365
      %v3711 = vpop.f32.mrf.mxu0
      %v3712 = vadd.f32 0.0, %v3711
      %v3713 = vpop.f32.mrf.mxu0
      %v3714 = vpop.f32.mrf.mxu0
      %v3715 = vadd.f32 0.0, %v3714
      %v3716 = vpop.f32.mrf.mxu0
      %3717 = vmatprep.mubr.bf16.mxu0 0
      %3718 = vmatmul.mubr.bf16.gmra.mxu0 %v3368
      %v3719 = vpop.f32.mrf.mxu0
      %v3720 = vadd.f32 0.0, %v3719
      %v3721 = vpop.f32.mrf.mxu0
      %v3722 = vpop.f32.mrf.mxu0
      %v3723 = vadd.f32 0.0, %v3722
      %v3724 = vpop.f32.mrf.mxu0
      %3725 = vmatprep.mubr.bf16.mxu0 0
      %3726 = vmatmul.mubr.bf16.gmra.mxu0 %v3371
      %v3727 = vpop.f32.mrf.mxu0
      %v3728 = vadd.f32 0.0, %v3727
      %v3729 = vpop.f32.mrf.mxu0
      %v3730 = vpop.f32.mrf.mxu0
      %v3731 = vadd.f32 0.0, %v3730
      %v3732 = vpop.f32.mrf.mxu0
      %3733 = vmatprep.mubr.bf16.mxu0 0
      %3734 = vmatmul.mubr.bf16.gmra.mxu0 %v3374
      %v3735 = vpop.f32.mrf.mxu0
      %v3736 = vadd.f32 0.0, %v3735
      %v3737 = vpop.f32.mrf.mxu0
      %v3738 = vpop.f32.mrf.mxu0
      %v3739 = vadd.f32 0.0, %v3738
      %v3740 = vpop.f32.mrf.mxu0
      %3741 = vmatprep.mubr.bf16.mxu0 0
      %3742 = vmatmul.mubr.bf16.gmra.mxu0 %v3377
      %v3743 = vpop.f32.mrf.mxu0
      %v3744 = vadd.f32 0.0, %v3743
      %v3745 = vpop.f32.mrf.mxu0
      %v3746 = vpop.f32.mrf.mxu0
      %v3747 = vadd.f32 0.0, %v3746
      %v3748 = vpop.f32.mrf.mxu0
      %3749 = vdwg.mxu0
      %v3750 = vrot.slane %v3414, 7
      %v3751 = vrot.slane %v3417, 7
      %v3752 = vrot.slane %v3422, 7
      %v3753 = vrot.slane %v3425, 7
      %v3754 = vrot.slane %v3430, 7
      %v3755 = vrot.slane %v3433, 7
      %v3756 = vrot.slane %v3438, 7
      %v3757 = vrot.slane %v3441, 7
      %v3758 = vrot.slane %v3446, 7
      %v3759 = vrot.slane %v3449, 7
      %v3760 = vrot.slane %v3454, 7
      %v3761 = vrot.slane %v3457, 7
      %v3762 = vrot.slane %v3462, 7
      %v3763 = vrot.slane %v3465, 7
      %v3764 = vrot.slane %v3470, 7
      %v3765 = vrot.slane %v3473, 7
      %v3766 = vrot.slane %v3478, 7
      %v3767 = vrot.slane %v3481, 7
      %v3768 = vrot.slane %v3486, 7
      %v3769 = vrot.slane %v3489, 7
      %v3770 = vrot.slane %v3494, 7
      %v3771 = vrot.slane %v3497, 7
      %v3772 = vrot.slane %v3502, 7
      %v3773 = vrot.slane %v3505, 7
      %v3774 = vrot.slane %v3510, 7
      %v3775 = vrot.slane %v3513, 7
      %v3776 = vrot.slane %v3518, 7
      %v3777 = vrot.slane %v3521, 7
      %v3778 = vrot.slane %v3526, 7
      %v3779 = vrot.slane %v3529, 7
      %v3780 = vrot.slane %v3534, 7
      %v3781 = vrot.slane %v3537, 7
      %v3782 = vsel %vm2484, %v3780, %v3781
      %v3783 = vsel %vm2484, %v3779, %v3780
      %v3784 = vsel %vm2484, %v3778, %v3779
      %v3785 = vsel %vm2484, %v3777, %v3778
      %v3786 = vsel %vm2484, %v3776, %v3777
      %v3787 = vsel %vm2484, %v3775, %v3776
      %v3788 = vsel %vm2484, %v3774, %v3775
      %v3789 = vsel %vm2484, %v3773, %v3774
      %v3790 = vsel %vm2484, %v3772, %v3773
      %v3791 = vsel %vm2484, %v3771, %v3772
      %v3792 = vsel %vm2484, %v3770, %v3771
      %v3793 = vsel %vm2484, %v3769, %v3770
      %v3794 = vsel %vm2484, %v3768, %v3769
      %v3795 = vsel %vm2484, %v3767, %v3768
      %v3796 = vsel %vm2484, %v3766, %v3767
      %v3797 = vsel %vm2484, %v3765, %v3766
      %v3798 = vsel %vm2484, %v3764, %v3765
      %v3799 = vsel %vm2484, %v3763, %v3764
      %v3800 = vsel %vm2484, %v3762, %v3763
      %v3801 = vsel %vm2484, %v3761, %v3762
      %v3802 = vsel %vm2484, %v3760, %v3761
      %v3803 = vsel %vm2484, %v3759, %v3760
      %v3804 = vsel %vm2484, %v3758, %v3759
      %v3805 = vsel %vm2484, %v3757, %v3758
      %v3806 = vsel %vm2484, %v3756, %v3757
      %v3807 = vsel %vm2484, %v3755, %v3756
      %v3808 = vsel %vm2484, %v3754, %v3755
      %v3809 = vsel %vm2484, %v3753, %v3754
      %v3810 = vsel %vm2484, %v3752, %v3753
      %v3811 = vsel %vm2484, %v3751, %v3752
      %v3812 = vsel %vm2484, %v3750, %v3751
      %v3813 = vsel %vm2484, %v3781, %v3750
      %v3814 = vmul.f32 %v743, %v3813
      %v3815 = vmul.f32 %v744, %v3812
      %v3816 = vmul.f32 %v745, %v3811
      %v3817 = vmul.f32 %v746, %v3810
      %v3818 = vmul.f32 %v747, %v3809
      %v3819 = vmul.f32 %v748, %v3808
      %v3820 = vmul.f32 %v749, %v3807
      %v3821 = vmul.f32 %v750, %v3806
      %v3822 = vmul.f32 %v751, %v3805
      %v3823 = vmul.f32 %v752, %v3804
      %v3824 = vmul.f32 %v753, %v3803
      %v3825 = vmul.f32 %v754, %v3802
      %v3826 = vmul.f32 %v755, %v3801
      %v3827 = vmul.f32 %v756, %v3800
      %v3828 = vmul.f32 %v757, %v3799
      %v3829 = vmul.f32 %v758, %v3798
      %v3830 = vmul.f32 %v759, %v3797
      %v3831 = vmul.f32 %v760, %v3796
      %v3832 = vmul.f32 %v761, %v3795
      %v3833 = vmul.f32 %v762, %v3794
      %v3834 = vmul.f32 %v763, %v3793
      %v3835 = vmul.f32 %v764, %v3792
      %v3836 = vmul.f32 %v765, %v3791
      %v3837 = vmul.f32 %v766, %v3790
      %v3838 = vmul.f32 %v767, %v3789
      %v3839 = vmul.f32 %v768, %v3788
      %v3840 = vmul.f32 %v769, %v3787
      %v3841 = vmul.f32 %v770, %v3786
      %v3842 = vmul.f32 %v771, %v3785
      %v3843 = vmul.f32 %v772, %v3784
      %v3844 = vmul.f32 %v773, %v3783
      %v3845 = vmul.f32 %v774, %v3782
      %v3858 = vunpack.c.l.b16 %v3191
      %v3859 = vunpack.c.l.b16 %v3192
      %v3860 = vunpack.c.l.b16 %v3193
      %v3861 = vunpack.c.l.b16 %v3194
      %v3862 = vunpack.c.l.b16 %v3195
      %v3863 = vunpack.c.l.b16 %v3196
      %v3864 = vunpack.c.l.b16 %v3197
      %v3865 = vunpack.c.l.b16 %v3198
      %v3866 = vunpack.c.l.b16 %v3199
      %v3867 = vunpack.c.l.b16 %v3200
      %v3868 = vunpack.c.l.b16 %v3201
      %v3869 = vunpack.c.l.b16 %v3202
      %v3870 = vpack.c.b16 %v3859, %v3858
      %v3871 = vpack.c.b16 %v3861, %v3860
      %v3872 = vpack.c.b16 %v3863, %v3862
      %v3873 = vpack.c.b16 %v3865, %v3864
      %v3874 = vpack.c.b16 %v3867, %v3866
      %v3875 = vpack.c.b16 %v3869, %v3868
      %3882 = vmatprep.subr.bf16.mxu0 0
      %3883 = vmatpush1.bf16.msra.mxu0 0
      %3884 = vmatprep.subr.bf16.mxu0 0
      %3885 = vmatpush1.bf16.msra.mxu0 0
      %3886 = vmatprep.subr.bf16.mxu0 0
      %3887 = vmatpush1.bf16.msra.mxu0 %v3875
      %3888 = vmatprep.subr.bf16.mxu0 0
      %3889 = vmatpush1.bf16.msra.mxu0 %v3874
      %3890 = vmatprep.subr.bf16.mxu0 0
      %3891 = vmatpush1.bf16.msra.mxu0 %v3873
      %3892 = vmatprep.subr.bf16.mxu0 0
      %3893 = vmatpush1.bf16.msra.mxu0 %v3872
      %3894 = vmatprep.subr.bf16.mxu0 0
      %3895 = vmatpush1.bf16.msra.mxu0 %v3871
      %3896 = vmatprep.subr.bf16.mxu0 0
      %3897 = vmatpush1.bf16.msra.mxu0 %v3870
      %3898 = vmatprep.subr.bf16.mxu0 0
      %3899 = vmatpush2.bf16.msra.mxu0 0
      %3900 = vmatprep.subr.bf16.mxu0 0
      %3901 = vmatpush2.bf16.msra.mxu0 0
      %3902 = vmatprep.subr.bf16.mxu0 0
      %3903 = vmatpush2.bf16.msra.mxu0 0
      %3904 = vmatprep.subr.bf16.mxu0 0
      %3905 = vmatpush2.bf16.msra.mxu0 0
      %3906 = vmatprep.subr.bf16.mxu0 0
      %3907 = vmatpush2.bf16.msra.mxu0 0
      %3908 = vmatprep.subr.bf16.mxu0 0
      %3909 = vmatpush2.bf16.msra.mxu0 0
      %3910 = vmatprep.subr.bf16.mxu0 0
      %3911 = vmatpush2.bf16.msra.mxu0 0
      %3912 = vmatprep.subr.bf16.mxu0 0
      %3913 = vmatpush2.bf16.msra.mxu0 0
      %3914 = vmatprep.mubr.bf16.mxu0 0
      %3915 = vmatmul.mubr.bf16.gmra.mxu0 %v3332
      %v3916 = vpop.f32.mrf.mxu0
      %v3917 = vadd.f32 %v3814, %v3916
      %v3918 = vpop.f32.mrf.mxu0
      %v3919 = vpop.f32.mrf.mxu0
      %v3920 = vadd.f32 %v3815, %v3919
      %v3921 = vpop.f32.mrf.mxu0
      %3922 = vmatprep.mubr.bf16.mxu0 0
      %3923 = vmatmul.mubr.bf16.gmra.mxu0 %v3335
      %v3924 = vpop.f32.mrf.mxu0
      %v3925 = vadd.f32 %v3816, %v3924
      %v3926 = vpop.f32.mrf.mxu0
      %v3927 = vpop.f32.mrf.mxu0
      %v3928 = vadd.f32 %v3817, %v3927
      %v3929 = vpop.f32.mrf.mxu0
      %3930 = vmatprep.mubr.bf16.mxu0 0
      %3931 = vmatmul.mubr.bf16.gmra.mxu0 %v3338
      %v3932 = vpop.f32.mrf.mxu0
      %v3933 = vadd.f32 %v3818, %v3932
      %v3934 = vpop.f32.mrf.mxu0
      %v3935 = vpop.f32.mrf.mxu0
      %v3936 = vadd.f32 %v3819, %v3935
      %v3937 = vpop.f32.mrf.mxu0
      %3938 = vmatprep.mubr.bf16.mxu0 0
      %3939 = vmatmul.mubr.bf16.gmra.mxu0 %v3341
      %v3940 = vpop.f32.mrf.mxu0
      %v3941 = vadd.f32 %v3820, %v3940
      %v3942 = vpop.f32.mrf.mxu0
      %v3943 = vpop.f32.mrf.mxu0
      %v3944 = vadd.f32 %v3821, %v3943
      %v3945 = vpop.f32.mrf.mxu0
      %3946 = vmatprep.mubr.bf16.mxu0 0
      %3947 = vmatmul.mubr.bf16.gmra.mxu0 %v3344
      %v3948 = vpop.f32.mrf.mxu0
      %v3949 = vadd.f32 %v3822, %v3948
      %v3950 = vpop.f32.mrf.mxu0
      %v3951 = vpop.f32.mrf.mxu0
      %v3952 = vadd.f32 %v3823, %v3951
      %v3953 = vpop.f32.mrf.mxu0
      %3954 = vmatprep.mubr.bf16.mxu0 0
      %3955 = vmatmul.mubr.bf16.gmra.mxu0 %v3347
      %v3956 = vpop.f32.mrf.mxu0
      %v3957 = vadd.f32 %v3824, %v3956
      %v3958 = vpop.f32.mrf.mxu0
      %v3959 = vpop.f32.mrf.mxu0
      %v3960 = vadd.f32 %v3825, %v3959
      %v3961 = vpop.f32.mrf.mxu0
      %3962 = vmatprep.mubr.bf16.mxu0 0
      %3963 = vmatmul.mubr.bf16.gmra.mxu0 %v3350
      %v3964 = vpop.f32.mrf.mxu0
      %v3965 = vadd.f32 %v3826, %v3964
      %v3966 = vpop.f32.mrf.mxu0
      %v3967 = vpop.f32.mrf.mxu0
      %v3968 = vadd.f32 %v3827, %v3967
      %v3969 = vpop.f32.mrf.mxu0
      %3970 = vmatprep.mubr.bf16.mxu0 0
      %3971 = vmatmul.mubr.bf16.gmra.mxu0 %v3353
      %v3972 = vpop.f32.mrf.mxu0
      %v3973 = vadd.f32 %v3828, %v3972
      %v3974 = vpop.f32.mrf.mxu0
      %v3975 = vpop.f32.mrf.mxu0
      %v3976 = vadd.f32 %v3829, %v3975
      %v3977 = vpop.f32.mrf.mxu0
      %3978 = vmatprep.mubr.bf16.mxu0 0
      %3979 = vmatmul.mubr.bf16.gmra.mxu0 %v3356
      %v3980 = vpop.f32.mrf.mxu0
      %v3981 = vadd.f32 %v3830, %v3980
      %v3982 = vpop.f32.mrf.mxu0
      %v3983 = vpop.f32.mrf.mxu0
      %v3984 = vadd.f32 %v3831, %v3983
      %v3985 = vpop.f32.mrf.mxu0
      %3986 = vmatprep.mubr.bf16.mxu0 0
      %3987 = vmatmul.mubr.bf16.gmra.mxu0 %v3359
      %v3988 = vpop.f32.mrf.mxu0
      %v3989 = vadd.f32 %v3832, %v3988
      %v3990 = vpop.f32.mrf.mxu0
      %v3991 = vpop.f32.mrf.mxu0
      %v3992 = vadd.f32 %v3833, %v3991
      %v3993 = vpop.f32.mrf.mxu0
      %3994 = vmatprep.mubr.bf16.mxu0 0
      %3995 = vmatmul.mubr.bf16.gmra.mxu0 %v3362
      %v3996 = vpop.f32.mrf.mxu0
      %v3997 = vadd.f32 %v3834, %v3996
      %v3998 = vpop.f32.mrf.mxu0
      %v3999 = vpop.f32.mrf.mxu0
      %v4000 = vadd.f32 %v3835, %v3999
      %v4001 = vpop.f32.mrf.mxu0
      %4002 = vmatprep.mubr.bf16.mxu0 0
      %4003 = vmatmul.mubr.bf16.gmra.mxu0 %v3365
      %v4004 = vpop.f32.mrf.mxu0
      %v4005 = vadd.f32 %v3836, %v4004
      %v4006 = vpop.f32.mrf.mxu0
      %v4007 = vpop.f32.mrf.mxu0
      %v4008 = vadd.f32 %v3837, %v4007
      %v4009 = vpop.f32.mrf.mxu0
      %4010 = vmatprep.mubr.bf16.mxu0 0
      %4011 = vmatmul.mubr.bf16.gmra.mxu0 %v3368
      %v4012 = vpop.f32.mrf.mxu0
      %v4013 = vadd.f32 %v3838, %v4012
      %v4014 = vpop.f32.mrf.mxu0
      %v4015 = vpop.f32.mrf.mxu0
      %v4016 = vadd.f32 %v3839, %v4015
      %v4017 = vpop.f32.mrf.mxu0
      %4018 = vmatprep.mubr.bf16.mxu0 0
      %4019 = vmatmul.mubr.bf16.gmra.mxu0 %v3371
      %v4020 = vpop.f32.mrf.mxu0
      %v4021 = vadd.f32 %v3840, %v4020
      %v4022 = vpop.f32.mrf.mxu0
      %v4023 = vpop.f32.mrf.mxu0
      %v4024 = vadd.f32 %v3841, %v4023
      %v4025 = vpop.f32.mrf.mxu0
      %4026 = vmatprep.mubr.bf16.mxu0 0
      %4027 = vmatmul.mubr.bf16.gmra.mxu0 %v3374
      %v4028 = vpop.f32.mrf.mxu0
      %v4029 = vadd.f32 %v3842, %v4028
      %v4030 = vpop.f32.mrf.mxu0
      %v4031 = vpop.f32.mrf.mxu0
      %v4032 = vadd.f32 %v3843, %v4031
      %v4033 = vpop.f32.mrf.mxu0
      %4034 = vmatprep.mubr.bf16.mxu0 0
      %4035 = vmatmul.mubr.bf16.gmra.mxu0 %v3377
      %v4036 = vpop.f32.mrf.mxu0
      %v4037 = vadd.f32 %v3844, %v4036
      %v4038 = vpop.f32.mrf.mxu0
      %v4039 = vpop.f32.mrf.mxu0
      %v4040 = vadd.f32 %v3845, %v4039
      %v4041 = vpop.f32.mrf.mxu0
      %4042 = vdwg.mxu0
      %v4043 = vrot.slane %v3624, 1
      %v4044 = vrot.slane %v3627, 1
      %v4045 = vrot.slane %v3632, 1
      %v4046 = vrot.slane %v3635, 1
      %v4047 = vrot.slane %v3640, 1
      %v4048 = vrot.slane %v3643, 1
      %v4049 = vrot.slane %v3648, 1
      %v4050 = vrot.slane %v3651, 1
      %v4051 = vrot.slane %v3656, 1
      %v4052 = vrot.slane %v3659, 1
      %v4053 = vrot.slane %v3664, 1
      %v4054 = vrot.slane %v3667, 1
      %v4055 = vrot.slane %v3672, 1
      %v4056 = vrot.slane %v3675, 1
      %v4057 = vrot.slane %v3680, 1
      %v4058 = vrot.slane %v3683, 1
      %v4059 = vrot.slane %v3688, 1
      %v4060 = vrot.slane %v3691, 1
      %v4061 = vrot.slane %v3696, 1
      %v4062 = vrot.slane %v3699, 1
      %v4063 = vrot.slane %v3704, 1
      %v4064 = vrot.slane %v3707, 1
      %v4065 = vrot.slane %v3712, 1
      %v4066 = vrot.slane %v3715, 1
      %v4067 = vrot.slane %v3720, 1
      %v4068 = vrot.slane %v3723, 1
      %v4069 = vrot.slane %v3728, 1
      %v4070 = vrot.slane %v3731, 1
      %v4071 = vrot.slane %v3736, 1
      %v4072 = vrot.slane %v3739, 1
      %v4073 = vrot.slane %v3744, 1
      %v4074 = vrot.slane %v3747, 1
      %v4075 = vsel %vm2613, %v4073, %v4074
      %v4076 = vsel %vm2613, %v4072, %v4073
      %v4077 = vsel %vm2613, %v4071, %v4072
      %v4078 = vsel %vm2613, %v4070, %v4071
      %v4079 = vsel %vm2613, %v4069, %v4070
      %v4080 = vsel %vm2613, %v4068, %v4069
      %v4081 = vsel %vm2613, %v4067, %v4068
      %v4082 = vsel %vm2613, %v4066, %v4067
      %v4083 = vsel %vm2613, %v4065, %v4066
      %v4084 = vsel %vm2613, %v4064, %v4065
      %v4085 = vsel %vm2613, %v4063, %v4064
      %v4086 = vsel %vm2613, %v4062, %v4063
      %v4087 = vsel %vm2613, %v4061, %v4062
      %v4088 = vsel %vm2613, %v4060, %v4061
      %v4089 = vsel %vm2613, %v4059, %v4060
      %v4090 = vsel %vm2613, %v4058, %v4059
      %v4091 = vsel %vm2613, %v4057, %v4058
      %v4092 = vsel %vm2613, %v4056, %v4057
      %v4093 = vsel %vm2613, %v4055, %v4056
      %v4094 = vsel %vm2613, %v4054, %v4055
      %v4095 = vsel %vm2613, %v4053, %v4054
      %v4096 = vsel %vm2613, %v4052, %v4053
      %v4097 = vsel %vm2613, %v4051, %v4052
      %v4098 = vsel %vm2613, %v4050, %v4051
      %v4099 = vsel %vm2613, %v4049, %v4050
      %v4100 = vsel %vm2613, %v4048, %v4049
      %v4101 = vsel %vm2613, %v4047, %v4048
      %v4102 = vsel %vm2613, %v4046, %v4047
      %v4103 = vsel %vm2613, %v4045, %v4046
      %v4104 = vsel %vm2613, %v4044, %v4045
      %v4105 = vsel %vm2613, %v4043, %v4044
      %v4106 = vsel %vm2613, %v4074, %v4043
      %v4107 = vmul.f32 %v839, %v4105
      %v4108 = vmul.f32 %v840, %v4104
      %v4109 = vmul.f32 %v841, %v4103
      %v4110 = vmul.f32 %v842, %v4102
      %v4111 = vmul.f32 %v843, %v4101
      %v4112 = vmul.f32 %v844, %v4100
      %v4113 = vmul.f32 %v845, %v4099
      %v4114 = vmul.f32 %v846, %v4098
      %v4115 = vmul.f32 %v847, %v4097
      %v4116 = vmul.f32 %v848, %v4096
      %v4117 = vmul.f32 %v849, %v4095
      %v4118 = vmul.f32 %v850, %v4094
      %v4119 = vmul.f32 %v851, %v4093
      %v4120 = vmul.f32 %v852, %v4092
      %v4121 = vmul.f32 %v853, %v4091
      %v4122 = vmul.f32 %v854, %v4090
      %v4123 = vmul.f32 %v855, %v4089
      %v4124 = vmul.f32 %v856, %v4088
      %v4125 = vmul.f32 %v857, %v4087
      %v4126 = vmul.f32 %v858, %v4086
      %v4127 = vmul.f32 %v859, %v4085
      %v4128 = vmul.f32 %v860, %v4084
      %v4129 = vmul.f32 %v861, %v4083
      %v4130 = vmul.f32 %v862, %v4082
      %v4131 = vmul.f32 %v863, %v4081
      %v4132 = vmul.f32 %v864, %v4080
      %v4133 = vmul.f32 %v865, %v4079
      %v4134 = vmul.f32 %v866, %v4078
      %v4135 = vmul.f32 %v867, %v4077
      %v4136 = vmul.f32 %v868, %v4076
      %v4137 = vmul.f32 %v869, %v4075
      %v4138 = vmul.f32 %v870, %v4106
      %v4139 = vadd.f32 %v3917, %v4107
      %v4140 = vadd.f32 %v3920, %v4108
      %v4141 = vadd.f32 %v3925, %v4109
      %v4142 = vadd.f32 %v3928, %v4110
      %v4143 = vadd.f32 %v3933, %v4111
      %v4144 = vadd.f32 %v3936, %v4112
      %v4145 = vadd.f32 %v3941, %v4113
      %v4146 = vadd.f32 %v3944, %v4114
      %v4147 = vadd.f32 %v3949, %v4115
      %v4148 = vadd.f32 %v3952, %v4116
      %v4149 = vadd.f32 %v3957, %v4117
      %v4150 = vadd.f32 %v3960, %v4118
      %v4151 = vadd.f32 %v3965, %v4119
      %v4152 = vadd.f32 %v3968, %v4120
      %v4153 = vadd.f32 %v3973, %v4121
      %v4154 = vadd.f32 %v3976, %v4122
      %v4155 = vadd.f32 %v3981, %v4123
      %v4156 = vadd.f32 %v3984, %v4124
      %v4157 = vadd.f32 %v3989, %v4125
      %v4158 = vadd.f32 %v3992, %v4126
      %v4159 = vadd.f32 %v3997, %v4127
      %v4160 = vadd.f32 %v4000, %v4128
      %v4161 = vadd.f32 %v4005, %v4129
      %v4162 = vadd.f32 %v4008, %v4130
      %v4163 = vadd.f32 %v4013, %v4131
      %v4164 = vadd.f32 %v4016, %v4132
      %v4165 = vadd.f32 %v4021, %v4133
      %v4166 = vadd.f32 %v4024, %v4134
      %v4167 = vadd.f32 %v4029, %v4135
      %v4168 = vadd.f32 %v4032, %v4136
      %v4169 = vadd.f32 %v4037, %v4137
      %v4170 = vadd.f32 %v4040, %v4138
      %v4171 = vadd.f32 %v1078, %v4139
      %v4172 = vadd.f32 %v1083, %v4140
      %v4173 = vadd.f32 %v1088, %v4141
      %v4174 = vadd.f32 %v1093, %v4142
      %v4175 = vadd.f32 %v1098, %v4143
      %v4176 = vadd.f32 %v1103, %v4144
      %v4177 = vadd.f32 %v1108, %v4145
      %v4178 = vadd.f32 %v1113, %v4146
      %v4179 = vadd.f32 %v1118, %v4147
      %v4180 = vadd.f32 %v1123, %v4148
      %v4181 = vadd.f32 %v1128, %v4149
      %v4182 = vadd.f32 %v1133, %v4150
      %v4183 = vadd.f32 %v1138, %v4151
      %v4184 = vadd.f32 %v1143, %v4152
      %v4185 = vadd.f32 %v1148, %v4153
      %v4186 = vadd.f32 %v1153, %v4154
      %v4187 = vadd.f32 %v1158, %v4155
      %v4188 = vadd.f32 %v1163, %v4156
      %v4189 = vadd.f32 %v1168, %v4157
      %v4190 = vadd.f32 %v1173, %v4158
      %v4191 = vadd.f32 %v1178, %v4159
      %v4192 = vadd.f32 %v1183, %v4160
      %v4193 = vadd.f32 %v1188, %v4161
      %v4194 = vadd.f32 %v1193, %v4162
      %v4195 = vadd.f32 %v1198, %v4163
      %v4196 = vadd.f32 %v1203, %v4164
      %v4197 = vadd.f32 %v1208, %v4165
      %v4198 = vadd.f32 %v1213, %v4166
      %v4199 = vadd.f32 %v1218, %v4167
      %v4200 = vadd.f32 %v1223, %v4168
      %v4201 = vadd.f32 %v1228, %v4169
      %v4202 = vadd.f32 %v1233, %v4170
      %v4203 = vmax.f32 %v4171, 0.0
      %v4204 = vmax.f32 %v4172, 0.0
      %v4205 = vmax.f32 %v4173, 0.0
      %v4206 = vmax.f32 %v4174, 0.0
      %v4207 = vmax.f32 %v4175, 0.0
      %v4208 = vmax.f32 %v4176, 0.0
      %v4209 = vmax.f32 %v4177, 0.0
      %v4210 = vmax.f32 %v4178, 0.0
      %v4211 = vmax.f32 %v4179, 0.0
      %v4212 = vmax.f32 %v4180, 0.0
      %v4213 = vmax.f32 %v4181, 0.0
      %v4214 = vmax.f32 %v4182, 0.0
      %v4215 = vmax.f32 %v4183, 0.0
      %v4216 = vmax.f32 %v4184, 0.0
      %v4217 = vmax.f32 %v4185, 0.0
      %v4218 = vmax.f32 %v4186, 0.0
      %v4219 = vmax.f32 %v4187, 0.0
      %v4220 = vmax.f32 %v4188, 0.0
      %v4221 = vmax.f32 %v4189, 0.0
      %v4222 = vmax.f32 %v4190, 0.0
      %v4223 = vmax.f32 %v4191, 0.0
      %v4224 = vmax.f32 %v4192, 0.0
      %v4225 = vmax.f32 %v4193, 0.0
      %v4226 = vmax.f32 %v4194, 0.0
      %v4227 = vmax.f32 %v4195, 0.0
      %v4228 = vmax.f32 %v4196, 0.0
      %v4229 = vmax.f32 %v4197, 0.0
      %v4230 = vmax.f32 %v4198, 0.0
      %v4231 = vmax.f32 %v4199, 0.0
      %v4232 = vmax.f32 %v4200, 0.0
      %v4233 = vmax.f32 %v4201, 0.0
      %v4234 = vmax.f32 %v4202, 0.0
      %4235 = vst.msk [vmem:[%s251] sm:$0xff] %vm914, %v4203
      %4236 = vst.msk [vmem:[%s251 + $0x8] sm:$0xff] %vm914, %v4204
      %4237 = vst.msk [vmem:[%s251 + $0x10] sm:$0xff] %vm914, %v4205
      %4238 = vst.msk [vmem:[%s251 + $0x18] sm:$0xff] %vm914, %v4206
      %4239 = vst.msk [vmem:[%s251 + $0x20] sm:$0xff] %vm914, %v4207
      %4240 = vst.msk [vmem:[%s251 + $0x28] sm:$0xff] %vm914, %v4208
      %4241 = vst.msk [vmem:[%s251 + $0x30] sm:$0xff] %vm914, %v4209
      %4242 = vst.msk [vmem:[%s251 + $0x38] sm:$0xff] %vm914, %v4210
      %4243 = vst.msk [vmem:[%s251 + $0x40] sm:$0xff] %vm914, %v4211
      %4244 = vst.msk [vmem:[%s251 + $0x48] sm:$0xff] %vm914, %v4212
      %4245 = vst.msk [vmem:[%s251 + $0x50] sm:$0xff] %vm914, %v4213
      %4246 = vst.msk [vmem:[%s251 + $0x58] sm:$0xff] %vm914, %v4214
      %4247 = vst.msk [vmem:[%s251 + $0x60] sm:$0xff] %vm914, %v4215
      %4248 = vst.msk [vmem:[%s251 + $0x68] sm:$0xff] %vm914, %v4216
      %4249 = vst.msk [vmem:[%s251 + $0x70] sm:$0xff] %vm914, %v4217
      %4250 = vst.msk [vmem:[%s251 + $0x78] sm:$0xff] %vm914, %v4218
      %4251 = vst.msk [vmem:[%s251 + $0x80] sm:$0xff] %vm914, %v4219
      %4252 = vst.msk [vmem:[%s251 + $0x88] sm:$0xff] %vm914, %v4220
      %4253 = vst.msk [vmem:[%s251 + $0x90] sm:$0xff] %vm914, %v4221
      %4254 = vst.msk [vmem:[%s251 + $0x98] sm:$0xff] %vm914, %v4222
      %4255 = vst.msk [vmem:[%s251 + $0xa0] sm:$0xff] %vm914, %v4223
      %4256 = vst.msk [vmem:[%s251 + $0xa8] sm:$0xff] %vm914, %v4224
      %4257 = vst.msk [vmem:[%s251 + $0xb0] sm:$0xff] %vm914, %v4225
      %4258 = vst.msk [vmem:[%s251 + $0xb8] sm:$0xff] %vm914, %v4226
      %4259 = vst.msk [vmem:[%s251 + $0xc0] sm:$0xff] %vm914, %v4227
      %4260 = vst.msk [vmem:[%s251 + $0xc8] sm:$0xff] %vm914, %v4228
      %4261 = vst.msk [vmem:[%s251 + $0xd0] sm:$0xff] %vm914, %v4229
      %4262 = vst.msk [vmem:[%s251 + $0xd8] sm:$0xff] %vm914, %v4230
      %4263 = vst.msk [vmem:[%s251 + $0xe0] sm:$0xff] %vm914, %v4231
      %4264 = vst.msk [vmem:[%s251 + $0xe8] sm:$0xff] %vm914, %v4232
      %4265 = vst.msk [vmem:[%s251 + $0xf0] sm:$0xff] %vm914, %v4233
      %4266 = vst.msk [vmem:[%s251 + $0xf8] sm:$0xff] %vm914, %v4234
      %p4267 = scmp.lt.s32.totalorder %s17, 1
      %s4268 = scalar_select %p4267, %s17, 1
      %s4269 = smul.addr %s4268, 32
      %s4270 = smul.addr %s4269, 8
      %s4271 = scalar_lea.vmem %s6, %s4270
      // Predicated region
      $region45: #{tpu_custom_call.1} parent=43 // pred_check
        %p4272 = pneg %p166
      $region46: #{tpu_custom_call.1} parent=43 // pred_check_branch
        %4274 = sbr.rel (%p4272) target = $region48
      $region47: #{tpu_custom_call.1} parent=43 // pred_region
        _
      $region48: #{tpu_custom_call.1} parent=43 // pred_fallthru
        _
    $region44: #{tpu_custom_call.1} parent=5 // pred_fallthru
      _
    %p4275 = scmp.le.s32.totalorder 2, %s12
    // Predicated region
    $region49: #{tpu_custom_call.1} parent=5 // pred_check
      %p4276 = pneg %p4275
    $region50: #{tpu_custom_call.1} parent=5 // pred_check_branch
      %4278 = sbr.rel (%p4276) target = $region52
    $region51: #{tpu_custom_call.1} parent=5 // pred_region
      %s4279 = ssub.s32 %s12, 2
      // Predicated region
      $region53: #{tpu_custom_call.1} parent=51 // pred_check
        %p4280 = pneg %p172
      $region54: #{tpu_custom_call.1} parent=51 // pred_check_branch
        %4282 = sbr.rel (%p4280) target = $region56
      $region55: #{tpu_custom_call.1} parent=51 // pred_region
        %p4283 = scmp.lt.s32.totalorder %s18, 1
        %s4284 = scalar_select %p4283, %s18, 1
        %s4285 = smul.addr %s4284, 32
        %s4286 = smul.addr %s4285, 8
        %s4287 = scalar_lea.vmem %s6, %s4286
      $region56: #{tpu_custom_call.1} parent=51 // pred_fallthru
        _
    $region52: #{tpu_custom_call.1} parent=5 // pred_fallthru
      _
  $region6: #{tpu_custom_call.1} parent=0 // loop_footer
    %s16 = sadd.s32 1, %s12
  $region7: #{tpu_custom_call.1} parent=0 // loop_footer_branch
    %11 = sbr.rel target = $region3
  $region8: #{tpu_custom_call.1} parent=0 // loop_exit
    _

</llo_original>
